<compile_context>
chip_gen: v7x
topology: tpu7x:2x2x1
jax: 0.10.0
libtpu: 0.0.40
codegen_flags: <defaults>
</compile_context>

<pallas_src>
import math
from functools import partial

import jax
import jax.numpy as jnp
from jax import lax
from jax.experimental import pallas as pl
from jax.experimental.pallas import tpu as pltpu

# ---------------- synthetic BERT config (small) ----------------
VOCAB = 50
HIDDEN = 32
N_HEADS = 4
HEAD_DIM = HIDDEN // N_HEADS
INTERMEDIATE = 64
N_LAYERS = 2
MAX_POS = 16
NUM_LABELS = 2
LN_EPS = 1e-12
LANE = 128                       # lane-dense padding for the classifier output
ATTN_SCALE = 1.0 / math.sqrt(HEAD_DIM)
ROWS_PER_STEP = 256              # target flattened rows (BB*S) per grid step (128 on v5e)

# rows of the packed per-layer bias / LayerNorm bundle  vecs[l, idx, :128]
V_BQKV, V_BO, V_LN1G, V_LN1B, V_B1, V_B2, V_LN2G, V_LN2B = range(8)


def _gelu(x):
    # tanh-approx GELU (HF "gelu_new").
    # TODO(synk): exact erf-based GELU if bit-exact HF "gelu" is required.
    c = math.sqrt(2.0 / math.pi)
    return 0.5 * x * (1.0 + jnp.tanh(c * (x + 0.044715 * x * x * x)))


def _layernorm(x, g, b):
    mu = jnp.mean(x, axis=-1, keepdims=True)
    var = jnp.mean((x - mu) ** 2, axis=-1, keepdims=True)
    return (x - mu) * lax.rsqrt(var + LN_EPS) * g + b


# ---------------- fused encoder kernel: one grid step == BB sequences ----------------
def _bert_block_kernel(h_ref, keymask_ref, segbias_ref,
                       wqkv_ref, wo_ref, w1_ref, w2_ref, vec_ref,
                       headw_ref, headb_ref,
                       out_ref, qkv_ref, *, seq_len, bb):
    f32 = jnp.float32
    bf16 = jnp.bfloat16
    R = bb * seq_len

    h = h_ref[...]                                             # (R, H) f32, post-embedding-LN
    # additive attention bias: block-diagonal (same sequence) + key-padding, built once
    bias = segbias_ref[...] + (1.0 - keymask_ref[...]) * (-1e9)   # (R, R) f32

    for l in range(N_LAYERS):
        wqkv_l = wqkv_ref[l]                                   # (H, 3H)  bf16
        wo_l = wo_ref[l]                                       # (H, H)   bf16
        w1_l = w1_ref[l]                                       # (H, I)   bf16
        w2_l = w2_ref[l]                                       # (I, H)   bf16
        vec_l = vec_ref[l]                                     # (8, 128) f32

        # ---- fused QKV projection, staged in VMEM scratch (no value lane slicing) ----
        qkv = jnp.dot(h.astype(bf16), wqkv_l, preferred_element_type=f32)
        qkv_ref[...] = qkv + vec_l[V_BQKV:V_BQKV + 1, :3 * HIDDEN]

        # ---- multi-head attention over the flattened (blocked-batch) rows ----
        attn = jnp.zeros((R, HIDDEN), f32)
        for hh in range(N_HEADS):
            off = hh * HEAD_DIM
            qh = qkv_ref[:, off:off + HEAD_DIM].astype(bf16)                      # (R, Dh)
            kh = qkv_ref[:, HIDDEN + off:HIDDEN + off + HEAD_DIM].astype(bf16)    # (R, Dh)
            vh = qkv_ref[:, 2 * HIDDEN + off:2 * HIDDEN + off + HEAD_DIM].astype(bf16)

            # (R, Dh) @ (Dh, R) scores (contraction on last dims, no transpose op)
            s = jnp.einsum("qd,kd->qk", qh, kh, preferred_element_type=f32)
            s = s * ATTN_SCALE + bias
            s = s - jnp.max(s, axis=-1, keepdims=True)
            e = jnp.exp(s)
            p = e / jnp.sum(e, axis=-1, keepdims=True)         # exact divide (parity)

            ctx_h = jnp.dot(p.astype(bf16), vh, preferred_element_type=f32)       # (R, Dh)
            # head-merge + output projection folded: aligned sublane slice of Wo
            attn = attn + jnp.dot(ctx_h.astype(bf16),
                                  wo_l[off:off + HEAD_DIM, :],
                                  preferred_element_type=f32)

        attn = attn + vec_l[V_BO:V_BO + 1, :HIDDEN]
        h = _layernorm(attn + h,
                       vec_l[V_LN1G:V_LN1G + 1, :HIDDEN],
                       vec_l[V_LN1B:V_LN1B + 1, :HIDDEN])

        # ---- feed-forward ----
        ff = jnp.dot(h.astype(bf16), w1_l, preferred_element_type=f32)
        ff = _gelu(ff + vec_l[V_B1:V_B1 + 1, :INTERMEDIATE])
        ff = jnp.dot(ff.astype(bf16), w2_l, preferred_element_type=f32)
        ff = ff + vec_l[V_B2:V_B2 + 1, :HIDDEN]
        h = _layernorm(ff + h,
                       vec_l[V_LN2G:V_LN2G + 1, :HIDDEN],
                       vec_l[V_LN2B:V_LN2B + 1, :HIDDEN])

    # ---- pooler (tanh on [CLS]) + classifier ----
    # [CLS] rows are flattened rows 0, S, 2S, ...; select them with a tiny one-hot matmul.
    rows = lax.broadcasted_iota(jnp.int32, (bb, R), 0) * seq_len
    cols = lax.broadcasted_iota(jnp.int32, (bb, R), 1)
    sel = (rows == cols).astype(jnp.bfloat16)                  # (bb, R)
    cls = jnp.dot(sel, h.astype(jnp.bfloat16), preferred_element_type=f32)   # (bb, H)

    pooled = jnp.tanh(jnp.dot(cls.astype(jnp.bfloat16), headw_ref[0],
                              preferred_element_type=f32) + headb_ref[0:1, :])   # (bb, 128)
    logits = jnp.dot(pooled[:, :HIDDEN].astype(jnp.bfloat16), headw_ref[1],
                     preferred_element_type=f32) + headb_ref[1:2, :]             # (bb, 128)
    out_ref[...] = logits                                      # lane-dense (bb, 128) store


def _full_spec(shape):
    n = len(shape)
    return pl.BlockSpec(shape, lambda b, _n=n: (0,) * _n)


# ---------------- forward (== BertModelWrapper.forward) ----------------
def bert_model_wrapper_forward(params, x):
    f32 = jnp.float32
    ids = x.astype(jnp.int32)                 # input.long()
    mask = (x > 0).astype(f32)                # attention_mask, [B, S]
    B, S = ids.shape
    assert S <= MAX_POS

    # ---- embeddings (word gather + pos + type-0) and embedding LN in XLA ----
    emb = (jnp.take(params["word_emb"], ids, axis=0)
           + params["pos_emb"][:S][None]
           + params["type_row"][0])
    mu = emb.mean(-1, keepdims=True)
    var = ((emb - mu) ** 2).mean(-1, keepdims=True)
    h0 = ((emb - mu) * lax.rsqrt(var + LN_EPS)
          * params["emb_ln_g"] + params["emb_ln_b"]).astype(f32)        # [B, S, H]

    # ---- batch blocking: BB sequences per grid step, flattened to R = BB*S rows ----
    BB = max(1, min(B, ROWS_PER_STEP // S))
    nb = pl.cdiv(B, BB)
    B_pad = nb * BB
    if B_pad != B:
        h0 = jnp.concatenate([h0, jnp.zeros((B_pad - B, S, HIDDEN), f32)], axis=0)
        mask = jnp.concatenate([mask, jnp.zeros((B_pad - B, S), f32)], axis=0)
    R = BB * S

    h0_blk = h0.reshape(nb, R, HIDDEN)
    mask_blk = mask.reshape(nb, 1, R)

    # block-diagonal (same-sequence) additive bias, shared by every grid block
    seg = jnp.arange(R, dtype=jnp.int32) // S
    segbias = jnp.where(seg[:, None] == seg[None, :], 0.0, -1e9).astype(f32)   # (R, R)

    weight_args = (params["wqkv"], params["wo"], params["w1"], params["w2"],
                   params["vecs"], params["head_w"], params["head_b"])

    in_specs = [
        pl.BlockSpec((None, R, HIDDEN), lambda b: (b, 0, 0)),   # activations (per block)
        pl.BlockSpec((None, 1, R), lambda b: (b, 0, 0)),        # key-padding mask (per block)
        pl.BlockSpec((R, R), lambda b: (0, 0)),                 # block-diagonal bias (shared)
    ] + [_full_spec(w.shape) for w in weight_args]              # weights: VMEM-resident

    out_padded = pl.pallas_call(
        partial(_bert_block_kernel, seq_len=S, bb=BB),
        out_shape=jax.ShapeDtypeStruct((B_pad, LANE), f32),
        grid=(nb,),
        in_specs=in_specs,
        out_specs=pl.BlockSpec((BB, LANE), lambda b: (b, 0)),
        scratch_shapes=[pltpu.VMEM((R, 3 * HIDDEN), f32)],      # staged QKV
        compiler_params=pltpu.CompilerParams(
            dimension_semantics=("parallel",)),                 # v7x: blocks across both TCs
    )(h0_blk, mask_blk, segbias, *weight_args)

    return out_padded[:B, :NUM_LABELS]                          # [B, NUM_LABELS]


# ---------------- parameter init (deterministic, pre-packed for the kernel) ----------------
def init_params(key):
    f32, bf16 = jnp.float32, jnp.bfloat16
    keys = jax.random.split(key, 40)
    ki = iter(keys)

    def nrm(shape, scale=0.02):
        return scale * jax.random.normal(next(ki), shape, dtype=f32)

    def pack128(v):
        return jnp.zeros((LANE,), f32).at[: v.shape[0]].set(v)

    params = dict(
        word_emb=nrm((VOCAB, HIDDEN)),
        pos_emb=nrm((MAX_POS, HIDDEN)),
        type_row=nrm((1, HIDDEN)),               # token_type_ids assumed all zero
        emb_ln_g=1.0 + nrm((HIDDEN,)),
        emb_ln_b=nrm((HIDDEN,)),
    )

    wqkv, wo, w1, w2, vecs = [], [], [], [], []
    for _ in range(N_LAYERS):
        wq, wk, wv = nrm((HIDDEN, HIDDEN)), nrm((HIDDEN, HIDDEN)), nrm((HIDDEN, HIDDEN))
        wqkv.append(jnp.concatenate([wq, wk, wv], axis=1))      # (H, 3H)
        wo.append(nrm((HIDDEN, HIDDEN)))
        w1.append(nrm((HIDDEN, INTERMEDIATE)))
        w2.append(nrm((INTERMEDIATE, HIDDEN)))
        vecs.append(jnp.stack([
            pack128(nrm((3 * HIDDEN,))),          # V_BQKV
            pack128(nrm((HIDDEN,))),              # V_BO
            pack128(1.0 + nrm((HIDDEN,))),        # V_LN1G
            pack128(nrm((HIDDEN,))),              # V_LN1B
            pack128(nrm((INTERMEDIATE,))),        # V_B1
            pack128(nrm((HIDDEN,))),              # V_B2
            pack128(1.0 + nrm((HIDDEN,))),        # V_LN2G
            pack128(nrm((HIDDEN,))),              # V_LN2B
        ]))
    params["wqkv"] = jnp.stack(wqkv).astype(bf16)
    params["wo"] = jnp.stack(wo).astype(bf16)
    params["w1"] = jnp.stack(w1).astype(bf16)
    params["w2"] = jnp.stack(w2).astype(bf16)
    params["vecs"] = jnp.stack(vecs)

    pool_w, pool_b = nrm((HIDDEN, HIDDEN)), nrm((HIDDEN,))
    cls_w, cls_b = nrm((HIDDEN, NUM_LABELS)), nrm((NUM_LABELS,))
    head_w = jnp.zeros((2, HIDDEN, LANE), f32)
    head_w = head_w.at[0, :, :HIDDEN].set(pool_w).at[1, :, :NUM_LABELS].set(cls_w)
    params["head_w"] = head_w.astype(bf16)
    head_b = jnp.zeros((2, LANE), f32)
    params["head_b"] = head_b.at[0, :HIDDEN].set(pool_b).at[1, :NUM_LABELS].set(cls_b)
    return params


# ---------------- pure-JAX reference (mirrors the kernel math) ----------------
def reference_forward(params, x):
    f32, bf16 = jnp.float32, jnp.bfloat16
    mm = lambda a, w: jnp.dot(a.astype(bf16), w.astype(bf16), preferred_element_type=f32)

    ids = x.astype(jnp.int32)
    mask = (x > 0).astype(f32)
    B, S = ids.shape

    def ln(h, g, b):
        mu = h.mean(-1, keepdims=True)
        var = ((h - mu) ** 2).mean(-1, keepdims=True)
        return (h - mu) * lax.rsqrt(var + LN_EPS) * g + b

    emb = (jnp.take(params["word_emb"], ids, axis=0)
           + params["pos_emb"][:S][None] + params["type_row"][0])
    h = ln(emb, params["emb_ln_g"], params["emb_ln_b"])
    bias = (1.0 - mask)[:, None, None, :] * (-1e9)              # [B,1,1,S]

    for l in range(N_LAYERS):
        vec = params["vecs"][l]
        qkv = mm(h, params["wqkv"][l]) + vec[V_BQKV, :3 * HIDDEN]
        q, k, v = jnp.split(qkv, 3, axis=-1)
        heads = lambda t: t.reshape(B, S, N_HEADS, HEAD_DIM).transpose(0, 2, 1, 3)
        qh, kh, vh = heads(q), heads(k), heads(v)
        s = jnp.einsum("bhqd,bhkd->bhqk", qh.astype(bf16), kh.astype(bf16),
                       preferred_element_type=f32) * ATTN_SCALE + bias
        s = s - s.max(-1, keepdims=True)
        e = jnp.exp(s)
        p = e / e.sum(-1, keepdims=True)
        ctx = jnp.einsum("bhqk,bhkd->bhqd", p.astype(bf16), vh.astype(bf16),
                         preferred_element_type=f32)
        ctx = ctx.transpose(0, 2, 1, 3).reshape(B, S, HIDDEN)
        h = ln(mm(ctx, params["wo"][l]) + vec[V_BO, :HIDDEN] + h,
               vec[V_LN1G, :HIDDEN], vec[V_LN1B, :HIDDEN])
        ff = _gelu(mm(h, params["w1"][l]) + vec[V_B1, :INTERMEDIATE])
        ff = mm(ff, params["w2"][l]) + vec[V_B2, :HIDDEN]
        h = ln(ff + h, vec[V_LN2G, :HIDDEN], vec[V_LN2B, :HIDDEN])

    cls = h[:, 0, :]
    pooled = jnp.tanh(mm(cls, params["head_w"][0, :, :HIDDEN])
                      + params["head_b"][0, :HIDDEN])
    logits = mm(pooled, params["head_w"][1]) + params["head_b"][1]
    return logits[:, :NUM_LABELS]


if __name__ == "__main__":
    key = jax.random.PRNGKey(0)
    pkey, xkey = jax.random.split(key)
    params = init_params(pkey)

    B, S = 8, 8
    ids = jax.random.randint(xkey, (B, S), 1, VOCAB, dtype=jnp.int32)
    # add padding zeros so the attention mask (input > 0) does real work
    ids = ids.at[0, 6:].set(0).at[1, 4:].set(0).at[5, 3:].set(0)
    x = ids.astype(jnp.float32)   # wrapper accepts float ids; forward casts to long

    logits = jax.jit(bert_model_wrapper_forward)(params, x)
    logits = jax.block_until_ready(logits)
    assert logits.shape == (B, NUM_LABELS) and logits.dtype == jnp.float32
    assert bool(jnp.all(jnp.isfinite(logits)))

    ref = reference_forward(params, x)
    err = float(jnp.max(jnp.abs(logits - ref)))
    assert err < 2e-3, f"max abs err {err}"
    print("KERNEL_OK")
</pallas_src>

<mosaic_0001>
module attributes {stable_mosaic.version = 11 : i64} {
  func.func @_bert_block_kernel(%arg0: i32, %arg1: memref<1x64x32xf32, #tpu.memory_space<vmem>>, %arg2: memref<1x1x64xf32, #tpu.memory_space<vmem>>, %arg3: memref<64x64xf32, #tpu.memory_space<vmem>>, %arg4: memref<2x32x96xbf16, #tpu.memory_space<vmem>>, %arg5: memref<2x32x32xbf16, #tpu.memory_space<vmem>>, %arg6: memref<2x32x64xbf16, #tpu.memory_space<vmem>>, %arg7: memref<2x64x32xbf16, #tpu.memory_space<vmem>>, %arg8: memref<2x8x128xf32, #tpu.memory_space<vmem>>, %arg9: memref<2x32x128xbf16, #tpu.memory_space<vmem>>, %arg10: memref<2x128xf32, #tpu.memory_space<vmem>>, %arg11: memref<8x128xf32, #tpu.memory_space<vmem>>, %arg12: memref<64x96xf32, #tpu.memory_space<vmem>>) attributes {dimension_semantics = [#tpu.dimension_semantics<parallel>], iteration_bounds = array<i64: 1>, scalar_prefetch = 0 : i64, scratch_operands = 1 : i64, tpu.core_type = #tpu.core_type<tc>, window_params = [{transform_indices = @transform_0, window_bounds = array<i64: 1, 64, 32>}, {transform_indices = @transform_1, window_bounds = array<i64: 1, 1, 64>}, {pipeline_mode = #tpu.pipeline_mode<synchronous>, transform_indices = @transform_2, window_bounds = array<i64: 64, 64>}, {pipeline_mode = #tpu.pipeline_mode<synchronous>, transform_indices = @transform_3, window_bounds = array<i64: 2, 32, 96>}, {pipeline_mode = #tpu.pipeline_mode<synchronous>, transform_indices = @transform_4, window_bounds = array<i64: 2, 32, 32>}, {pipeline_mode = #tpu.pipeline_mode<synchronous>, transform_indices = @transform_5, window_bounds = array<i64: 2, 32, 64>}, {pipeline_mode = #tpu.pipeline_mode<synchronous>, transform_indices = @transform_6, window_bounds = array<i64: 2, 64, 32>}, {pipeline_mode = #tpu.pipeline_mode<synchronous>, transform_indices = @transform_7, window_bounds = array<i64: 2, 8, 128>}, {pipeline_mode = #tpu.pipeline_mode<synchronous>, transform_indices = @transform_8, window_bounds = array<i64: 2, 32, 128>}, {pipeline_mode = #tpu.pipeline_mode<synchronous>, transform_indices = @transform_9, window_bounds = array<i64: 2, 128>}, {transform_indices = @transform_10, window_bounds = array<i64: 8, 128>}]} {
    %c0 = arith.constant 0 : index
    %c0_0 = arith.constant 0 : index
    %c0_1 = arith.constant 0 : index
    %0 = vector.load %arg1[%c0, %c0_0, %c0_1] : memref<1x64x32xf32, #tpu.memory_space<vmem>>, vector<1x64x32xf32>
    %1 = vector.shape_cast %0 : vector<1x64x32xf32> to vector<64x32xf32>
    %c0_2 = arith.constant 0 : index
    %c0_3 = arith.constant 0 : index
    %2 = vector.load %arg3[%c0_2, %c0_3] : memref<64x64xf32, #tpu.memory_space<vmem>>, vector<64x64xf32>
    %c0_4 = arith.constant 0 : index
    %c0_5 = arith.constant 0 : index
    %c0_6 = arith.constant 0 : index
    %3 = vector.load %arg2[%c0_4, %c0_5, %c0_6] : memref<1x1x64xf32, #tpu.memory_space<vmem>>, vector<1x1x64xf32>
    %4 = vector.shape_cast %3 : vector<1x1x64xf32> to vector<1x64xf32>
    %cst = arith.constant 1.000000e+00 : f32
    %5 = vector.broadcast %cst : f32 to vector<1x64xf32>
    %6 = arith.subf %5, %4 : vector<1x64xf32>
    %cst_7 = arith.constant -1.000000e+09 : f32
    %7 = vector.broadcast %cst_7 : f32 to vector<1x64xf32>
    %8 = arith.mulf %6, %7 : vector<1x64xf32>
    %9 = vector.broadcast %8 : vector<1x64xf32> to vector<64x64xf32>
    %10 = arith.addf %2, %9 : vector<64x64xf32>
    %c0_8 = arith.constant 0 : index
    %c0_9 = arith.constant 0 : index
    %c0_10 = arith.constant 0 : index
    %11 = vector.load %arg4[%c0_8, %c0_9, %c0_10] : memref<2x32x96xbf16, #tpu.memory_space<vmem>>, vector<1x32x96xbf16>
    %12 = vector.shape_cast %11 : vector<1x32x96xbf16> to vector<32x96xbf16>
    %c0_11 = arith.constant 0 : index
    %c0_12 = arith.constant 0 : index
    %c0_13 = arith.constant 0 : index
    %13 = vector.load %arg5[%c0_11, %c0_12, %c0_13] : memref<2x32x32xbf16, #tpu.memory_space<vmem>>, vector<1x32x32xbf16>
    %14 = vector.shape_cast %13 : vector<1x32x32xbf16> to vector<32x32xbf16>
    %c0_14 = arith.constant 0 : index
    %c0_15 = arith.constant 0 : index
    %c0_16 = arith.constant 0 : index
    %15 = vector.load %arg6[%c0_14, %c0_15, %c0_16] : memref<2x32x64xbf16, #tpu.memory_space<vmem>>, vector<1x32x64xbf16>
    %16 = vector.shape_cast %15 : vector<1x32x64xbf16> to vector<32x64xbf16>
    %c0_17 = arith.constant 0 : index
    %c0_18 = arith.constant 0 : index
    %c0_19 = arith.constant 0 : index
    %17 = vector.load %arg7[%c0_17, %c0_18, %c0_19] : memref<2x64x32xbf16, #tpu.memory_space<vmem>>, vector<1x64x32xbf16>
    %18 = vector.shape_cast %17 : vector<1x64x32xbf16> to vector<64x32xbf16>
    %c0_20 = arith.constant 0 : index
    %c0_21 = arith.constant 0 : index
    %c0_22 = arith.constant 0 : index
    %19 = vector.load %arg8[%c0_20, %c0_21, %c0_22] : memref<2x8x128xf32, #tpu.memory_space<vmem>>, vector<1x8x128xf32>
    %20 = vector.shape_cast %19 : vector<1x8x128xf32> to vector<8x128xf32>
    %21 = arith.truncf %1 : vector<64x32xf32> to vector<64x32xbf16>
    %cst_23 = arith.constant dense<0.000000e+00> : vector<64x96xf32>
    %22 = tpu.matmul %21, %12, %cst_23 {dimension_numbers = #tpu.dot_dimension_numbers<[1], [0], [0], [1], [0, 0, 1, 1], [], []>} : vector<64x32xbf16>, vector<32x96xbf16>, vector<64x96xf32> -> vector<64x96xf32>
    %23 = vector.extract_strided_slice %20 {offsets = [0, 0], sizes = [1, 96], strides = [1, 1]} : vector<8x128xf32> to vector<1x96xf32>
    %24 = vector.broadcast %23 : vector<1x96xf32> to vector<64x96xf32>
    %25 = arith.addf %22, %24 : vector<64x96xf32>
    %c0_24 = arith.constant 0 : index
    %c0_25 = arith.constant 0 : index
    %26 = vector.load %arg12[%c0_24, %c0_25] : memref<64x96xf32, #tpu.memory_space<vmem>>, vector<64x96xf32>
    tpu.vector_store %arg12[%c0_24, %c0_25], %25 {strides = array<i32>} : memref<64x96xf32, #tpu.memory_space<vmem>>, vector<64x96xf32>,
    %cst_26 = arith.constant 0.000000e+00 : f32
    %27 = vector.broadcast %cst_26 : f32 to vector<64x32xf32>
    %c0_27 = arith.constant 0 : index
    %c0_28 = arith.constant 0 : index
    %28 = vector.load %arg12[%c0_27, %c0_28] : memref<64x96xf32, #tpu.memory_space<vmem>>, vector<64x8xf32>
    %29 = arith.truncf %28 : vector<64x8xf32> to vector<64x8xbf16>
    %c0_29 = arith.constant 0 : index
    %c32 = arith.constant 32 : index
    %30 = vector.load %arg12[%c0_29, %c32] : memref<64x96xf32, #tpu.memory_space<vmem>>, vector<64x8xf32>
    %31 = arith.truncf %30 : vector<64x8xf32> to vector<64x8xbf16>
    %c0_30 = arith.constant 0 : index
    %c64 = arith.constant 64 : index
    %32 = vector.load %arg12[%c0_30, %c64] : memref<64x96xf32, #tpu.memory_space<vmem>>, vector<64x8xf32>
    %33 = arith.truncf %32 : vector<64x8xf32> to vector<64x8xbf16>
    "tpu.trace_start"() <{level = 10 : i32, message = "qd,kd->qk"}> : () -> ()
    %cst_31 = arith.constant dense<0.000000e+00> : vector<64x64xf32>
    %34 = tpu.matmul %29, %31, %cst_31 {dimension_numbers = #tpu.dot_dimension_numbers<[1], [1], [0], [0], [0, 0, 1, 0], [], []>} : vector<64x8xbf16>, vector<64x8xbf16>, vector<64x64xf32> -> vector<64x64xf32>
    "tpu.trace_stop"() : () -> ()
    %cst_32 = arith.constant 0.353553385 : f32
    %35 = vector.broadcast %cst_32 : f32 to vector<64x64xf32>
    %36 = arith.mulf %34, %35 : vector<64x64xf32>
    %37 = arith.addf %36, %10 : vector<64x64xf32>
    %cst_33 = arith.constant dense<0xFF800000> : vector<64xf32>
    %38 = vector.multi_reduction <maximumf>, %37, %cst_33 [1] : vector<64x64xf32> to vector<64xf32>
    %39 = vector.shape_cast %38 : vector<64xf32> to vector<64x1xf32>
    %40 = vector.broadcast %39 : vector<64x1xf32> to vector<64x64xf32>
    %41 = arith.subf %37, %40 : vector<64x64xf32>
    %42 = math.exp %41 : vector<64x64xf32>
    %cst_34 = arith.constant dense<0.000000e+00> : vector<64xf32>
    %43 = vector.multi_reduction <add>, %42, %cst_34 [1] : vector<64x64xf32> to vector<64xf32>
    %44 = vector.shape_cast %43 : vector<64xf32> to vector<64x1xf32>
    %45 = vector.broadcast %44 : vector<64x1xf32> to vector<64x64xf32>
    %46 = arith.divf %42, %45 : vector<64x64xf32>
    %47 = arith.truncf %46 : vector<64x64xf32> to vector<64x64xbf16>
    %cst_35 = arith.constant dense<0.000000e+00> : vector<64x8xf32>
    %48 = tpu.matmul %47, %33, %cst_35 {dimension_numbers = #tpu.dot_dimension_numbers<[1], [0], [0], [1], [0, 0, 1, 1], [], []>} : vector<64x64xbf16>, vector<64x8xbf16>, vector<64x8xf32> -> vector<64x8xf32>
    %49 = arith.truncf %48 : vector<64x8xf32> to vector<64x8xbf16>
    %50 = vector.extract_strided_slice %14 {offsets = [0, 0], sizes = [8, 32], strides = [1, 1]} : vector<32x32xbf16> to vector<8x32xbf16>
    %cst_36 = arith.constant dense<0.000000e+00> : vector<64x32xf32>
    %51 = tpu.matmul %49, %50, %cst_36 {dimension_numbers = #tpu.dot_dimension_numbers<[1], [0], [0], [1], [0, 0, 1, 1], [], []>} : vector<64x8xbf16>, vector<8x32xbf16>, vector<64x32xf32> -> vector<64x32xf32>
    %52 = arith.addf %27, %51 : vector<64x32xf32>
    %c0_37 = arith.constant 0 : index
    %c8 = arith.constant 8 : index
    %53 = vector.load %arg12[%c0_37, %c8] : memref<64x96xf32, #tpu.memory_space<vmem>>, vector<64x8xf32>
    %54 = arith.truncf %53 : vector<64x8xf32> to vector<64x8xbf16>
    %c0_38 = arith.constant 0 : index
    %c40 = arith.constant 40 : index
    %55 = vector.load %arg12[%c0_38, %c40] : memref<64x96xf32, #tpu.memory_space<vmem>>, vector<64x8xf32>
    %56 = arith.truncf %55 : vector<64x8xf32> to vector<64x8xbf16>
    %c0_39 = arith.constant 0 : index
    %c72 = arith.constant 72 : index
    %57 = vector.load %arg12[%c0_39, %c72] : memref<64x96xf32, #tpu.memory_space<vmem>>, vector<64x8xf32>
    %58 = arith.truncf %57 : vector<64x8xf32> to vector<64x8xbf16>
    "tpu.trace_start"() <{level = 10 : i32, message = "qd,kd->qk"}> : () -> ()
    %cst_40 = arith.constant dense<0.000000e+00> : vector<64x64xf32>
    %59 = tpu.matmul %54, %56, %cst_40 {dimension_numbers = #tpu.dot_dimension_numbers<[1], [1], [0], [0], [0, 0, 1, 0], [], []>} : vector<64x8xbf16>, vector<64x8xbf16>, vector<64x64xf32> -> vector<64x64xf32>
    "tpu.trace_stop"() : () -> ()
    %cst_41 = arith.constant 0.353553385 : f32
    %60 = vector.broadcast %cst_41 : f32 to vector<64x64xf32>
    %61 = arith.mulf %59, %60 : vector<64x64xf32>
    %62 = arith.addf %61, %10 : vector<64x64xf32>
    %cst_42 = arith.constant dense<0xFF800000> : vector<64xf32>
    %63 = vector.multi_reduction <maximumf>, %62, %cst_42 [1] : vector<64x64xf32> to vector<64xf32>
    %64 = vector.shape_cast %63 : vector<64xf32> to vector<64x1xf32>
    %65 = vector.broadcast %64 : vector<64x1xf32> to vector<64x64xf32>
    %66 = arith.subf %62, %65 : vector<64x64xf32>
    %67 = math.exp %66 : vector<64x64xf32>
    %cst_43 = arith.constant dense<0.000000e+00> : vector<64xf32>
    %68 = vector.multi_reduction <add>, %67, %cst_43 [1] : vector<64x64xf32> to vector<64xf32>
    %69 = vector.shape_cast %68 : vector<64xf32> to vector<64x1xf32>
    %70 = vector.broadcast %69 : vector<64x1xf32> to vector<64x64xf32>
    %71 = arith.divf %67, %70 : vector<64x64xf32>
    %72 = arith.truncf %71 : vector<64x64xf32> to vector<64x64xbf16>
    %cst_44 = arith.constant dense<0.000000e+00> : vector<64x8xf32>
    %73 = tpu.matmul %72, %58, %cst_44 {dimension_numbers = #tpu.dot_dimension_numbers<[1], [0], [0], [1], [0, 0, 1, 1], [], []>} : vector<64x64xbf16>, vector<64x8xbf16>, vector<64x8xf32> -> vector<64x8xf32>
    %74 = arith.truncf %73 : vector<64x8xf32> to vector<64x8xbf16>
    %75 = vector.extract_strided_slice %14 {offsets = [8, 0], sizes = [8, 32], strides = [1, 1]} : vector<32x32xbf16> to vector<8x32xbf16>
    %cst_45 = arith.constant dense<0.000000e+00> : vector<64x32xf32>
    %76 = tpu.matmul %74, %75, %cst_45 {dimension_numbers = #tpu.dot_dimension_numbers<[1], [0], [0], [1], [0, 0, 1, 1], [], []>} : vector<64x8xbf16>, vector<8x32xbf16>, vector<64x32xf32> -> vector<64x32xf32>
    %77 = arith.addf %52, %76 : vector<64x32xf32>
    %c0_46 = arith.constant 0 : index
    %c16 = arith.constant 16 : index
    %78 = vector.load %arg12[%c0_46, %c16] : memref<64x96xf32, #tpu.memory_space<vmem>>, vector<64x8xf32>
    %79 = arith.truncf %78 : vector<64x8xf32> to vector<64x8xbf16>
    %c0_47 = arith.constant 0 : index
    %c48 = arith.constant 48 : index
    %80 = vector.load %arg12[%c0_47, %c48] : memref<64x96xf32, #tpu.memory_space<vmem>>, vector<64x8xf32>
    %81 = arith.truncf %80 : vector<64x8xf32> to vector<64x8xbf16>
    %c0_48 = arith.constant 0 : index
    %c80 = arith.constant 80 : index
    %82 = vector.load %arg12[%c0_48, %c80] : memref<64x96xf32, #tpu.memory_space<vmem>>, vector<64x8xf32>
    %83 = arith.truncf %82 : vector<64x8xf32> to vector<64x8xbf16>
    "tpu.trace_start"() <{level = 10 : i32, message = "qd,kd->qk"}> : () -> ()
    %cst_49 = arith.constant dense<0.000000e+00> : vector<64x64xf32>
    %84 = tpu.matmul %79, %81, %cst_49 {dimension_numbers = #tpu.dot_dimension_numbers<[1], [1], [0], [0], [0, 0, 1, 0], [], []>} : vector<64x8xbf16>, vector<64x8xbf16>, vector<64x64xf32> -> vector<64x64xf32>
    "tpu.trace_stop"() : () -> ()
    %cst_50 = arith.constant 0.353553385 : f32
    %85 = vector.broadcast %cst_50 : f32 to vector<64x64xf32>
    %86 = arith.mulf %84, %85 : vector<64x64xf32>
    %87 = arith.addf %86, %10 : vector<64x64xf32>
    %cst_51 = arith.constant dense<0xFF800000> : vector<64xf32>
    %88 = vector.multi_reduction <maximumf>, %87, %cst_51 [1] : vector<64x64xf32> to vector<64xf32>
    %89 = vector.shape_cast %88 : vector<64xf32> to vector<64x1xf32>
    %90 = vector.broadcast %89 : vector<64x1xf32> to vector<64x64xf32>
    %91 = arith.subf %87, %90 : vector<64x64xf32>
    %92 = math.exp %91 : vector<64x64xf32>
    %cst_52 = arith.constant dense<0.000000e+00> : vector<64xf32>
    %93 = vector.multi_reduction <add>, %92, %cst_52 [1] : vector<64x64xf32> to vector<64xf32>
    %94 = vector.shape_cast %93 : vector<64xf32> to vector<64x1xf32>
    %95 = vector.broadcast %94 : vector<64x1xf32> to vector<64x64xf32>
    %96 = arith.divf %92, %95 : vector<64x64xf32>
    %97 = arith.truncf %96 : vector<64x64xf32> to vector<64x64xbf16>
    %cst_53 = arith.constant dense<0.000000e+00> : vector<64x8xf32>
    %98 = tpu.matmul %97, %83, %cst_53 {dimension_numbers = #tpu.dot_dimension_numbers<[1], [0], [0], [1], [0, 0, 1, 1], [], []>} : vector<64x64xbf16>, vector<64x8xbf16>, vector<64x8xf32> -> vector<64x8xf32>
    %99 = arith.truncf %98 : vector<64x8xf32> to vector<64x8xbf16>
    %100 = vector.extract_strided_slice %14 {offsets = [16, 0], sizes = [8, 32], strides = [1, 1]} : vector<32x32xbf16> to vector<8x32xbf16>
    %cst_54 = arith.constant dense<0.000000e+00> : vector<64x32xf32>
    %101 = tpu.matmul %99, %100, %cst_54 {dimension_numbers = #tpu.dot_dimension_numbers<[1], [0], [0], [1], [0, 0, 1, 1], [], []>} : vector<64x8xbf16>, vector<8x32xbf16>, vector<64x32xf32> -> vector<64x32xf32>
    %102 = arith.addf %77, %101 : vector<64x32xf32>
    %c0_55 = arith.constant 0 : index
    %c24 = arith.constant 24 : index
    %103 = vector.load %arg12[%c0_55, %c24] : memref<64x96xf32, #tpu.memory_space<vmem>>, vector<64x8xf32>
    %104 = arith.truncf %103 : vector<64x8xf32> to vector<64x8xbf16>
    %c0_56 = arith.constant 0 : index
    %c56 = arith.constant 56 : index
    %105 = vector.load %arg12[%c0_56, %c56] : memref<64x96xf32, #tpu.memory_space<vmem>>, vector<64x8xf32>
    %106 = arith.truncf %105 : vector<64x8xf32> to vector<64x8xbf16>
    %c0_57 = arith.constant 0 : index
    %c88 = arith.constant 88 : index
    %107 = vector.load %arg12[%c0_57, %c88] : memref<64x96xf32, #tpu.memory_space<vmem>>, vector<64x8xf32>
    %108 = arith.truncf %107 : vector<64x8xf32> to vector<64x8xbf16>
    "tpu.trace_start"() <{level = 10 : i32, message = "qd,kd->qk"}> : () -> ()
    %cst_58 = arith.constant dense<0.000000e+00> : vector<64x64xf32>
    %109 = tpu.matmul %104, %106, %cst_58 {dimension_numbers = #tpu.dot_dimension_numbers<[1], [1], [0], [0], [0, 0, 1, 0], [], []>} : vector<64x8xbf16>, vector<64x8xbf16>, vector<64x64xf32> -> vector<64x64xf32>
    "tpu.trace_stop"() : () -> ()
    %cst_59 = arith.constant 0.353553385 : f32
    %110 = vector.broadcast %cst_59 : f32 to vector<64x64xf32>
    %111 = arith.mulf %109, %110 : vector<64x64xf32>
    %112 = arith.addf %111, %10 : vector<64x64xf32>
    %cst_60 = arith.constant dense<0xFF800000> : vector<64xf32>
    %113 = vector.multi_reduction <maximumf>, %112, %cst_60 [1] : vector<64x64xf32> to vector<64xf32>
    %114 = vector.shape_cast %113 : vector<64xf32> to vector<64x1xf32>
    %115 = vector.broadcast %114 : vector<64x1xf32> to vector<64x64xf32>
    %116 = arith.subf %112, %115 : vector<64x64xf32>
    %117 = math.exp %116 : vector<64x64xf32>
    %cst_61 = arith.constant dense<0.000000e+00> : vector<64xf32>
    %118 = vector.multi_reduction <add>, %117, %cst_61 [1] : vector<64x64xf32> to vector<64xf32>
    %119 = vector.shape_cast %118 : vector<64xf32> to vector<64x1xf32>
    %120 = vector.broadcast %119 : vector<64x1xf32> to vector<64x64xf32>
    %121 = arith.divf %117, %120 : vector<64x64xf32>
    %122 = arith.truncf %121 : vector<64x64xf32> to vector<64x64xbf16>
    %cst_62 = arith.constant dense<0.000000e+00> : vector<64x8xf32>
    %123 = tpu.matmul %122, %108, %cst_62 {dimension_numbers = #tpu.dot_dimension_numbers<[1], [0], [0], [1], [0, 0, 1, 1], [], []>} : vector<64x64xbf16>, vector<64x8xbf16>, vector<64x8xf32> -> vector<64x8xf32>
    %124 = arith.truncf %123 : vector<64x8xf32> to vector<64x8xbf16>
    %125 = vector.extract_strided_slice %14 {offsets = [24, 0], sizes = [8, 32], strides = [1, 1]} : vector<32x32xbf16> to vector<8x32xbf16>
    %cst_63 = arith.constant dense<0.000000e+00> : vector<64x32xf32>
    %126 = tpu.matmul %124, %125, %cst_63 {dimension_numbers = #tpu.dot_dimension_numbers<[1], [0], [0], [1], [0, 0, 1, 1], [], []>} : vector<64x8xbf16>, vector<8x32xbf16>, vector<64x32xf32> -> vector<64x32xf32>
    %127 = arith.addf %102, %126 : vector<64x32xf32>
    %128 = vector.extract_strided_slice %20 {offsets = [1, 0], sizes = [1, 32], strides = [1, 1]} : vector<8x128xf32> to vector<1x32xf32>
    %129 = vector.broadcast %128 : vector<1x32xf32> to vector<64x32xf32>
    %130 = arith.addf %127, %129 : vector<64x32xf32>
    %131 = arith.addf %130, %1 : vector<64x32xf32>
    %132 = vector.extract_strided_slice %20 {offsets = [2, 0], sizes = [1, 32], strides = [1, 1]} : vector<8x128xf32> to vector<1x32xf32>
    %133 = vector.extract_strided_slice %20 {offsets = [3, 0], sizes = [1, 32], strides = [1, 1]} : vector<8x128xf32> to vector<1x32xf32>
    %cst_64 = arith.constant dense<0.000000e+00> : vector<64xf32>
    %134 = vector.multi_reduction <add>, %131, %cst_64 [1] : vector<64x32xf32> to vector<64xf32>
    %135 = vector.shape_cast %134 : vector<64xf32> to vector<64x1xf32>
    %cst_65 = arith.constant 3.200000e+01 : f32
    %136 = vector.broadcast %cst_65 : f32 to vector<64x1xf32>
    %137 = arith.divf %135, %136 : vector<64x1xf32>
    %138 = vector.broadcast %137 : vector<64x1xf32> to vector<64x32xf32>
    %139 = arith.subf %131, %138 : vector<64x32xf32>
    %140 = arith.mulf %139, %139 : vector<64x32xf32>
    %cst_66 = arith.constant dense<0.000000e+00> : vector<64xf32>
    %141 = vector.multi_reduction <add>, %140, %cst_66 [1] : vector<64x32xf32> to vector<64xf32>
    %142 = vector.shape_cast %141 : vector<64xf32> to vector<64x1xf32>
    %cst_67 = arith.constant 3.200000e+01 : f32
    %143 = vector.broadcast %cst_67 : f32 to vector<64x1xf32>
    %144 = arith.divf %142, %143 : vector<64x1xf32>
    %145 = vector.broadcast %137 : vector<64x1xf32> to vector<64x32xf32>
    %146 = arith.subf %131, %145 : vector<64x32xf32>
    %cst_68 = arith.constant 9.99999996E-13 : f32
    %147 = vector.broadcast %cst_68 : f32 to vector<64x1xf32>
    %148 = arith.addf %144, %147 : vector<64x1xf32>
    %149 = math.rsqrt %148 : vector<64x1xf32>
    %150 = vector.broadcast %149 : vector<64x1xf32> to vector<64x32xf32>
    %151 = arith.mulf %146, %150 : vector<64x32xf32>
    %152 = vector.broadcast %132 : vector<1x32xf32> to vector<64x32xf32>
    %153 = arith.mulf %151, %152 : vector<64x32xf32>
    %154 = vector.broadcast %133 : vector<1x32xf32> to vector<64x32xf32>
    %155 = arith.addf %153, %154 : vector<64x32xf32>
    %156 = arith.truncf %155 : vector<64x32xf32> to vector<64x32xbf16>
    %cst_69 = arith.constant dense<0.000000e+00> : vector<64x64xf32>
    %157 = tpu.matmul %156, %16, %cst_69 {dimension_numbers = #tpu.dot_dimension_numbers<[1], [0], [0], [1], [0, 0, 1, 1], [], []>} : vector<64x32xbf16>, vector<32x64xbf16>, vector<64x64xf32> -> vector<64x64xf32>
    %158 = vector.extract_strided_slice %20 {offsets = [4, 0], sizes = [1, 64], strides = [1, 1]} : vector<8x128xf32> to vector<1x64xf32>
    %159 = vector.broadcast %158 : vector<1x64xf32> to vector<64x64xf32>
    %160 = arith.addf %157, %159 : vector<64x64xf32>
    %cst_70 = arith.constant 5.000000e-01 : f32
    %161 = vector.broadcast %cst_70 : f32 to vector<64x64xf32>
    %162 = arith.mulf %161, %160 : vector<64x64xf32>
    %cst_71 = arith.constant 4.471500e-02 : f32
    %163 = vector.broadcast %cst_71 : f32 to vector<64x64xf32>
    %164 = arith.mulf %163, %160 : vector<64x64xf32>
    %165 = arith.mulf %164, %160 : vector<64x64xf32>
    %166 = arith.mulf %165, %160 : vector<64x64xf32>
    %167 = arith.addf %160, %166 : vector<64x64xf32>
    %cst_72 = arith.constant 0.797884583 : f32
    %168 = vector.broadcast %cst_72 : f32 to vector<64x64xf32>
    %169 = arith.mulf %168, %167 : vector<64x64xf32>
    %170 = math.tanh %169 : vector<64x64xf32>
    %cst_73 = arith.constant 1.000000e+00 : f32
    %171 = vector.broadcast %cst_73 : f32 to vector<64x64xf32>
    %172 = arith.addf %171, %170 : vector<64x64xf32>
    %173 = arith.mulf %162, %172 : vector<64x64xf32>
    %174 = arith.truncf %173 : vector<64x64xf32> to vector<64x64xbf16>
    %cst_74 = arith.constant dense<0.000000e+00> : vector<64x32xf32>
    %175 = tpu.matmul %174, %18, %cst_74 {dimension_numbers = #tpu.dot_dimension_numbers<[1], [0], [0], [1], [0, 0, 1, 1], [], []>} : vector<64x64xbf16>, vector<64x32xbf16>, vector<64x32xf32> -> vector<64x32xf32>
    %176 = vector.extract_strided_slice %20 {offsets = [5, 0], sizes = [1, 32], strides = [1, 1]} : vector<8x128xf32> to vector<1x32xf32>
    %177 = vector.broadcast %176 : vector<1x32xf32> to vector<64x32xf32>
    %178 = arith.addf %175, %177 : vector<64x32xf32>
    %179 = arith.addf %178, %155 : vector<64x32xf32>
    %180 = vector.extract_strided_slice %20 {offsets = [6, 0], sizes = [1, 32], strides = [1, 1]} : vector<8x128xf32> to vector<1x32xf32>
    %181 = vector.extract_strided_slice %20 {offsets = [7, 0], sizes = [1, 32], strides = [1, 1]} : vector<8x128xf32> to vector<1x32xf32>
    %cst_75 = arith.constant dense<0.000000e+00> : vector<64xf32>
    %182 = vector.multi_reduction <add>, %179, %cst_75 [1] : vector<64x32xf32> to vector<64xf32>
    %183 = vector.shape_cast %182 : vector<64xf32> to vector<64x1xf32>
    %cst_76 = arith.constant 3.200000e+01 : f32
    %184 = vector.broadcast %cst_76 : f32 to vector<64x1xf32>
    %185 = arith.divf %183, %184 : vector<64x1xf32>
    %186 = vector.broadcast %185 : vector<64x1xf32> to vector<64x32xf32>
    %187 = arith.subf %179, %186 : vector<64x32xf32>
    %188 = arith.mulf %187, %187 : vector<64x32xf32>
    %cst_77 = arith.constant dense<0.000000e+00> : vector<64xf32>
    %189 = vector.multi_reduction <add>, %188, %cst_77 [1] : vector<64x32xf32> to vector<64xf32>
    %190 = vector.shape_cast %189 : vector<64xf32> to vector<64x1xf32>
    %cst_78 = arith.constant 3.200000e+01 : f32
    %191 = vector.broadcast %cst_78 : f32 to vector<64x1xf32>
    %192 = arith.divf %190, %191 : vector<64x1xf32>
    %193 = vector.broadcast %185 : vector<64x1xf32> to vector<64x32xf32>
    %194 = arith.subf %179, %193 : vector<64x32xf32>
    %cst_79 = arith.constant 9.99999996E-13 : f32
    %195 = vector.broadcast %cst_79 : f32 to vector<64x1xf32>
    %196 = arith.addf %192, %195 : vector<64x1xf32>
    %197 = math.rsqrt %196 : vector<64x1xf32>
    %198 = vector.broadcast %197 : vector<64x1xf32> to vector<64x32xf32>
    %199 = arith.mulf %194, %198 : vector<64x32xf32>
    %200 = vector.broadcast %180 : vector<1x32xf32> to vector<64x32xf32>
    %201 = arith.mulf %199, %200 : vector<64x32xf32>
    %202 = vector.broadcast %181 : vector<1x32xf32> to vector<64x32xf32>
    %203 = arith.addf %201, %202 : vector<64x32xf32>
    %c1 = arith.constant 1 : index
    %c0_80 = arith.constant 0 : index
    %c0_81 = arith.constant 0 : index
    %204 = vector.load %arg4[%c1, %c0_80, %c0_81] : memref<2x32x96xbf16, #tpu.memory_space<vmem>>, vector<1x32x96xbf16>
    %205 = vector.shape_cast %204 : vector<1x32x96xbf16> to vector<32x96xbf16>
    %c1_82 = arith.constant 1 : index
    %c0_83 = arith.constant 0 : index
    %c0_84 = arith.constant 0 : index
    %206 = vector.load %arg5[%c1_82, %c0_83, %c0_84] : memref<2x32x32xbf16, #tpu.memory_space<vmem>>, vector<1x32x32xbf16>
    %207 = vector.shape_cast %206 : vector<1x32x32xbf16> to vector<32x32xbf16>
    %c1_85 = arith.constant 1 : index
    %c0_86 = arith.constant 0 : index
    %c0_87 = arith.constant 0 : index
    %208 = vector.load %arg6[%c1_85, %c0_86, %c0_87] : memref<2x32x64xbf16, #tpu.memory_space<vmem>>, vector<1x32x64xbf16>
    %209 = vector.shape_cast %208 : vector<1x32x64xbf16> to vector<32x64xbf16>
    %c1_88 = arith.constant 1 : index
    %c0_89 = arith.constant 0 : index
    %c0_90 = arith.constant 0 : index
    %210 = vector.load %arg7[%c1_88, %c0_89, %c0_90] : memref<2x64x32xbf16, #tpu.memory_space<vmem>>, vector<1x64x32xbf16>
    %211 = vector.shape_cast %210 : vector<1x64x32xbf16> to vector<64x32xbf16>
    %c1_91 = arith.constant 1 : index
    %c0_92 = arith.constant 0 : index
    %c0_93 = arith.constant 0 : index
    %212 = vector.load %arg8[%c1_91, %c0_92, %c0_93] : memref<2x8x128xf32, #tpu.memory_space<vmem>>, vector<1x8x128xf32>
    %213 = vector.shape_cast %212 : vector<1x8x128xf32> to vector<8x128xf32>
    %214 = arith.truncf %203 : vector<64x32xf32> to vector<64x32xbf16>
    %cst_94 = arith.constant dense<0.000000e+00> : vector<64x96xf32>
    %215 = tpu.matmul %214, %205, %cst_94 {dimension_numbers = #tpu.dot_dimension_numbers<[1], [0], [0], [1], [0, 0, 1, 1], [], []>} : vector<64x32xbf16>, vector<32x96xbf16>, vector<64x96xf32> -> vector<64x96xf32>
    %216 = vector.extract_strided_slice %213 {offsets = [0, 0], sizes = [1, 96], strides = [1, 1]} : vector<8x128xf32> to vector<1x96xf32>
    %217 = vector.broadcast %216 : vector<1x96xf32> to vector<64x96xf32>
    %218 = arith.addf %215, %217 : vector<64x96xf32>
    %c0_95 = arith.constant 0 : index
    %c0_96 = arith.constant 0 : index
    %219 = vector.load %arg12[%c0_95, %c0_96] : memref<64x96xf32, #tpu.memory_space<vmem>>, vector<64x96xf32>
    tpu.vector_store %arg12[%c0_95, %c0_96], %218 {strides = array<i32>} : memref<64x96xf32, #tpu.memory_space<vmem>>, vector<64x96xf32>,
    %cst_97 = arith.constant 0.000000e+00 : f32
    %220 = vector.broadcast %cst_97 : f32 to vector<64x32xf32>
    %c0_98 = arith.constant 0 : index
    %c0_99 = arith.constant 0 : index
    %221 = vector.load %arg12[%c0_98, %c0_99] : memref<64x96xf32, #tpu.memory_space<vmem>>, vector<64x8xf32>
    %222 = arith.truncf %221 : vector<64x8xf32> to vector<64x8xbf16>
    %c0_100 = arith.constant 0 : index
    %c32_101 = arith.constant 32 : index
    %223 = vector.load %arg12[%c0_100, %c32_101] : memref<64x96xf32, #tpu.memory_space<vmem>>, vector<64x8xf32>
    %224 = arith.truncf %223 : vector<64x8xf32> to vector<64x8xbf16>
    %c0_102 = arith.constant 0 : index
    %c64_103 = arith.constant 64 : index
    %225 = vector.load %arg12[%c0_102, %c64_103] : memref<64x96xf32, #tpu.memory_space<vmem>>, vector<64x8xf32>
    %226 = arith.truncf %225 : vector<64x8xf32> to vector<64x8xbf16>
    "tpu.trace_start"() <{level = 10 : i32, message = "qd,kd->qk"}> : () -> ()
    %cst_104 = arith.constant dense<0.000000e+00> : vector<64x64xf32>
    %227 = tpu.matmul %222, %224, %cst_104 {dimension_numbers = #tpu.dot_dimension_numbers<[1], [1], [0], [0], [0, 0, 1, 0], [], []>} : vector<64x8xbf16>, vector<64x8xbf16>, vector<64x64xf32> -> vector<64x64xf32>
    "tpu.trace_stop"() : () -> ()
    %cst_105 = arith.constant 0.353553385 : f32
    %228 = vector.broadcast %cst_105 : f32 to vector<64x64xf32>
    %229 = arith.mulf %227, %228 : vector<64x64xf32>
    %230 = arith.addf %229, %10 : vector<64x64xf32>
    %cst_106 = arith.constant dense<0xFF800000> : vector<64xf32>
    %231 = vector.multi_reduction <maximumf>, %230, %cst_106 [1] : vector<64x64xf32> to vector<64xf32>
    %232 = vector.shape_cast %231 : vector<64xf32> to vector<64x1xf32>
    %233 = vector.broadcast %232 : vector<64x1xf32> to vector<64x64xf32>
    %234 = arith.subf %230, %233 : vector<64x64xf32>
    %235 = math.exp %234 : vector<64x64xf32>
    %cst_107 = arith.constant dense<0.000000e+00> : vector<64xf32>
    %236 = vector.multi_reduction <add>, %235, %cst_107 [1] : vector<64x64xf32> to vector<64xf32>
    %237 = vector.shape_cast %236 : vector<64xf32> to vector<64x1xf32>
    %238 = vector.broadcast %237 : vector<64x1xf32> to vector<64x64xf32>
    %239 = arith.divf %235, %238 : vector<64x64xf32>
    %240 = arith.truncf %239 : vector<64x64xf32> to vector<64x64xbf16>
    %cst_108 = arith.constant dense<0.000000e+00> : vector<64x8xf32>
    %241 = tpu.matmul %240, %226, %cst_108 {dimension_numbers = #tpu.dot_dimension_numbers<[1], [0], [0], [1], [0, 0, 1, 1], [], []>} : vector<64x64xbf16>, vector<64x8xbf16>, vector<64x8xf32> -> vector<64x8xf32>
    %242 = arith.truncf %241 : vector<64x8xf32> to vector<64x8xbf16>
    %243 = vector.extract_strided_slice %207 {offsets = [0, 0], sizes = [8, 32], strides = [1, 1]} : vector<32x32xbf16> to vector<8x32xbf16>
    %cst_109 = arith.constant dense<0.000000e+00> : vector<64x32xf32>
    %244 = tpu.matmul %242, %243, %cst_109 {dimension_numbers = #tpu.dot_dimension_numbers<[1], [0], [0], [1], [0, 0, 1, 1], [], []>} : vector<64x8xbf16>, vector<8x32xbf16>, vector<64x32xf32> -> vector<64x32xf32>
    %245 = arith.addf %220, %244 : vector<64x32xf32>
    %c0_110 = arith.constant 0 : index
    %c8_111 = arith.constant 8 : index
    %246 = vector.load %arg12[%c0_110, %c8_111] : memref<64x96xf32, #tpu.memory_space<vmem>>, vector<64x8xf32>
    %247 = arith.truncf %246 : vector<64x8xf32> to vector<64x8xbf16>
    %c0_112 = arith.constant 0 : index
    %c40_113 = arith.constant 40 : index
    %248 = vector.load %arg12[%c0_112, %c40_113] : memref<64x96xf32, #tpu.memory_space<vmem>>, vector<64x8xf32>
    %249 = arith.truncf %248 : vector<64x8xf32> to vector<64x8xbf16>
    %c0_114 = arith.constant 0 : index
    %c72_115 = arith.constant 72 : index
    %250 = vector.load %arg12[%c0_114, %c72_115] : memref<64x96xf32, #tpu.memory_space<vmem>>, vector<64x8xf32>
    %251 = arith.truncf %250 : vector<64x8xf32> to vector<64x8xbf16>
    "tpu.trace_start"() <{level = 10 : i32, message = "qd,kd->qk"}> : () -> ()
    %cst_116 = arith.constant dense<0.000000e+00> : vector<64x64xf32>
    %252 = tpu.matmul %247, %249, %cst_116 {dimension_numbers = #tpu.dot_dimension_numbers<[1], [1], [0], [0], [0, 0, 1, 0], [], []>} : vector<64x8xbf16>, vector<64x8xbf16>, vector<64x64xf32> -> vector<64x64xf32>
    "tpu.trace_stop"() : () -> ()
    %cst_117 = arith.constant 0.353553385 : f32
    %253 = vector.broadcast %cst_117 : f32 to vector<64x64xf32>
    %254 = arith.mulf %252, %253 : vector<64x64xf32>
    %255 = arith.addf %254, %10 : vector<64x64xf32>
    %cst_118 = arith.constant dense<0xFF800000> : vector<64xf32>
    %256 = vector.multi_reduction <maximumf>, %255, %cst_118 [1] : vector<64x64xf32> to vector<64xf32>
    %257 = vector.shape_cast %256 : vector<64xf32> to vector<64x1xf32>
    %258 = vector.broadcast %257 : vector<64x1xf32> to vector<64x64xf32>
    %259 = arith.subf %255, %258 : vector<64x64xf32>
    %260 = math.exp %259 : vector<64x64xf32>
    %cst_119 = arith.constant dense<0.000000e+00> : vector<64xf32>
    %261 = vector.multi_reduction <add>, %260, %cst_119 [1] : vector<64x64xf32> to vector<64xf32>
    %262 = vector.shape_cast %261 : vector<64xf32> to vector<64x1xf32>
    %263 = vector.broadcast %262 : vector<64x1xf32> to vector<64x64xf32>
    %264 = arith.divf %260, %263 : vector<64x64xf32>
    %265 = arith.truncf %264 : vector<64x64xf32> to vector<64x64xbf16>
    %cst_120 = arith.constant dense<0.000000e+00> : vector<64x8xf32>
    %266 = tpu.matmul %265, %251, %cst_120 {dimension_numbers = #tpu.dot_dimension_numbers<[1], [0], [0], [1], [0, 0, 1, 1], [], []>} : vector<64x64xbf16>, vector<64x8xbf16>, vector<64x8xf32> -> vector<64x8xf32>
    %267 = arith.truncf %266 : vector<64x8xf32> to vector<64x8xbf16>
    %268 = vector.extract_strided_slice %207 {offsets = [8, 0], sizes = [8, 32], strides = [1, 1]} : vector<32x32xbf16> to vector<8x32xbf16>
    %cst_121 = arith.constant dense<0.000000e+00> : vector<64x32xf32>
    %269 = tpu.matmul %267, %268, %cst_121 {dimension_numbers = #tpu.dot_dimension_numbers<[1], [0], [0], [1], [0, 0, 1, 1], [], []>} : vector<64x8xbf16>, vector<8x32xbf16>, vector<64x32xf32> -> vector<64x32xf32>
    %270 = arith.addf %245, %269 : vector<64x32xf32>
    %c0_122 = arith.constant 0 : index
    %c16_123 = arith.constant 16 : index
    %271 = vector.load %arg12[%c0_122, %c16_123] : memref<64x96xf32, #tpu.memory_space<vmem>>, vector<64x8xf32>
    %272 = arith.truncf %271 : vector<64x8xf32> to vector<64x8xbf16>
    %c0_124 = arith.constant 0 : index
    %c48_125 = arith.constant 48 : index
    %273 = vector.load %arg12[%c0_124, %c48_125] : memref<64x96xf32, #tpu.memory_space<vmem>>, vector<64x8xf32>
    %274 = arith.truncf %273 : vector<64x8xf32> to vector<64x8xbf16>
    %c0_126 = arith.constant 0 : index
    %c80_127 = arith.constant 80 : index
    %275 = vector.load %arg12[%c0_126, %c80_127] : memref<64x96xf32, #tpu.memory_space<vmem>>, vector<64x8xf32>
    %276 = arith.truncf %275 : vector<64x8xf32> to vector<64x8xbf16>
    "tpu.trace_start"() <{level = 10 : i32, message = "qd,kd->qk"}> : () -> ()
    %cst_128 = arith.constant dense<0.000000e+00> : vector<64x64xf32>
    %277 = tpu.matmul %272, %274, %cst_128 {dimension_numbers = #tpu.dot_dimension_numbers<[1], [1], [0], [0], [0, 0, 1, 0], [], []>} : vector<64x8xbf16>, vector<64x8xbf16>, vector<64x64xf32> -> vector<64x64xf32>
    "tpu.trace_stop"() : () -> ()
    %cst_129 = arith.constant 0.353553385 : f32
    %278 = vector.broadcast %cst_129 : f32 to vector<64x64xf32>
    %279 = arith.mulf %277, %278 : vector<64x64xf32>
    %280 = arith.addf %279, %10 : vector<64x64xf32>
    %cst_130 = arith.constant dense<0xFF800000> : vector<64xf32>
    %281 = vector.multi_reduction <maximumf>, %280, %cst_130 [1] : vector<64x64xf32> to vector<64xf32>
    %282 = vector.shape_cast %281 : vector<64xf32> to vector<64x1xf32>
    %283 = vector.broadcast %282 : vector<64x1xf32> to vector<64x64xf32>
    %284 = arith.subf %280, %283 : vector<64x64xf32>
    %285 = math.exp %284 : vector<64x64xf32>
    %cst_131 = arith.constant dense<0.000000e+00> : vector<64xf32>
    %286 = vector.multi_reduction <add>, %285, %cst_131 [1] : vector<64x64xf32> to vector<64xf32>
    %287 = vector.shape_cast %286 : vector<64xf32> to vector<64x1xf32>
    %288 = vector.broadcast %287 : vector<64x1xf32> to vector<64x64xf32>
    %289 = arith.divf %285, %288 : vector<64x64xf32>
    %290 = arith.truncf %289 : vector<64x64xf32> to vector<64x64xbf16>
    %cst_132 = arith.constant dense<0.000000e+00> : vector<64x8xf32>
    %291 = tpu.matmul %290, %276, %cst_132 {dimension_numbers = #tpu.dot_dimension_numbers<[1], [0], [0], [1], [0, 0, 1, 1], [], []>} : vector<64x64xbf16>, vector<64x8xbf16>, vector<64x8xf32> -> vector<64x8xf32>
    %292 = arith.truncf %291 : vector<64x8xf32> to vector<64x8xbf16>
    %293 = vector.extract_strided_slice %207 {offsets = [16, 0], sizes = [8, 32], strides = [1, 1]} : vector<32x32xbf16> to vector<8x32xbf16>
    %cst_133 = arith.constant dense<0.000000e+00> : vector<64x32xf32>
    %294 = tpu.matmul %292, %293, %cst_133 {dimension_numbers = #tpu.dot_dimension_numbers<[1], [0], [0], [1], [0, 0, 1, 1], [], []>} : vector<64x8xbf16>, vector<8x32xbf16>, vector<64x32xf32> -> vector<64x32xf32>
    %295 = arith.addf %270, %294 : vector<64x32xf32>
    %c0_134 = arith.constant 0 : index
    %c24_135 = arith.constant 24 : index
    %296 = vector.load %arg12[%c0_134, %c24_135] : memref<64x96xf32, #tpu.memory_space<vmem>>, vector<64x8xf32>
    %297 = arith.truncf %296 : vector<64x8xf32> to vector<64x8xbf16>
    %c0_136 = arith.constant 0 : index
    %c56_137 = arith.constant 56 : index
    %298 = vector.load %arg12[%c0_136, %c56_137] : memref<64x96xf32, #tpu.memory_space<vmem>>, vector<64x8xf32>
    %299 = arith.truncf %298 : vector<64x8xf32> to vector<64x8xbf16>
    %c0_138 = arith.constant 0 : index
    %c88_139 = arith.constant 88 : index
    %300 = vector.load %arg12[%c0_138, %c88_139] : memref<64x96xf32, #tpu.memory_space<vmem>>, vector<64x8xf32>
    %301 = arith.truncf %300 : vector<64x8xf32> to vector<64x8xbf16>
    "tpu.trace_start"() <{level = 10 : i32, message = "qd,kd->qk"}> : () -> ()
    %cst_140 = arith.constant dense<0.000000e+00> : vector<64x64xf32>
    %302 = tpu.matmul %297, %299, %cst_140 {dimension_numbers = #tpu.dot_dimension_numbers<[1], [1], [0], [0], [0, 0, 1, 0], [], []>} : vector<64x8xbf16>, vector<64x8xbf16>, vector<64x64xf32> -> vector<64x64xf32>
    "tpu.trace_stop"() : () -> ()
    %cst_141 = arith.constant 0.353553385 : f32
    %303 = vector.broadcast %cst_141 : f32 to vector<64x64xf32>
    %304 = arith.mulf %302, %303 : vector<64x64xf32>
    %305 = arith.addf %304, %10 : vector<64x64xf32>
    %cst_142 = arith.constant dense<0xFF800000> : vector<64xf32>
    %306 = vector.multi_reduction <maximumf>, %305, %cst_142 [1] : vector<64x64xf32> to vector<64xf32>
    %307 = vector.shape_cast %306 : vector<64xf32> to vector<64x1xf32>
    %308 = vector.broadcast %307 : vector<64x1xf32> to vector<64x64xf32>
    %309 = arith.subf %305, %308 : vector<64x64xf32>
    %310 = math.exp %309 : vector<64x64xf32>
    %cst_143 = arith.constant dense<0.000000e+00> : vector<64xf32>
    %311 = vector.multi_reduction <add>, %310, %cst_143 [1] : vector<64x64xf32> to vector<64xf32>
    %312 = vector.shape_cast %311 : vector<64xf32> to vector<64x1xf32>
    %313 = vector.broadcast %312 : vector<64x1xf32> to vector<64x64xf32>
    %314 = arith.divf %310, %313 : vector<64x64xf32>
    %315 = arith.truncf %314 : vector<64x64xf32> to vector<64x64xbf16>
    %cst_144 = arith.constant dense<0.000000e+00> : vector<64x8xf32>
    %316 = tpu.matmul %315, %301, %cst_144 {dimension_numbers = #tpu.dot_dimension_numbers<[1], [0], [0], [1], [0, 0, 1, 1], [], []>} : vector<64x64xbf16>, vector<64x8xbf16>, vector<64x8xf32> -> vector<64x8xf32>
    %317 = arith.truncf %316 : vector<64x8xf32> to vector<64x8xbf16>
    %318 = vector.extract_strided_slice %207 {offsets = [24, 0], sizes = [8, 32], strides = [1, 1]} : vector<32x32xbf16> to vector<8x32xbf16>
    %cst_145 = arith.constant dense<0.000000e+00> : vector<64x32xf32>
    %319 = tpu.matmul %317, %318, %cst_145 {dimension_numbers = #tpu.dot_dimension_numbers<[1], [0], [0], [1], [0, 0, 1, 1], [], []>} : vector<64x8xbf16>, vector<8x32xbf16>, vector<64x32xf32> -> vector<64x32xf32>
    %320 = arith.addf %295, %319 : vector<64x32xf32>
    %321 = vector.extract_strided_slice %213 {offsets = [1, 0], sizes = [1, 32], strides = [1, 1]} : vector<8x128xf32> to vector<1x32xf32>
    %322 = vector.broadcast %321 : vector<1x32xf32> to vector<64x32xf32>
    %323 = arith.addf %320, %322 : vector<64x32xf32>
    %324 = arith.addf %323, %203 : vector<64x32xf32>
    %325 = vector.extract_strided_slice %213 {offsets = [2, 0], sizes = [1, 32], strides = [1, 1]} : vector<8x128xf32> to vector<1x32xf32>
    %326 = vector.extract_strided_slice %213 {offsets = [3, 0], sizes = [1, 32], strides = [1, 1]} : vector<8x128xf32> to vector<1x32xf32>
    %cst_146 = arith.constant dense<0.000000e+00> : vector<64xf32>
    %327 = vector.multi_reduction <add>, %324, %cst_146 [1] : vector<64x32xf32> to vector<64xf32>
    %328 = vector.shape_cast %327 : vector<64xf32> to vector<64x1xf32>
    %cst_147 = arith.constant 3.200000e+01 : f32
    %329 = vector.broadcast %cst_147 : f32 to vector<64x1xf32>
    %330 = arith.divf %328, %329 : vector<64x1xf32>
    %331 = vector.broadcast %330 : vector<64x1xf32> to vector<64x32xf32>
    %332 = arith.subf %324, %331 : vector<64x32xf32>
    %333 = arith.mulf %332, %332 : vector<64x32xf32>
    %cst_148 = arith.constant dense<0.000000e+00> : vector<64xf32>
    %334 = vector.multi_reduction <add>, %333, %cst_148 [1] : vector<64x32xf32> to vector<64xf32>
    %335 = vector.shape_cast %334 : vector<64xf32> to vector<64x1xf32>
    %cst_149 = arith.constant 3.200000e+01 : f32
    %336 = vector.broadcast %cst_149 : f32 to vector<64x1xf32>
    %337 = arith.divf %335, %336 : vector<64x1xf32>
    %338 = vector.broadcast %330 : vector<64x1xf32> to vector<64x32xf32>
    %339 = arith.subf %324, %338 : vector<64x32xf32>
    %cst_150 = arith.constant 9.99999996E-13 : f32
    %340 = vector.broadcast %cst_150 : f32 to vector<64x1xf32>
    %341 = arith.addf %337, %340 : vector<64x1xf32>
    %342 = math.rsqrt %341 : vector<64x1xf32>
    %343 = vector.broadcast %342 : vector<64x1xf32> to vector<64x32xf32>
    %344 = arith.mulf %339, %343 : vector<64x32xf32>
    %345 = vector.broadcast %325 : vector<1x32xf32> to vector<64x32xf32>
    %346 = arith.mulf %344, %345 : vector<64x32xf32>
    %347 = vector.broadcast %326 : vector<1x32xf32> to vector<64x32xf32>
    %348 = arith.addf %346, %347 : vector<64x32xf32>
    %349 = arith.truncf %348 : vector<64x32xf32> to vector<64x32xbf16>
    %cst_151 = arith.constant dense<0.000000e+00> : vector<64x64xf32>
    %350 = tpu.matmul %349, %209, %cst_151 {dimension_numbers = #tpu.dot_dimension_numbers<[1], [0], [0], [1], [0, 0, 1, 1], [], []>} : vector<64x32xbf16>, vector<32x64xbf16>, vector<64x64xf32> -> vector<64x64xf32>
    %351 = vector.extract_strided_slice %213 {offsets = [4, 0], sizes = [1, 64], strides = [1, 1]} : vector<8x128xf32> to vector<1x64xf32>
    %352 = vector.broadcast %351 : vector<1x64xf32> to vector<64x64xf32>
    %353 = arith.addf %350, %352 : vector<64x64xf32>
    %cst_152 = arith.constant 5.000000e-01 : f32
    %354 = vector.broadcast %cst_152 : f32 to vector<64x64xf32>
    %355 = arith.mulf %354, %353 : vector<64x64xf32>
    %cst_153 = arith.constant 4.471500e-02 : f32
    %356 = vector.broadcast %cst_153 : f32 to vector<64x64xf32>
    %357 = arith.mulf %356, %353 : vector<64x64xf32>
    %358 = arith.mulf %357, %353 : vector<64x64xf32>
    %359 = arith.mulf %358, %353 : vector<64x64xf32>
    %360 = arith.addf %353, %359 : vector<64x64xf32>
    %cst_154 = arith.constant 0.797884583 : f32
    %361 = vector.broadcast %cst_154 : f32 to vector<64x64xf32>
    %362 = arith.mulf %361, %360 : vector<64x64xf32>
    %363 = math.tanh %362 : vector<64x64xf32>
    %cst_155 = arith.constant 1.000000e+00 : f32
    %364 = vector.broadcast %cst_155 : f32 to vector<64x64xf32>
    %365 = arith.addf %364, %363 : vector<64x64xf32>
    %366 = arith.mulf %355, %365 : vector<64x64xf32>
    %367 = arith.truncf %366 : vector<64x64xf32> to vector<64x64xbf16>
    %cst_156 = arith.constant dense<0.000000e+00> : vector<64x32xf32>
    %368 = tpu.matmul %367, %211, %cst_156 {dimension_numbers = #tpu.dot_dimension_numbers<[1], [0], [0], [1], [0, 0, 1, 1], [], []>} : vector<64x64xbf16>, vector<64x32xbf16>, vector<64x32xf32> -> vector<64x32xf32>
    %369 = vector.extract_strided_slice %213 {offsets = [5, 0], sizes = [1, 32], strides = [1, 1]} : vector<8x128xf32> to vector<1x32xf32>
    %370 = vector.broadcast %369 : vector<1x32xf32> to vector<64x32xf32>
    %371 = arith.addf %368, %370 : vector<64x32xf32>
    %372 = arith.addf %371, %348 : vector<64x32xf32>
    %373 = vector.extract_strided_slice %213 {offsets = [6, 0], sizes = [1, 32], strides = [1, 1]} : vector<8x128xf32> to vector<1x32xf32>
    %374 = vector.extract_strided_slice %213 {offsets = [7, 0], sizes = [1, 32], strides = [1, 1]} : vector<8x128xf32> to vector<1x32xf32>
    %cst_157 = arith.constant dense<0.000000e+00> : vector<64xf32>
    %375 = vector.multi_reduction <add>, %372, %cst_157 [1] : vector<64x32xf32> to vector<64xf32>
    %376 = vector.shape_cast %375 : vector<64xf32> to vector<64x1xf32>
    %cst_158 = arith.constant 3.200000e+01 : f32
    %377 = vector.broadcast %cst_158 : f32 to vector<64x1xf32>
    %378 = arith.divf %376, %377 : vector<64x1xf32>
    %379 = vector.broadcast %378 : vector<64x1xf32> to vector<64x32xf32>
    %380 = arith.subf %372, %379 : vector<64x32xf32>
    %381 = arith.mulf %380, %380 : vector<64x32xf32>
    %cst_159 = arith.constant dense<0.000000e+00> : vector<64xf32>
    %382 = vector.multi_reduction <add>, %381, %cst_159 [1] : vector<64x32xf32> to vector<64xf32>
    %383 = vector.shape_cast %382 : vector<64xf32> to vector<64x1xf32>
    %cst_160 = arith.constant 3.200000e+01 : f32
    %384 = vector.broadcast %cst_160 : f32 to vector<64x1xf32>
    %385 = arith.divf %383, %384 : vector<64x1xf32>
    %386 = vector.broadcast %378 : vector<64x1xf32> to vector<64x32xf32>
    %387 = arith.subf %372, %386 : vector<64x32xf32>
    %cst_161 = arith.constant 9.99999996E-13 : f32
    %388 = vector.broadcast %cst_161 : f32 to vector<64x1xf32>
    %389 = arith.addf %385, %388 : vector<64x1xf32>
    %390 = math.rsqrt %389 : vector<64x1xf32>
    %391 = vector.broadcast %390 : vector<64x1xf32> to vector<64x32xf32>
    %392 = arith.mulf %387, %391 : vector<64x32xf32>
    %393 = vector.broadcast %373 : vector<1x32xf32> to vector<64x32xf32>
    %394 = arith.mulf %392, %393 : vector<64x32xf32>
    %395 = vector.broadcast %374 : vector<1x32xf32> to vector<64x32xf32>
    %396 = arith.addf %394, %395 : vector<64x32xf32>
    %397 = tpu.iota {dimensions = array<i32: 0>} : vector<8x64xi32>
    %c8_i32 = arith.constant 8 : i32
    %398 = vector.broadcast %c8_i32 : i32 to vector<8x64xi32>
    %399 = arith.muli %397, %398 : vector<8x64xi32>
    %400 = tpu.iota {dimensions = array<i32: 1>} : vector<8x64xi32>
    %401 = arith.cmpi eq, %399, %400 : vector<8x64xi32>
    %402 = arith.extui %401 : vector<8x64xi1> to vector<8x64xi32>
    %403 = arith.sitofp %402 : vector<8x64xi32> to vector<8x64xf32>
    %404 = arith.truncf %403 : vector<8x64xf32> to vector<8x64xbf16>
    %405 = arith.truncf %396 : vector<64x32xf32> to vector<64x32xbf16>
    %cst_162 = arith.constant dense<0.000000e+00> : vector<8x32xf32>
    %406 = tpu.matmul %404, %405, %cst_162 {dimension_numbers = #tpu.dot_dimension_numbers<[1], [0], [0], [1], [0, 0, 1, 1], [], []>} : vector<8x64xbf16>, vector<64x32xbf16>, vector<8x32xf32> -> vector<8x32xf32>
    %407 = arith.truncf %406 : vector<8x32xf32> to vector<8x32xbf16>
    %c0_163 = arith.constant 0 : index
    %c0_164 = arith.constant 0 : index
    %c0_165 = arith.constant 0 : index
    %408 = vector.load %arg9[%c0_163, %c0_164, %c0_165] : memref<2x32x128xbf16, #tpu.memory_space<vmem>>, vector<1x32x128xbf16>
    %409 = vector.shape_cast %408 : vector<1x32x128xbf16> to vector<32x128xbf16>
    %cst_166 = arith.constant dense<0.000000e+00> : vector<8x128xf32>
    %410 = tpu.matmul %407, %409, %cst_166 {dimension_numbers = #tpu.dot_dimension_numbers<[1], [0], [0], [1], [0, 0, 1, 1], [], []>} : vector<8x32xbf16>, vector<32x128xbf16>, vector<8x128xf32> -> vector<8x128xf32>
    %c0_167 = arith.constant 0 : index
    %c0_168 = arith.constant 0 : index
    %411 = vector.load %arg10[%c0_167, %c0_168] : memref<2x128xf32, #tpu.memory_space<vmem>>, vector<1x128xf32>
    %412 = vector.broadcast %411 : vector<1x128xf32> to vector<8x128xf32>
    %413 = arith.addf %410, %412 : vector<8x128xf32>
    %414 = math.tanh %413 : vector<8x128xf32>
    %415 = vector.extract_strided_slice %414 {offsets = [0, 0], sizes = [8, 32], strides = [1, 1]} : vector<8x128xf32> to vector<8x32xf32>
    %416 = arith.truncf %415 : vector<8x32xf32> to vector<8x32xbf16>
    %c1_169 = arith.constant 1 : index
    %c0_170 = arith.constant 0 : index
    %c0_171 = arith.constant 0 : index
    %417 = vector.load %arg9[%c1_169, %c0_170, %c0_171] : memref<2x32x128xbf16, #tpu.memory_space<vmem>>, vector<1x32x128xbf16>
    %418 = vector.shape_cast %417 : vector<1x32x128xbf16> to vector<32x128xbf16>
    %cst_172 = arith.constant dense<0.000000e+00> : vector<8x128xf32>
    %419 = tpu.matmul %416, %418, %cst_172 {dimension_numbers = #tpu.dot_dimension_numbers<[1], [0], [0], [1], [0, 0, 1, 1], [], []>} : vector<8x32xbf16>, vector<32x128xbf16>, vector<8x128xf32> -> vector<8x128xf32>
    %c1_173 = arith.constant 1 : index
    %c0_174 = arith.constant 0 : index
    %420 = vector.load %arg10[%c1_173, %c0_174] : memref<2x128xf32, #tpu.memory_space<vmem>>, vector<1x128xf32>
    %421 = vector.broadcast %420 : vector<1x128xf32> to vector<8x128xf32>
    %422 = arith.addf %419, %421 : vector<8x128xf32>
    %c0_175 = arith.constant 0 : index
    %c0_176 = arith.constant 0 : index
    %423 = vector.load %arg11[%c0_175, %c0_176] : memref<8x128xf32, #tpu.memory_space<vmem>>, vector<8x128xf32>
    tpu.vector_store %arg11[%c0_175, %c0_176], %422 {strides = array<i32>} : memref<8x128xf32, #tpu.memory_space<vmem>>, vector<8x128xf32>,
    return
  }
  func.func @transform_0(%arg0: i32) -> (i32, i32, i32) {
    %c0_i32 = arith.constant 0 : i32
    %c0_i32_0 = arith.constant 0 : i32
    %c0_i32_1 = arith.constant 0 : i32
    return %arg0, %c0_i32, %c0_i32_0 : i32, i32, i32
  }
  func.func @transform_1(%arg0: i32) -> (i32, i32, i32) {
    %c0_i32 = arith.constant 0 : i32
    %c0_i32_0 = arith.constant 0 : i32
    %c0_i32_1 = arith.constant 0 : i32
    return %arg0, %c0_i32, %c0_i32_0 : i32, i32, i32
  }
  func.func @transform_2(%arg0: i32) -> (i32, i32) {
    %c0_i32 = arith.constant 0 : i32
    %c0_i32_0 = arith.constant 0 : i32
    %c0_i32_1 = arith.constant 0 : i32
    return %c0_i32, %c0_i32_0 : i32, i32
  }
  func.func @transform_3(%arg0: i32) -> (i32, i32, i32) {
    %c0_i32 = arith.constant 0 : i32
    %c0_i32_0 = arith.constant 0 : i32
    %c0_i32_1 = arith.constant 0 : i32
    %c0_i32_2 = arith.constant 0 : i32
    return %c0_i32, %c0_i32_0, %c0_i32_1 : i32, i32, i32
  }
  func.func @transform_4(%arg0: i32) -> (i32, i32, i32) {
    %c0_i32 = arith.constant 0 : i32
    %c0_i32_0 = arith.constant 0 : i32
    %c0_i32_1 = arith.constant 0 : i32
    %c0_i32_2 = arith.constant 0 : i32
    return %c0_i32, %c0_i32_0, %c0_i32_1 : i32, i32, i32
  }
  func.func @transform_5(%arg0: i32) -> (i32, i32, i32) {
    %c0_i32 = arith.constant 0 : i32
    %c0_i32_0 = arith.constant 0 : i32
    %c0_i32_1 = arith.constant 0 : i32
    %c0_i32_2 = arith.constant 0 : i32
    return %c0_i32, %c0_i32_0, %c0_i32_1 : i32, i32, i32
  }
  func.func @transform_6(%arg0: i32) -> (i32, i32, i32) {
    %c0_i32 = arith.constant 0 : i32
    %c0_i32_0 = arith.constant 0 : i32
    %c0_i32_1 = arith.constant 0 : i32
    %c0_i32_2 = arith.constant 0 : i32
    return %c0_i32, %c0_i32_0, %c0_i32_1 : i32, i32, i32
  }
  func.func @transform_7(%arg0: i32) -> (i32, i32, i32) {
    %c0_i32 = arith.constant 0 : i32
    %c0_i32_0 = arith.constant 0 : i32
    %c0_i32_1 = arith.constant 0 : i32
    %c0_i32_2 = arith.constant 0 : i32
    return %c0_i32, %c0_i32_0, %c0_i32_1 : i32, i32, i32
  }
  func.func @transform_8(%arg0: i32) -> (i32, i32, i32) {
    %c0_i32 = arith.constant 0 : i32
    %c0_i32_0 = arith.constant 0 : i32
    %c0_i32_1 = arith.constant 0 : i32
    %c0_i32_2 = arith.constant 0 : i32
    return %c0_i32, %c0_i32_0, %c0_i32_1 : i32, i32, i32
  }
  func.func @transform_9(%arg0: i32) -> (i32, i32) {
    %c0_i32 = arith.constant 0 : i32
    %c0_i32_0 = arith.constant 0 : i32
    %c0_i32_1 = arith.constant 0 : i32
    return %c0_i32, %c0_i32_0 : i32, i32
  }
  func.func @transform_10(%arg0: i32) -> (i32, i32) {
    %c0_i32 = arith.constant 0 : i32
    %c0_i32_0 = arith.constant 0 : i32
    return %arg0, %c0_i32 : i32, i32
  }
}

</mosaic_0001>

<llo_original>
// kernel: bert_model_wrapper_forward.1
$region0: #{bert_model_wrapper_forward.1}
  #allocation0 [shape = 'u32[]', space=smem, size = 0x4, offset = 0x4, fixed_abs, tag = 'smem constant byte address 0x4 - core index']
  #allocation1 [shape = 'u32[144,128]{1,0:T(1,128)}', space=vmem, size = 0x12000, scoped, tag = 'internal scratch']
  #allocation2 [shape = 'f32[64,96]{1,0:T(8,128)}', space=vmem, size = 0x8000, scoped, tag = 'scratch operand']
  %s0 = inlined_call_operand.vmem [shape: f32[1,64,32], index: 0, kind: input, shape index: {}]
  %s1 = inlined_call_operand.vmem [shape: f32[1,1,64], index: 1, kind: input, shape index: {}]
  %s2 = inlined_call_operand.vmem [shape: f32[64,64], index: 2, kind: input, shape index: {}]
  %s3 = inlined_call_operand.vmem [shape: bf16[2,32,96], index: 3, kind: input, shape index: {}]
  %s4 = inlined_call_operand.vmem [shape: bf16[2,32,32], index: 4, kind: input, shape index: {}]
  %s5 = inlined_call_operand.vmem [shape: bf16[2,32,64], index: 5, kind: input, shape index: {}]
  %s6 = inlined_call_operand.vmem [shape: bf16[2,64,32], index: 6, kind: input, shape index: {}]
  %s7 = inlined_call_operand.vmem [shape: f32[2,8,128], index: 7, kind: input, shape index: {}]
  %s8 = inlined_call_operand.vmem [shape: bf16[2,32,128], index: 8, kind: input, shape index: {}]
  %s9 = inlined_call_operand.vmem [shape: f32[2,128], index: 9, kind: input, shape index: {}]
  %s10 = inlined_call_operand.vmem [shape: f32[8,128], index: 10, kind: output, shape index: {}]
  %s11 = sld [smem:[#allocation0]]
  $region50: #{bert_model_wrapper_forward.1} parent=0
    _
  %s13 = ssub.s32 1, %s11
  %s14 = scalar_select 0, %s13, %s11
  // Predicated region
  $region2: #{bert_model_wrapper_forward.1} parent=0 // pred_check
    _
  $region3: #{bert_model_wrapper_forward.1} parent=0 // pred_check_branch
    %16 = sbr.rel (0) target = $region5
  $region4: #{bert_model_wrapper_forward.1} parent=0 // pred_region
    _
  $region5: #{bert_model_wrapper_forward.1} parent=0 // pred_fallthru
    _
  // Predicated region
  $region6: #{bert_model_wrapper_forward.1} parent=0 // pred_check
    _
  $region7: #{bert_model_wrapper_forward.1} parent=0 // pred_check_branch
    %18 = sbr.rel (0) target = $region9
  $region8: #{bert_model_wrapper_forward.1} parent=0 // pred_region
    _
  $region9: #{bert_model_wrapper_forward.1} parent=0 // pred_fallthru
    _
  // Predicated region
  $region10: #{bert_model_wrapper_forward.1} parent=0 // pred_check
    _
  $region11: #{bert_model_wrapper_forward.1} parent=0 // pred_check_branch
    %20 = sbr.rel (0) target = $region13
  $region12: #{bert_model_wrapper_forward.1} parent=0 // pred_region
    _
  $region13: #{bert_model_wrapper_forward.1} parent=0 // pred_fallthru
    _
  // Predicated region
  $region14: #{bert_model_wrapper_forward.1} parent=0 // pred_check
    _
  $region15: #{bert_model_wrapper_forward.1} parent=0 // pred_check_branch
    %22 = sbr.rel (0) target = $region17
  $region16: #{bert_model_wrapper_forward.1} parent=0 // pred_region
    _
  $region17: #{bert_model_wrapper_forward.1} parent=0 // pred_fallthru
    _
  // Predicated region
  $region18: #{bert_model_wrapper_forward.1} parent=0 // pred_check
    _
  $region19: #{bert_model_wrapper_forward.1} parent=0 // pred_check_branch
    %24 = sbr.rel (0) target = $region21
  $region20: #{bert_model_wrapper_forward.1} parent=0 // pred_region
    _
  $region21: #{bert_model_wrapper_forward.1} parent=0 // pred_fallthru
    _
  // Predicated region
  $region22: #{bert_model_wrapper_forward.1} parent=0 // pred_check
    _
  $region23: #{bert_model_wrapper_forward.1} parent=0 // pred_check_branch
    %26 = sbr.rel (0) target = $region25
  $region24: #{bert_model_wrapper_forward.1} parent=0 // pred_region
    _
  $region25: #{bert_model_wrapper_forward.1} parent=0 // pred_fallthru
    _
  // Predicated region
  $region26: #{bert_model_wrapper_forward.1} parent=0 // pred_check
    _
  $region27: #{bert_model_wrapper_forward.1} parent=0 // pred_check_branch
    %28 = sbr.rel (0) target = $region29
  $region28: #{bert_model_wrapper_forward.1} parent=0 // pred_region
    _
  $region29: #{bert_model_wrapper_forward.1} parent=0 // pred_fallthru
    _
  // Predicated region
  $region30: #{bert_model_wrapper_forward.1} parent=0 // pred_check
    _
  $region31: #{bert_model_wrapper_forward.1} parent=0 // pred_check_branch
    %30 = sbr.rel (0) target = $region33
  $region32: #{bert_model_wrapper_forward.1} parent=0 // pred_region
    _
  $region33: #{bert_model_wrapper_forward.1} parent=0 // pred_fallthru
    _
  // Predicated region
  $region34: #{bert_model_wrapper_forward.1} parent=0 // pred_check
    _
  $region35: #{bert_model_wrapper_forward.1} parent=0 // pred_check_branch
    %32 = sbr.rel (0) target = $region37
  $region36: #{bert_model_wrapper_forward.1} parent=0 // pred_region
    _
  $region37: #{bert_model_wrapper_forward.1} parent=0 // pred_fallthru
    _
  // Predicated region
  $region38: #{bert_model_wrapper_forward.1} parent=0 // pred_check
    _
  $region39: #{bert_model_wrapper_forward.1} parent=0 // pred_check_branch
    %34 = sbr.rel (0) target = $region41
  $region40: #{bert_model_wrapper_forward.1} parent=0 // pred_region
    _
  $region41: #{bert_model_wrapper_forward.1} parent=0 // pred_fallthru
    _
  %v36 = vld [vmem:[%s0] sm:$0xff]
  %v37 = vld [vmem:[%s0 + $0x8] sm:$0xff]
  %v38 = vld [vmem:[%s0 + $0x10] sm:$0xff]
  %v39 = vld [vmem:[%s0 + $0x18] sm:$0xff]
  %v40 = vld [vmem:[%s0 + $0x20] sm:$0xff]
  %v41 = vld [vmem:[%s0 + $0x28] sm:$0xff]
  %v42 = vld [vmem:[%s0 + $0x30] sm:$0xff]
  %v43 = vld [vmem:[%s0 + $0x38] sm:$0xff]
  %v44 = vld [vmem:[%s2] sm:$0xff]
  %v45 = vld [vmem:[%s2 + $0x8] sm:$0xff]
  %v46 = vld [vmem:[%s2 + $0x10] sm:$0xff]
  %v47 = vld [vmem:[%s2 + $0x18] sm:$0xff]
  %v48 = vld [vmem:[%s2 + $0x20] sm:$0xff]
  %v49 = vld [vmem:[%s2 + $0x28] sm:$0xff]
  %v50 = vld [vmem:[%s2 + $0x30] sm:$0xff]
  %v51 = vld [vmem:[%s2 + $0x38] sm:$0xff]
  %v52 = vld [vmem:[%s1] sm:$0x1]
  %v53 = vsub.f32 1.0, %v52
  %v54 = vmul.f32 %v53, -1e+09
  %v56 = vlaneseq
  %v57 = vshrl.u32 %v56, 7
  %v58 = vsub.s32 0, %v57
  %v59 = vrot.slane %v54, %v58
  %v61 = vadd.f32 %v44, %v59
  %v62 = vadd.f32 %v45, %v59
  %v63 = vadd.f32 %v46, %v59
  %v64 = vadd.f32 %v47, %v59
  %v65 = vadd.f32 %v48, %v59
  %v66 = vadd.f32 %v49, %v59
  %v67 = vadd.f32 %v50, %v59
  %v68 = vadd.f32 %v51, %v59
  %v69 = vld [vmem:[%s3] sm:$0xf]
  %v70 = vld [vmem:[%s3 + $0x4] sm:$0xf]
  %v71 = vld [vmem:[%s3 + $0x8] sm:$0xf]
  %v72 = vld [vmem:[%s3 + $0xc] sm:$0xf]
  %v73 = vld [vmem:[%s4] sm:$0xf]
  %v74 = vld [vmem:[%s4 + $0x4] sm:$0xf]
  %v75 = vld [vmem:[%s4 + $0x8] sm:$0xf]
  %v76 = vld [vmem:[%s4 + $0xc] sm:$0xf]
  %v77 = vld [vmem:[%s5] sm:$0xf]
  %v78 = vld [vmem:[%s5 + $0x4] sm:$0xf]
  %v79 = vld [vmem:[%s5 + $0x8] sm:$0xf]
  %v80 = vld [vmem:[%s5 + $0xc] sm:$0xf]
  %v81 = vld [vmem:[%s6] sm:$0xf]
  %v82 = vld [vmem:[%s6 + $0x4] sm:$0xf]
  %v83 = vld [vmem:[%s6 + $0x8] sm:$0xf]
  %v84 = vld [vmem:[%s6 + $0xc] sm:$0xf]
  %v85 = vld [vmem:[%s6 + $0x10] sm:$0xf]
  %v86 = vld [vmem:[%s6 + $0x14] sm:$0xf]
  %v87 = vld [vmem:[%s6 + $0x18] sm:$0xf]
  %v88 = vld [vmem:[%s6 + $0x1c] sm:$0xf]
  %v89 = vld [vmem:[%s7] sm:$0xff]
  %v90 = vpack.c.bf16 %v37, %v36
  %v91 = vpack.c.bf16 %v39, %v38
  %v92 = vpack.c.bf16 %v41, %v40
  %v93 = vpack.c.bf16 %v43, %v42
  %v94 = vlaneseq
  %v95 = vshrl.u32 %v94, 7
  %v96 = vsub.s32 0, %v95
  %v97 = vrot.slane %v89, %v96
  %v102 = vunpack.c.l.b16 %v69
  %v103 = vunpack.c.l.b16 %v70
  %v104 = vunpack.c.l.b16 %v71
  %v105 = vunpack.c.l.b16 %v72
  %v106 = vpack.c.b16 %v103, %v102
  %v107 = vpack.c.b16 %v105, %v104
  %vm110 = vcmask 261120
  %v112 = vsel %vm110, %v90, 0
  %v115 = vsel %vm110, %v91, 0
  %v118 = vsel %vm110, %v92, 0
  %v121 = vsel %vm110, %v93, 0
  %123 = vmatprep.subr.bf16.mxu0 0
  %124 = vmatpush1.bf16.msra.mxu0 %v106
  %125 = vmatprep.subr.bf16.mxu0 0
  %126 = vmatpush1.bf16.msra.mxu0 %v107
  %127 = vmatprep.subr.bf16.mxu0 0
  %128 = vmatpush1.bf16.msra.mxu0 0
  %129 = vmatprep.subr.bf16.mxu0 0
  %130 = vmatpush1.bf16.msra.mxu0 0
  %131 = vmatprep.subr.bf16.mxu0 0
  %132 = vmatpush1.bf16.msra.mxu0 0
  %133 = vmatprep.subr.bf16.mxu0 0
  %134 = vmatpush1.bf16.msra.mxu0 0
  %135 = vmatprep.subr.bf16.mxu0 0
  %136 = vmatpush1.bf16.msra.mxu0 0
  %137 = vmatprep.subr.bf16.mxu0 0
  %138 = vmatpush1.bf16.msra.mxu0 0
  %139 = vmatprep.subr.bf16.mxu0 0
  %140 = vmatpush1.bf16.msra.mxu0 0
  %141 = vmatprep.subr.bf16.mxu0 0
  %142 = vmatpush1.bf16.msra.mxu0 0
  %143 = vmatprep.subr.bf16.mxu0 0
  %144 = vmatpush1.bf16.msra.mxu0 0
  %145 = vmatprep.subr.bf16.mxu0 0
  %146 = vmatpush1.bf16.msra.mxu0 0
  %147 = vmatprep.subr.bf16.mxu0 0
  %148 = vmatpush1.bf16.msra.mxu0 0
  %149 = vmatprep.subr.bf16.mxu0 0
  %150 = vmatpush1.bf16.msra.mxu0 0
  %151 = vmatprep.subr.bf16.mxu0 0
  %152 = vmatpush1.bf16.msra.mxu0 0
  %153 = vmatprep.subr.bf16.mxu0 0
  %154 = vmatpush1.bf16.msra.mxu0 0
  %155 = vmatprep.mubr.bf16.mxu0 0
  %156 = vmatmul.mubr.bf16.gmra.mrb[0].mxu0 %v112
  %v157 = vpop.f32.mrb[0].mxu0
  %v158 = vadd.f32 %v97, %v157
  %v159 = vpop.f32.mrb[0].mxu0
  %v160 = vpop.f32.mrb[0].mxu0
  %v161 = vadd.f32 %v97, %v160
  %v162 = vpop.f32.mrb[0].mxu0
  %163 = vmatprep.mubr.bf16.mxu0 0
  %164 = vmatmul.mubr.bf16.gmra.mrb[0].mxu0 %v115
  %v165 = vpop.f32.mrb[0].mxu0
  %v166 = vadd.f32 %v97, %v165
  %v167 = vpop.f32.mrb[0].mxu0
  %v168 = vpop.f32.mrb[0].mxu0
  %v169 = vadd.f32 %v97, %v168
  %v170 = vpop.f32.mrb[0].mxu0
  %171 = vmatprep.mubr.bf16.mxu0 0
  %172 = vmatmul.mubr.bf16.gmra.mrb[0].mxu0 %v118
  %v173 = vpop.f32.mrb[0].mxu0
  %v174 = vadd.f32 %v97, %v173
  %v175 = vpop.f32.mrb[0].mxu0
  %v176 = vpop.f32.mrb[0].mxu0
  %v177 = vadd.f32 %v97, %v176
  %v178 = vpop.f32.mrb[0].mxu0
  %179 = vmatprep.mubr.bf16.mxu0 0
  %180 = vmatmul.mubr.bf16.gmra.mrb[0].mxu0 %v121
  %v181 = vpop.f32.mrb[0].mxu0
  %v182 = vadd.f32 %v97, %v181
  %v183 = vpop.f32.mrb[0].mxu0
  %v184 = vpop.f32.mrb[0].mxu0
  %v185 = vadd.f32 %v97, %v184
  %v186 = vpop.f32.mrb[0].mxu0
  %187 = vdwg.mxu0
  %vm188 = vcmask 785408
  %189 = vst.msk [vmem:[#allocation2] sm:$0xff] %vm188, %v158
  %190 = vst.msk [vmem:[#allocation2 + $0x8] sm:$0xff] %vm188, %v161
  %191 = vst.msk [vmem:[#allocation2 + $0x10] sm:$0xff] %vm188, %v166
  %192 = vst.msk [vmem:[#allocation2 + $0x18] sm:$0xff] %vm188, %v169
  %193 = vst.msk [vmem:[#allocation2 + $0x20] sm:$0xff] %vm188, %v174
  %194 = vst.msk [vmem:[#allocation2 + $0x28] sm:$0xff] %vm188, %v177
  %195 = vst.msk [vmem:[#allocation2 + $0x30] sm:$0xff] %vm188, %v182
  %196 = vst.msk [vmem:[#allocation2 + $0x38] sm:$0xff] %vm188, %v185
  %v197 = vld [vmem:[#allocation2] sm:$0xff]
  %v198 = vld [vmem:[#allocation2 + $0x8] sm:$0xff]
  %v199 = vld [vmem:[#allocation2 + $0x10] sm:$0xff]
  %v200 = vld [vmem:[#allocation2 + $0x18] sm:$0xff]
  %v201 = vld [vmem:[#allocation2 + $0x20] sm:$0xff]
  %v202 = vld [vmem:[#allocation2 + $0x28] sm:$0xff]
  %v203 = vld [vmem:[#allocation2 + $0x30] sm:$0xff]
  %v204 = vld [vmem:[#allocation2 + $0x38] sm:$0xff]
  %v205 = vpack.c.bf16 %v198, %v197
  %v206 = vpack.c.bf16 %v200, %v199
  %v207 = vpack.c.bf16 %v202, %v201
  %v208 = vpack.c.bf16 %v204, %v203
  %213 = vrot.lane.b32.xlu0 %v205, 96
  %v214 = vpop.permute.xlu0 %213
  %215 = vrot.lane.b32.xlu0 %v206, 96
  %v216 = vpop.permute.xlu0 %215
  %217 = vrot.lane.b32.xlu0 %v207, 96
  %v218 = vpop.permute.xlu0 %217
  %219 = vrot.lane.b32.xlu0 %v208, 96
  %v220 = vpop.permute.xlu0 %219
  %vm221 = vcmask 64512
  %v223 = vsel %vm221, %v205, 0
  %v226 = vsel %vm221, %v206, 0
  %v229 = vsel %vm221, %v207, 0
  %v232 = vsel %vm221, %v208, 0
  %v235 = vsel %vm221, %v214, 0
  %v238 = vsel %vm221, %v216, 0
  %v241 = vsel %vm221, %v218, 0
  %v244 = vsel %vm221, %v220, 0
  %246 = vmatprep.subr.bf16.mxu0 0
  %247 = vmatpush1.bf16.xpose.msra.mxu0 %v235
  %248 = vmatprep.subr.bf16.mxu0 0
  %249 = vmatpush1.bf16.xpose.msra.mxu0 %v238
  %250 = vmatprep.subr.bf16.mxu0 0
  %251 = vmatpush1.bf16.xpose.msra.mxu0 %v241
  %252 = vmatprep.subr.bf16.mxu0 0
  %253 = vmatpush1.bf16.xpose.msra.mxu0 %v244
  %254 = vmatprep.subr.bf16.mxu0 0
  %255 = vmatpush1.bf16.xpose.msra.mxu0 0
  %256 = vmatprep.subr.bf16.mxu0 0
  %257 = vmatpush1.bf16.xpose.msra.mxu0 0
  %258 = vmatprep.subr.bf16.mxu0 0
  %259 = vmatpush1.bf16.xpose.msra.mxu0 0
  %260 = vmatprep.subr.bf16.mxu0 0
  %261 = vmatpush1.bf16.xpose.msra.mxu0 0
  %262 = vmatprep.subr.bf16.mxu0 0
  %263 = vmatpush1.bf16.xpose.msra.mxu0 0
  %264 = vmatprep.subr.bf16.mxu0 0
  %265 = vmatpush1.bf16.xpose.msra.mxu0 0
  %266 = vmatprep.subr.bf16.mxu0 0
  %267 = vmatpush1.bf16.xpose.msra.mxu0 0
  %268 = vmatprep.subr.bf16.mxu0 0
  %269 = vmatpush1.bf16.xpose.msra.mxu0 0
  %270 = vmatprep.subr.bf16.mxu0 0
  %271 = vmatpush1.bf16.xpose.msra.mxu0 0
  %272 = vmatprep.subr.bf16.mxu0 0
  %273 = vmatpush1.bf16.xpose.msra.mxu0 0
  %274 = vmatprep.subr.bf16.mxu0 0
  %275 = vmatpush1.bf16.xpose.msra.mxu0 0
  %276 = vmatprep.subr.bf16.mxu0 0
  %277 = vmatpush1.bf16.xpose.msra.mxu0 0
  %278 = vmatprep.mubr.bf16.mxu0 0
  %279 = vmatmul.mubr.bf16.gmra.mrb[0].mxu0 %v223
  %v280 = vpop.f32.mrb[0].mxu0
  %v281 = vadd.f32 0.0, %v280
  %v282 = vpop.f32.mrb[0].mxu0
  %v283 = vpop.f32.mrb[0].mxu0
  %v284 = vadd.f32 0.0, %v283
  %v285 = vpop.f32.mrb[0].mxu0
  %286 = vmatprep.mubr.bf16.mxu0 0
  %287 = vmatmul.mubr.bf16.gmra.mrb[0].mxu0 %v226
  %v288 = vpop.f32.mrb[0].mxu0
  %v289 = vadd.f32 0.0, %v288
  %v290 = vpop.f32.mrb[0].mxu0
  %v291 = vpop.f32.mrb[0].mxu0
  %v292 = vadd.f32 0.0, %v291
  %v293 = vpop.f32.mrb[0].mxu0
  %294 = vmatprep.mubr.bf16.mxu0 0
  %295 = vmatmul.mubr.bf16.gmra.mrb[0].mxu0 %v229
  %v296 = vpop.f32.mrb[0].mxu0
  %v297 = vadd.f32 0.0, %v296
  %v298 = vpop.f32.mrb[0].mxu0
  %v299 = vpop.f32.mrb[0].mxu0
  %v300 = vadd.f32 0.0, %v299
  %v301 = vpop.f32.mrb[0].mxu0
  %302 = vmatprep.mubr.bf16.mxu0 0
  %303 = vmatmul.mubr.bf16.gmra.mrb[0].mxu0 %v232
  %v304 = vpop.f32.mrb[0].mxu0
  %v305 = vadd.f32 0.0, %v304
  %v306 = vpop.f32.mrb[0].mxu0
  %v307 = vpop.f32.mrb[0].mxu0
  %v308 = vadd.f32 0.0, %v307
  %v309 = vpop.f32.mrb[0].mxu0
  %310 = vdwg.mxu0
  %v311 = vmul.f32 %v281, 0.35355338
  %v312 = vmul.f32 %v284, 0.35355338
  %v313 = vmul.f32 %v289, 0.35355338
  %v314 = vmul.f32 %v292, 0.35355338
  %v315 = vmul.f32 %v297, 0.35355338
  %v316 = vmul.f32 %v300, 0.35355338
  %v317 = vmul.f32 %v305, 0.35355338
  %v318 = vmul.f32 %v308, 0.35355338
  %v319 = vadd.f32 %v311, %v61
  %v320 = vadd.f32 %v312, %v62
  %v321 = vadd.f32 %v313, %v63
  %v322 = vadd.f32 %v314, %v64
  %v323 = vadd.f32 %v315, %v65
  %v324 = vadd.f32 %v316, %v66
  %v325 = vadd.f32 %v317, %v67
  %v326 = vadd.f32 %v318, %v68
  %vm327 = vcmask 523264
  %v328 = vsel %vm327, %v319, -inf
  %329 = vmax.xlane.f32.xlu0 %v328
  %v330 = vpop.xlane.xlu0 %329
  %v331 = vsel %vm327, %v320, -inf
  %332 = vmax.xlane.f32.xlu0 %v331
  %v333 = vpop.xlane.xlu0 %332
  %v334 = vsel %vm327, %v321, -inf
  %335 = vmax.xlane.f32.xlu0 %v334
  %v336 = vpop.xlane.xlu0 %335
  %v337 = vsel %vm327, %v322, -inf
  %338 = vmax.xlane.f32.xlu0 %v337
  %v339 = vpop.xlane.xlu0 %338
  %v340 = vsel %vm327, %v323, -inf
  %341 = vmax.xlane.f32.xlu0 %v340
  %v342 = vpop.xlane.xlu0 %341
  %v343 = vsel %vm327, %v324, -inf
  %344 = vmax.xlane.f32.xlu0 %v343
  %v345 = vpop.xlane.xlu0 %344
  %v346 = vsel %vm327, %v325, -inf
  %347 = vmax.xlane.f32.xlu0 %v346
  %v348 = vpop.xlane.xlu0 %347
  %v349 = vsel %vm327, %v326, -inf
  %350 = vmax.xlane.f32.xlu0 %v349
  %v351 = vpop.xlane.xlu0 %350
  %v352 = vsub.f32 %v319, %v330
  %v353 = vsub.f32 %v320, %v333
  %v354 = vsub.f32 %v321, %v336
  %v355 = vsub.f32 %v322, %v339
  %v356 = vsub.f32 %v323, %v342
  %v357 = vsub.f32 %v324, %v345
  %v358 = vsub.f32 %v325, %v348
  %v359 = vsub.f32 %v326, %v351
  %v360 = vmul.f32 %v352, 1.442695
  %v361 = vpow.pop %v360
  %v362 = vmul.f32 %v353, 1.442695
  %v363 = vpow.pop %v362
  %v364 = vmul.f32 %v354, 1.442695
  %v365 = vpow.pop %v364
  %v366 = vmul.f32 %v355, 1.442695
  %v367 = vpow.pop %v366
  %v368 = vmul.f32 %v356, 1.442695
  %v369 = vpow.pop %v368
  %v370 = vmul.f32 %v357, 1.442695
  %v371 = vpow.pop %v370
  %v372 = vmul.f32 %v358, 1.442695
  %v373 = vpow.pop %v372
  %v374 = vmul.f32 %v359, 1.442695
  %v375 = vpow.pop %v374
  %v376 = vsel %vm327, %v361, 0.0
  %377 = vadd.xlane.f32.xlu0 %v376
  %v378 = vpop.xlane.xlu0 %377
  %v379 = vsel %vm327, %v363, 0.0
  %380 = vadd.xlane.f32.xlu0 %v379
  %v381 = vpop.xlane.xlu0 %380
  %v382 = vsel %vm327, %v365, 0.0
  %383 = vadd.xlane.f32.xlu0 %v382
  %v384 = vpop.xlane.xlu0 %383
  %v385 = vsel %vm327, %v367, 0.0
  %386 = vadd.xlane.f32.xlu0 %v385
  %v387 = vpop.xlane.xlu0 %386
  %v388 = vsel %vm327, %v369, 0.0
  %389 = vadd.xlane.f32.xlu0 %v388
  %v390 = vpop.xlane.xlu0 %389
  %v391 = vsel %vm327, %v371, 0.0
  %392 = vadd.xlane.f32.xlu0 %v391
  %v393 = vpop.xlane.xlu0 %392
  %v394 = vsel %vm327, %v373, 0.0
  %395 = vadd.xlane.f32.xlu0 %v394
  %v396 = vpop.xlane.xlu0 %395
  %v397 = vsel %vm327, %v375, 0.0
  %398 = vadd.xlane.f32.xlu0 %v397
  %v399 = vpop.xlane.xlu0 %398
  %v400 = vrcp.pop %v378
  %v401 = vmul.f32 %v361, %v400
  %v402 = vrcp.pop %v381
  %v403 = vmul.f32 %v363, %v402
  %v404 = vrcp.pop %v384
  %v405 = vmul.f32 %v365, %v404
  %v406 = vrcp.pop %v387
  %v407 = vmul.f32 %v367, %v406
  %v408 = vrcp.pop %v390
  %v409 = vmul.f32 %v369, %v408
  %v410 = vrcp.pop %v393
  %v411 = vmul.f32 %v371, %v410
  %v412 = vrcp.pop %v396
  %v413 = vmul.f32 %v373, %v412
  %v414 = vrcp.pop %v399
  %v415 = vmul.f32 %v375, %v414
  %v416 = vpack.c.bf16 %v403, %v401
  %v417 = vpack.c.bf16 %v407, %v405
  %v418 = vpack.c.bf16 %v411, %v409
  %v419 = vpack.c.bf16 %v415, %v413
  %420 = vrot.lane.b32.xlu0 %v205, 64
  %v421 = vpop.permute.xlu0 %420
  %422 = vrot.lane.b32.xlu0 %v206, 64
  %v423 = vpop.permute.xlu0 %422
  %424 = vrot.lane.b32.xlu0 %v207, 64
  %v425 = vpop.permute.xlu0 %424
  %426 = vrot.lane.b32.xlu0 %v208, 64
  %v427 = vpop.permute.xlu0 %426
  %v433 = vsel %vm327, %v416, 0
  %v436 = vsel %vm327, %v417, 0
  %v439 = vsel %vm327, %v418, 0
  %v442 = vsel %vm327, %v419, 0
  %444 = vmatprep.subr.bf16.mxu0 0
  %445 = vmatpush1.bf16.msra.mxu0 %v421
  %446 = vmatprep.subr.bf16.mxu0 0
  %447 = vmatpush1.bf16.msra.mxu0 %v423
  %448 = vmatprep.subr.bf16.mxu0 0
  %449 = vmatpush1.bf16.msra.mxu0 %v425
  %450 = vmatprep.subr.bf16.mxu0 0
  %451 = vmatpush1.bf16.msra.mxu0 %v427
  %452 = vmatprep.subr.bf16.mxu0 0
  %453 = vmatpush1.bf16.msra.mxu0 0
  %454 = vmatprep.subr.bf16.mxu0 0
  %455 = vmatpush1.bf16.msra.mxu0 0
  %456 = vmatprep.subr.bf16.mxu0 0
  %457 = vmatpush1.bf16.msra.mxu0 0
  %458 = vmatprep.subr.bf16.mxu0 0
  %459 = vmatpush1.bf16.msra.mxu0 0
  %460 = vmatprep.subr.bf16.mxu0 0
  %461 = vmatpush1.bf16.msra.mxu0 0
  %462 = vmatprep.subr.bf16.mxu0 0
  %463 = vmatpush1.bf16.msra.mxu0 0
  %464 = vmatprep.subr.bf16.mxu0 0
  %465 = vmatpush1.bf16.msra.mxu0 0
  %466 = vmatprep.subr.bf16.mxu0 0
  %467 = vmatpush1.bf16.msra.mxu0 0
  %468 = vmatprep.subr.bf16.mxu0 0
  %469 = vmatpush1.bf16.msra.mxu0 0
  %470 = vmatprep.subr.bf16.mxu0 0
  %471 = vmatpush1.bf16.msra.mxu0 0
  %472 = vmatprep.subr.bf16.mxu0 0
  %473 = vmatpush1.bf16.msra.mxu0 0
  %474 = vmatprep.subr.bf16.mxu0 0
  %475 = vmatpush1.bf16.msra.mxu0 0
  %476 = vmatprep.mubr.bf16.mxu0 0
  %477 = vmatmul.mubr.bf16.gmra.mrb[0].mxu0 %v433
  %v478 = vpop.f32.mrb[0].mxu0
  %v479 = vadd.f32 0.0, %v478
  %v480 = vpop.f32.mrb[0].mxu0
  %v481 = vpop.f32.mrb[0].mxu0
  %v482 = vadd.f32 0.0, %v481
  %v483 = vpop.f32.mrb[0].mxu0
  %484 = vmatprep.mubr.bf16.mxu0 0
  %485 = vmatmul.mubr.bf16.gmra.mrb[0].mxu0 %v436
  %v486 = vpop.f32.mrb[0].mxu0
  %v487 = vadd.f32 0.0, %v486
  %v488 = vpop.f32.mrb[0].mxu0
  %v489 = vpop.f32.mrb[0].mxu0
  %v490 = vadd.f32 0.0, %v489
  %v491 = vpop.f32.mrb[0].mxu0
  %492 = vmatprep.mubr.bf16.mxu0 0
  %493 = vmatmul.mubr.bf16.gmra.mrb[0].mxu0 %v439
  %v494 = vpop.f32.mrb[0].mxu0
  %v495 = vadd.f32 0.0, %v494
  %v496 = vpop.f32.mrb[0].mxu0
  %v497 = vpop.f32.mrb[0].mxu0
  %v498 = vadd.f32 0.0, %v497
  %v499 = vpop.f32.mrb[0].mxu0
  %500 = vmatprep.mubr.bf16.mxu0 0
  %501 = vmatmul.mubr.bf16.gmra.mrb[0].mxu0 %v442
  %v502 = vpop.f32.mrb[0].mxu0
  %v503 = vadd.f32 0.0, %v502
  %v504 = vpop.f32.mrb[0].mxu0
  %v505 = vpop.f32.mrb[0].mxu0
  %v506 = vadd.f32 0.0, %v505
  %v507 = vpop.f32.mrb[0].mxu0
  %508 = vdwg.mxu0
  %v509 = vpack.c.bf16 %v482, %v479
  %v510 = vpack.c.bf16 %v490, %v487
  %v511 = vpack.c.bf16 %v498, %v495
  %v512 = vpack.c.bf16 %v506, %v503
  %v513 = vld [vmem:[#allocation2] sm:$0xff]
  %v514 = vld [vmem:[#allocation2 + $0x8] sm:$0xff]
  %v515 = vld [vmem:[#allocation2 + $0x10] sm:$0xff]
  %v516 = vld [vmem:[#allocation2 + $0x18] sm:$0xff]
  %v517 = vld [vmem:[#allocation2 + $0x20] sm:$0xff]
  %v518 = vld [vmem:[#allocation2 + $0x28] sm:$0xff]
  %v519 = vld [vmem:[#allocation2 + $0x30] sm:$0xff]
  %v520 = vld [vmem:[#allocation2 + $0x38] sm:$0xff]
  %v521 = vpack.c.bf16 %v514, %v513
  %v522 = vpack.c.bf16 %v516, %v515
  %v523 = vpack.c.bf16 %v518, %v517
  %v524 = vpack.c.bf16 %v520, %v519
  %529 = vrot.lane.b32.xlu0 %v521, 120
  %v530 = vpop.permute.xlu0 %529
  %531 = vrot.lane.b32.xlu0 %v522, 120
  %v532 = vpop.permute.xlu0 %531
  %533 = vrot.lane.b32.xlu0 %v523, 120
  %v534 = vpop.permute.xlu0 %533
  %535 = vrot.lane.b32.xlu0 %v524, 120
  %v536 = vpop.permute.xlu0 %535
  %537 = vrot.lane.b32.xlu0 %v521, 88
  %v538 = vpop.permute.xlu0 %537
  %539 = vrot.lane.b32.xlu0 %v522, 88
  %v540 = vpop.permute.xlu0 %539
  %541 = vrot.lane.b32.xlu0 %v523, 88
  %v542 = vpop.permute.xlu0 %541
  %543 = vrot.lane.b32.xlu0 %v524, 88
  %v544 = vpop.permute.xlu0 %543
  %v546 = vsel %vm221, %v530, 0
  %v549 = vsel %vm221, %v532, 0
  %v552 = vsel %vm221, %v534, 0
  %v555 = vsel %vm221, %v536, 0
  %v558 = vsel %vm221, %v538, 0
  %v561 = vsel %vm221, %v540, 0
  %v564 = vsel %vm221, %v542, 0
  %v567 = vsel %vm221, %v544, 0
  %569 = vmatprep.subr.bf16.mxu0 0
  %570 = vmatpush1.bf16.xpose.msra.mxu0 %v558
  %571 = vmatprep.subr.bf16.mxu0 0
  %572 = vmatpush1.bf16.xpose.msra.mxu0 %v561
  %573 = vmatprep.subr.bf16.mxu0 0
  %574 = vmatpush1.bf16.xpose.msra.mxu0 %v564
  %575 = vmatprep.subr.bf16.mxu0 0
  %576 = vmatpush1.bf16.xpose.msra.mxu0 %v567
  %577 = vmatprep.subr.bf16.mxu0 0
  %578 = vmatpush1.bf16.xpose.msra.mxu0 0
  %579 = vmatprep.subr.bf16.mxu0 0
  %580 = vmatpush1.bf16.xpose.msra.mxu0 0
  %581 = vmatprep.subr.bf16.mxu0 0
  %582 = vmatpush1.bf16.xpose.msra.mxu0 0
  %583 = vmatprep.subr.bf16.mxu0 0
  %584 = vmatpush1.bf16.xpose.msra.mxu0 0
  %585 = vmatprep.subr.bf16.mxu0 0
  %586 = vmatpush1.bf16.xpose.msra.mxu0 0
  %587 = vmatprep.subr.bf16.mxu0 0
  %588 = vmatpush1.bf16.xpose.msra.mxu0 0
  %589 = vmatprep.subr.bf16.mxu0 0
  %590 = vmatpush1.bf16.xpose.msra.mxu0 0
  %591 = vmatprep.subr.bf16.mxu0 0
  %592 = vmatpush1.bf16.xpose.msra.mxu0 0
  %593 = vmatprep.subr.bf16.mxu0 0
  %594 = vmatpush1.bf16.xpose.msra.mxu0 0
  %595 = vmatprep.subr.bf16.mxu0 0
  %596 = vmatpush1.bf16.xpose.msra.mxu0 0
  %597 = vmatprep.subr.bf16.mxu0 0
  %598 = vmatpush1.bf16.xpose.msra.mxu0 0
  %599 = vmatprep.subr.bf16.mxu0 0
  %600 = vmatpush1.bf16.xpose.msra.mxu0 0
  %601 = vmatprep.mubr.bf16.mxu0 0
  %602 = vmatmul.mubr.bf16.gmra.mrb[0].mxu0 %v546
  %v603 = vpop.f32.mrb[0].mxu0
  %v604 = vadd.f32 0.0, %v603
  %v605 = vpop.f32.mrb[0].mxu0
  %v606 = vpop.f32.mrb[0].mxu0
  %v607 = vadd.f32 0.0, %v606
  %v608 = vpop.f32.mrb[0].mxu0
  %609 = vmatprep.mubr.bf16.mxu0 0
  %610 = vmatmul.mubr.bf16.gmra.mrb[0].mxu0 %v549
  %v611 = vpop.f32.mrb[0].mxu0
  %v612 = vadd.f32 0.0, %v611
  %v613 = vpop.f32.mrb[0].mxu0
  %v614 = vpop.f32.mrb[0].mxu0
  %v615 = vadd.f32 0.0, %v614
  %v616 = vpop.f32.mrb[0].mxu0
  %617 = vmatprep.mubr.bf16.mxu0 0
  %618 = vmatmul.mubr.bf16.gmra.mrb[0].mxu0 %v552
  %v619 = vpop.f32.mrb[0].mxu0
  %v620 = vadd.f32 0.0, %v619
  %v621 = vpop.f32.mrb[0].mxu0
  %v622 = vpop.f32.mrb[0].mxu0
  %v623 = vadd.f32 0.0, %v622
  %v624 = vpop.f32.mrb[0].mxu0
  %625 = vmatprep.mubr.bf16.mxu0 0
  %626 = vmatmul.mubr.bf16.gmra.mrb[0].mxu0 %v555
  %v627 = vpop.f32.mrb[0].mxu0
  %v628 = vadd.f32 0.0, %v627
  %v629 = vpop.f32.mrb[0].mxu0
  %v630 = vpop.f32.mrb[0].mxu0
  %v631 = vadd.f32 0.0, %v630
  %v632 = vpop.f32.mrb[0].mxu0
  %633 = vdwg.mxu0
  %v634 = vmul.f32 %v604, 0.35355338
  %v635 = vmul.f32 %v607, 0.35355338
  %v636 = vmul.f32 %v612, 0.35355338
  %v637 = vmul.f32 %v615, 0.35355338
  %v638 = vmul.f32 %v620, 0.35355338
  %v639 = vmul.f32 %v623, 0.35355338
  %v640 = vmul.f32 %v628, 0.35355338
  %v641 = vmul.f32 %v631, 0.35355338
  %v642 = vadd.f32 %v634, %v61
  %v643 = vadd.f32 %v635, %v62
  %v644 = vadd.f32 %v636, %v63
  %v645 = vadd.f32 %v637, %v64
  %v646 = vadd.f32 %v638, %v65
  %v647 = vadd.f32 %v639, %v66
  %v648 = vadd.f32 %v640, %v67
  %v649 = vadd.f32 %v641, %v68
  %v650 = vsel %vm327, %v642, -inf
  %651 = vmax.xlane.f32.xlu0 %v650
  %v652 = vpop.xlane.xlu0 %651
  %v653 = vsel %vm327, %v643, -inf
  %654 = vmax.xlane.f32.xlu0 %v653
  %v655 = vpop.xlane.xlu0 %654
  %v656 = vsel %vm327, %v644, -inf
  %657 = vmax.xlane.f32.xlu0 %v656
  %v658 = vpop.xlane.xlu0 %657
  %v659 = vsel %vm327, %v645, -inf
  %660 = vmax.xlane.f32.xlu0 %v659
  %v661 = vpop.xlane.xlu0 %660
  %v662 = vsel %vm327, %v646, -inf
  %663 = vmax.xlane.f32.xlu0 %v662
  %v664 = vpop.xlane.xlu0 %663
  %v665 = vsel %vm327, %v647, -inf
  %666 = vmax.xlane.f32.xlu0 %v665
  %v667 = vpop.xlane.xlu0 %666
  %v668 = vsel %vm327, %v648, -inf
  %669 = vmax.xlane.f32.xlu0 %v668
  %v670 = vpop.xlane.xlu0 %669
  %v671 = vsel %vm327, %v649, -inf
  %672 = vmax.xlane.f32.xlu0 %v671
  %v673 = vpop.xlane.xlu0 %672
  %v674 = vsub.f32 %v642, %v652
  %v675 = vsub.f32 %v643, %v655
  %v676 = vsub.f32 %v644, %v658
  %v677 = vsub.f32 %v645, %v661
  %v678 = vsub.f32 %v646, %v664
  %v679 = vsub.f32 %v647, %v667
  %v680 = vsub.f32 %v648, %v670
  %v681 = vsub.f32 %v649, %v673
  %v682 = vmul.f32 %v674, 1.442695
  %v683 = vpow.pop %v682
  %v684 = vmul.f32 %v675, 1.442695
  %v685 = vpow.pop %v684
  %v686 = vmul.f32 %v676, 1.442695
  %v687 = vpow.pop %v686
  %v688 = vmul.f32 %v677, 1.442695
  %v689 = vpow.pop %v688
  %v690 = vmul.f32 %v678, 1.442695
  %v691 = vpow.pop %v690
  %v692 = vmul.f32 %v679, 1.442695
  %v693 = vpow.pop %v692
  %v694 = vmul.f32 %v680, 1.442695
  %v695 = vpow.pop %v694
  %v696 = vmul.f32 %v681, 1.442695
  %v697 = vpow.pop %v696
  %v698 = vsel %vm327, %v683, 0.0
  %699 = vadd.xlane.f32.xlu0 %v698
  %v700 = vpop.xlane.xlu0 %699
  %v701 = vsel %vm327, %v685, 0.0
  %702 = vadd.xlane.f32.xlu0 %v701
  %v703 = vpop.xlane.xlu0 %702
  %v704 = vsel %vm327, %v687, 0.0
  %705 = vadd.xlane.f32.xlu0 %v704
  %v706 = vpop.xlane.xlu0 %705
  %v707 = vsel %vm327, %v689, 0.0
  %708 = vadd.xlane.f32.xlu0 %v707
  %v709 = vpop.xlane.xlu0 %708
  %v710 = vsel %vm327, %v691, 0.0
  %711 = vadd.xlane.f32.xlu0 %v710
  %v712 = vpop.xlane.xlu0 %711
  %v713 = vsel %vm327, %v693, 0.0
  %714 = vadd.xlane.f32.xlu0 %v713
  %v715 = vpop.xlane.xlu0 %714
  %v716 = vsel %vm327, %v695, 0.0
  %717 = vadd.xlane.f32.xlu0 %v716
  %v718 = vpop.xlane.xlu0 %717
  %v719 = vsel %vm327, %v697, 0.0
  %720 = vadd.xlane.f32.xlu0 %v719
  %v721 = vpop.xlane.xlu0 %720
  %v722 = vrcp.pop %v700
  %v723 = vmul.f32 %v683, %v722
  %v724 = vrcp.pop %v703
  %v725 = vmul.f32 %v685, %v724
  %v726 = vrcp.pop %v706
  %v727 = vmul.f32 %v687, %v726
  %v728 = vrcp.pop %v709
  %v729 = vmul.f32 %v689, %v728
  %v730 = vrcp.pop %v712
  %v731 = vmul.f32 %v691, %v730
  %v732 = vrcp.pop %v715
  %v733 = vmul.f32 %v693, %v732
  %v734 = vrcp.pop %v718
  %v735 = vmul.f32 %v695, %v734
  %v736 = vrcp.pop %v721
  %v737 = vmul.f32 %v697, %v736
  %v738 = vpack.c.bf16 %v725, %v723
  %v739 = vpack.c.bf16 %v729, %v727
  %v740 = vpack.c.bf16 %v733, %v731
  %v741 = vpack.c.bf16 %v737, %v735
  %742 = vrot.lane.b32.xlu0 %v521, 56
  %v743 = vpop.permute.xlu0 %742
  %744 = vrot.lane.b32.xlu0 %v522, 56
  %v745 = vpop.permute.xlu0 %744
  %746 = vrot.lane.b32.xlu0 %v523, 56
  %v747 = vpop.permute.xlu0 %746
  %748 = vrot.lane.b32.xlu0 %v524, 56
  %v749 = vpop.permute.xlu0 %748
  %v755 = vsel %vm327, %v738, 0
  %v758 = vsel %vm327, %v739, 0
  %v761 = vsel %vm327, %v740, 0
  %v764 = vsel %vm327, %v741, 0
  %766 = vmatprep.subr.bf16.mxu0 0
  %767 = vmatpush1.bf16.msra.mxu0 %v743
  %768 = vmatprep.subr.bf16.mxu0 0
  %769 = vmatpush1.bf16.msra.mxu0 %v745
  %770 = vmatprep.subr.bf16.mxu0 0
  %771 = vmatpush1.bf16.msra.mxu0 %v747
  %772 = vmatprep.subr.bf16.mxu0 0
  %773 = vmatpush1.bf16.msra.mxu0 %v749
  %774 = vmatprep.subr.bf16.mxu0 0
  %775 = vmatpush1.bf16.msra.mxu0 0
  %776 = vmatprep.subr.bf16.mxu0 0
  %777 = vmatpush1.bf16.msra.mxu0 0
  %778 = vmatprep.subr.bf16.mxu0 0
  %779 = vmatpush1.bf16.msra.mxu0 0
  %780 = vmatprep.subr.bf16.mxu0 0
  %781 = vmatpush1.bf16.msra.mxu0 0
  %782 = vmatprep.subr.bf16.mxu0 0
  %783 = vmatpush1.bf16.msra.mxu0 0
  %784 = vmatprep.subr.bf16.mxu0 0
  %785 = vmatpush1.bf16.msra.mxu0 0
  %786 = vmatprep.subr.bf16.mxu0 0
  %787 = vmatpush1.bf16.msra.mxu0 0
  %788 = vmatprep.subr.bf16.mxu0 0
  %789 = vmatpush1.bf16.msra.mxu0 0
  %790 = vmatprep.subr.bf16.mxu0 0
  %791 = vmatpush1.bf16.msra.mxu0 0
  %792 = vmatprep.subr.bf16.mxu0 0
  %793 = vmatpush1.bf16.msra.mxu0 0
  %794 = vmatprep.subr.bf16.mxu0 0
  %795 = vmatpush1.bf16.msra.mxu0 0
  %796 = vmatprep.subr.bf16.mxu0 0
  %797 = vmatpush1.bf16.msra.mxu0 0
  %798 = vmatprep.mubr.bf16.mxu0 0
  %799 = vmatmul.mubr.bf16.gmra.mrb[0].mxu0 %v755
  %v800 = vpop.f32.mrb[0].mxu0
  %v801 = vadd.f32 0.0, %v800
  %v802 = vpop.f32.mrb[0].mxu0
  %v803 = vpop.f32.mrb[0].mxu0
  %v804 = vadd.f32 0.0, %v803
  %v805 = vpop.f32.mrb[0].mxu0
  %806 = vmatprep.mubr.bf16.mxu0 0
  %807 = vmatmul.mubr.bf16.gmra.mrb[0].mxu0 %v758
  %v808 = vpop.f32.mrb[0].mxu0
  %v809 = vadd.f32 0.0, %v808
  %v810 = vpop.f32.mrb[0].mxu0
  %v811 = vpop.f32.mrb[0].mxu0
  %v812 = vadd.f32 0.0, %v811
  %v813 = vpop.f32.mrb[0].mxu0
  %814 = vmatprep.mubr.bf16.mxu0 0
  %815 = vmatmul.mubr.bf16.gmra.mrb[0].mxu0 %v761
  %v816 = vpop.f32.mrb[0].mxu0
  %v817 = vadd.f32 0.0, %v816
  %v818 = vpop.f32.mrb[0].mxu0
  %v819 = vpop.f32.mrb[0].mxu0
  %v820 = vadd.f32 0.0, %v819
  %v821 = vpop.f32.mrb[0].mxu0
  %822 = vmatprep.mubr.bf16.mxu0 0
  %823 = vmatmul.mubr.bf16.gmra.mrb[0].mxu0 %v764
  %v824 = vpop.f32.mrb[0].mxu0
  %v825 = vadd.f32 0.0, %v824
  %v826 = vpop.f32.mrb[0].mxu0
  %v827 = vpop.f32.mrb[0].mxu0
  %v828 = vadd.f32 0.0, %v827
  %v829 = vpop.f32.mrb[0].mxu0
  %830 = vdwg.mxu0
  %v831 = vpack.c.bf16 %v804, %v801
  %v832 = vpack.c.bf16 %v812, %v809
  %v833 = vpack.c.bf16 %v820, %v817
  %v834 = vpack.c.bf16 %v828, %v825
  %v836 = vsel %vm221, %v831, 0
  %v839 = vsel %vm221, %v832, 0
  %v842 = vsel %vm221, %v833, 0
  %v845 = vsel %vm221, %v834, 0
  %vm847 = vcmask 1043456
  %v849 = vsel %vm847, %v74, 0
  %851 = vmatprep.subr.bf16.mxu0 0
  %852 = vmatpush1.bf16.msra.mxu0 %v849
  %853 = vmatprep.subr.bf16.mxu0 0
  %854 = vmatpush1.bf16.msra.mxu0 0
  %855 = vmatprep.subr.bf16.mxu0 0
  %856 = vmatpush1.bf16.msra.mxu0 0
  %857 = vmatprep.subr.bf16.mxu0 0
  %858 = vmatpush1.bf16.msra.mxu0 0
  %859 = vmatprep.subr.bf16.mxu0 0
  %860 = vmatpush1.bf16.msra.mxu0 0
  %861 = vmatprep.subr.bf16.mxu0 0
  %862 = vmatpush1.bf16.msra.mxu0 0
  %863 = vmatprep.subr.bf16.mxu0 0
  %864 = vmatpush1.bf16.msra.mxu0 0
  %865 = vmatprep.subr.bf16.mxu0 0
  %866 = vmatpush1.bf16.msra.mxu0 0
  %867 = vmatprep.subr.bf16.mxu0 0
  %868 = vmatpush1.bf16.msra.mxu0 0
  %869 = vmatprep.subr.bf16.mxu0 0
  %870 = vmatpush1.bf16.msra.mxu0 0
  %871 = vmatprep.subr.bf16.mxu0 0
  %872 = vmatpush1.bf16.msra.mxu0 0
  %873 = vmatprep.subr.bf16.mxu0 0
  %874 = vmatpush1.bf16.msra.mxu0 0
  %875 = vmatprep.subr.bf16.mxu0 0
  %876 = vmatpush1.bf16.msra.mxu0 0
  %877 = vmatprep.subr.bf16.mxu0 0
  %878 = vmatpush1.bf16.msra.mxu0 0
  %879 = vmatprep.subr.bf16.mxu0 0
  %880 = vmatpush1.bf16.msra.mxu0 0
  %881 = vmatprep.subr.bf16.mxu0 0
  %882 = vmatpush1.bf16.msra.mxu0 0
  %883 = vmatprep.mubr.bf16.mxu0 0
  %884 = vmatmul.mubr.bf16.gmra.mrb[0].mxu0 %v836
  %v885 = vpop.f32.mrb[0].mxu0
  %v886 = vadd.f32 0.0, %v885
  %v887 = vpop.f32.mrb[0].mxu0
  %v888 = vpop.f32.mrb[0].mxu0
  %v889 = vadd.f32 0.0, %v888
  %v890 = vpop.f32.mrb[0].mxu0
  %891 = vmatprep.mubr.bf16.mxu0 0
  %892 = vmatmul.mubr.bf16.gmra.mrb[0].mxu0 %v839
  %v893 = vpop.f32.mrb[0].mxu0
  %v894 = vadd.f32 0.0, %v893
  %v895 = vpop.f32.mrb[0].mxu0
  %v896 = vpop.f32.mrb[0].mxu0
  %v897 = vadd.f32 0.0, %v896
  %v898 = vpop.f32.mrb[0].mxu0
  %899 = vmatprep.mubr.bf16.mxu0 0
  %900 = vmatmul.mubr.bf16.gmra.mrb[0].mxu0 %v842
  %v901 = vpop.f32.mrb[0].mxu0
  %v902 = vadd.f32 0.0, %v901
  %v903 = vpop.f32.mrb[0].mxu0
  %v904 = vpop.f32.mrb[0].mxu0
  %v905 = vadd.f32 0.0, %v904
  %v906 = vpop.f32.mrb[0].mxu0
  %907 = vmatprep.mubr.bf16.mxu0 0
  %908 = vmatmul.mubr.bf16.gmra.mrb[0].mxu0 %v845
  %v909 = vpop.f32.mrb[0].mxu0
  %v910 = vadd.f32 0.0, %v909
  %v911 = vpop.f32.mrb[0].mxu0
  %v912 = vpop.f32.mrb[0].mxu0
  %v913 = vadd.f32 0.0, %v912
  %v914 = vpop.f32.mrb[0].mxu0
  %915 = vdwg.mxu0
  %v917 = vsel %vm221, %v509, 0
  %v920 = vsel %vm221, %v510, 0
  %v923 = vsel %vm221, %v511, 0
  %v926 = vsel %vm221, %v512, 0
  %v929 = vsel %vm847, %v73, 0
  %931 = vmatprep.subr.bf16.mxu0 0
  %932 = vmatpush1.bf16.msra.mxu0 %v929
  %933 = vmatprep.subr.bf16.mxu0 0
  %934 = vmatpush1.bf16.msra.mxu0 0
  %935 = vmatprep.subr.bf16.mxu0 0
  %936 = vmatpush1.bf16.msra.mxu0 0
  %937 = vmatprep.subr.bf16.mxu0 0
  %938 = vmatpush1.bf16.msra.mxu0 0
  %939 = vmatprep.subr.bf16.mxu0 0
  %940 = vmatpush1.bf16.msra.mxu0 0
  %941 = vmatprep.subr.bf16.mxu0 0
  %942 = vmatpush1.bf16.msra.mxu0 0
  %943 = vmatprep.subr.bf16.mxu0 0
  %944 = vmatpush1.bf16.msra.mxu0 0
  %945 = vmatprep.subr.bf16.mxu0 0
  %946 = vmatpush1.bf16.msra.mxu0 0
  %947 = vmatprep.subr.bf16.mxu0 0
  %948 = vmatpush1.bf16.msra.mxu0 0
  %949 = vmatprep.subr.bf16.mxu0 0
  %950 = vmatpush1.bf16.msra.mxu0 0
  %951 = vmatprep.subr.bf16.mxu0 0
  %952 = vmatpush1.bf16.msra.mxu0 0
  %953 = vmatprep.subr.bf16.mxu0 0
  %954 = vmatpush1.bf16.msra.mxu0 0
  %955 = vmatprep.subr.bf16.mxu0 0
  %956 = vmatpush1.bf16.msra.mxu0 0
  %957 = vmatprep.subr.bf16.mxu0 0
  %958 = vmatpush1.bf16.msra.mxu0 0
  %959 = vmatprep.subr.bf16.mxu0 0
  %960 = vmatpush1.bf16.msra.mxu0 0
  %961 = vmatprep.subr.bf16.mxu0 0
  %962 = vmatpush1.bf16.msra.mxu0 0
  %963 = vmatprep.mubr.bf16.mxu0 0
  %964 = vmatmul.mubr.bf16.gmra.mrb[0].mxu0 %v917
  %v965 = vpop.f32.mrb[0].mxu0
  %v966 = vadd.f32 %v886, %v965
  %v967 = vpop.f32.mrb[0].mxu0
  %v968 = vpop.f32.mrb[0].mxu0
  %v969 = vadd.f32 %v889, %v968
  %v970 = vpop.f32.mrb[0].mxu0
  %971 = vmatprep.mubr.bf16.mxu0 0
  %972 = vmatmul.mubr.bf16.gmra.mrb[0].mxu0 %v920
  %v973 = vpop.f32.mrb[0].mxu0
  %v974 = vadd.f32 %v894, %v973
  %v975 = vpop.f32.mrb[0].mxu0
  %v976 = vpop.f32.mrb[0].mxu0
  %v977 = vadd.f32 %v897, %v976
  %v978 = vpop.f32.mrb[0].mxu0
  %979 = vmatprep.mubr.bf16.mxu0 0
  %980 = vmatmul.mubr.bf16.gmra.mrb[0].mxu0 %v923
  %v981 = vpop.f32.mrb[0].mxu0
  %v982 = vadd.f32 %v902, %v981
  %v983 = vpop.f32.mrb[0].mxu0
  %v984 = vpop.f32.mrb[0].mxu0
  %v985 = vadd.f32 %v905, %v984
  %v986 = vpop.f32.mrb[0].mxu0
  %987 = vmatprep.mubr.bf16.mxu0 0
  %988 = vmatmul.mubr.bf16.gmra.mrb[0].mxu0 %v926
  %v989 = vpop.f32.mrb[0].mxu0
  %v990 = vadd.f32 %v910, %v989
  %v991 = vpop.f32.mrb[0].mxu0
  %v992 = vpop.f32.mrb[0].mxu0
  %v993 = vadd.f32 %v913, %v992
  %v994 = vpop.f32.mrb[0].mxu0
  %995 = vdwg.mxu0
  %v996 = vld [vmem:[#allocation2] sm:$0xff]
  %v997 = vld [vmem:[#allocation2 + $0x8] sm:$0xff]
  %v998 = vld [vmem:[#allocation2 + $0x10] sm:$0xff]
  %v999 = vld [vmem:[#allocation2 + $0x18] sm:$0xff]
  %v1000 = vld [vmem:[#allocation2 + $0x20] sm:$0xff]
  %v1001 = vld [vmem:[#allocation2 + $0x28] sm:$0xff]
  %v1002 = vld [vmem:[#allocation2 + $0x30] sm:$0xff]
  %v1003 = vld [vmem:[#allocation2 + $0x38] sm:$0xff]
  %v1004 = vpack.c.bf16 %v997, %v996
  %v1005 = vpack.c.bf16 %v999, %v998
  %v1006 = vpack.c.bf16 %v1001, %v1000
  %v1007 = vpack.c.bf16 %v1003, %v1002
  %1012 = vrot.lane.b32.xlu0 %v1004, 112
  %v1013 = vpop.permute.xlu0 %1012
  %1014 = vrot.lane.b32.xlu0 %v1005, 112
  %v1015 = vpop.permute.xlu0 %1014
  %1016 = vrot.lane.b32.xlu0 %v1006, 112
  %v1017 = vpop.permute.xlu0 %1016
  %1018 = vrot.lane.b32.xlu0 %v1007, 112
  %v1019 = vpop.permute.xlu0 %1018
  %1020 = vrot.lane.b32.xlu0 %v1004, 80
  %v1021 = vpop.permute.xlu0 %1020
  %1022 = vrot.lane.b32.xlu0 %v1005, 80
  %v1023 = vpop.permute.xlu0 %1022
  %1024 = vrot.lane.b32.xlu0 %v1006, 80
  %v1025 = vpop.permute.xlu0 %1024
  %1026 = vrot.lane.b32.xlu0 %v1007, 80
  %v1027 = vpop.permute.xlu0 %1026
  %v1029 = vsel %vm221, %v1013, 0
  %v1032 = vsel %vm221, %v1015, 0
  %v1035 = vsel %vm221, %v1017, 0
  %v1038 = vsel %vm221, %v1019, 0
  %v1041 = vsel %vm221, %v1021, 0
  %v1044 = vsel %vm221, %v1023, 0
  %v1047 = vsel %vm221, %v1025, 0
  %v1050 = vsel %vm221, %v1027, 0
  %1052 = vmatprep.subr.bf16.mxu0 0
  %1053 = vmatpush1.bf16.xpose.msra.mxu0 %v1041
  %1054 = vmatprep.subr.bf16.mxu0 0
  %1055 = vmatpush1.bf16.xpose.msra.mxu0 %v1044
  %1056 = vmatprep.subr.bf16.mxu0 0
  %1057 = vmatpush1.bf16.xpose.msra.mxu0 %v1047
  %1058 = vmatprep.subr.bf16.mxu0 0
  %1059 = vmatpush1.bf16.xpose.msra.mxu0 %v1050
  %1060 = vmatprep.subr.bf16.mxu0 0
  %1061 = vmatpush1.bf16.xpose.msra.mxu0 0
  %1062 = vmatprep.subr.bf16.mxu0 0
  %1063 = vmatpush1.bf16.xpose.msra.mxu0 0
  %1064 = vmatprep.subr.bf16.mxu0 0
  %1065 = vmatpush1.bf16.xpose.msra.mxu0 0
  %1066 = vmatprep.subr.bf16.mxu0 0
  %1067 = vmatpush1.bf16.xpose.msra.mxu0 0
  %1068 = vmatprep.subr.bf16.mxu0 0
  %1069 = vmatpush1.bf16.xpose.msra.mxu0 0
  %1070 = vmatprep.subr.bf16.mxu0 0
  %1071 = vmatpush1.bf16.xpose.msra.mxu0 0
  %1072 = vmatprep.subr.bf16.mxu0 0
  %1073 = vmatpush1.bf16.xpose.msra.mxu0 0
  %1074 = vmatprep.subr.bf16.mxu0 0
  %1075 = vmatpush1.bf16.xpose.msra.mxu0 0
  %1076 = vmatprep.subr.bf16.mxu0 0
  %1077 = vmatpush1.bf16.xpose.msra.mxu0 0
  %1078 = vmatprep.subr.bf16.mxu0 0
  %1079 = vmatpush1.bf16.xpose.msra.mxu0 0
  %1080 = vmatprep.subr.bf16.mxu0 0
  %1081 = vmatpush1.bf16.xpose.msra.mxu0 0
  %1082 = vmatprep.subr.bf16.mxu0 0
  %1083 = vmatpush1.bf16.xpose.msra.mxu0 0
  %1084 = vmatprep.mubr.bf16.mxu0 0
  %1085 = vmatmul.mubr.bf16.gmra.mrb[0].mxu0 %v1029
  %v1086 = vpop.f32.mrb[0].mxu0
  %v1087 = vadd.f32 0.0, %v1086
  %v1088 = vpop.f32.mrb[0].mxu0
  %v1089 = vpop.f32.mrb[0].mxu0
  %v1090 = vadd.f32 0.0, %v1089
  %v1091 = vpop.f32.mrb[0].mxu0
  %1092 = vmatprep.mubr.bf16.mxu0 0
  %1093 = vmatmul.mubr.bf16.gmra.mrb[0].mxu0 %v1032
  %v1094 = vpop.f32.mrb[0].mxu0
  %v1095 = vadd.f32 0.0, %v1094
  %v1096 = vpop.f32.mrb[0].mxu0
  %v1097 = vpop.f32.mrb[0].mxu0
  %v1098 = vadd.f32 0.0, %v1097
  %v1099 = vpop.f32.mrb[0].mxu0
  %1100 = vmatprep.mubr.bf16.mxu0 0
  %1101 = vmatmul.mubr.bf16.gmra.mrb[0].mxu0 %v1035
  %v1102 = vpop.f32.mrb[0].mxu0
  %v1103 = vadd.f32 0.0, %v1102
  %v1104 = vpop.f32.mrb[0].mxu0
  %v1105 = vpop.f32.mrb[0].mxu0
  %v1106 = vadd.f32 0.0, %v1105
  %v1107 = vpop.f32.mrb[0].mxu0
  %1108 = vmatprep.mubr.bf16.mxu0 0
  %1109 = vmatmul.mubr.bf16.gmra.mrb[0].mxu0 %v1038
  %v1110 = vpop.f32.mrb[0].mxu0
  %v1111 = vadd.f32 0.0, %v1110
  %v1112 = vpop.f32.mrb[0].mxu0
  %v1113 = vpop.f32.mrb[0].mxu0
  %v1114 = vadd.f32 0.0, %v1113
  %v1115 = vpop.f32.mrb[0].mxu0
  %1116 = vdwg.mxu0
  %v1117 = vmul.f32 %v1087, 0.35355338
  %v1118 = vmul.f32 %v1090, 0.35355338
  %v1119 = vmul.f32 %v1095, 0.35355338
  %v1120 = vmul.f32 %v1098, 0.35355338
  %v1121 = vmul.f32 %v1103, 0.35355338
  %v1122 = vmul.f32 %v1106, 0.35355338
  %v1123 = vmul.f32 %v1111, 0.35355338
  %v1124 = vmul.f32 %v1114, 0.35355338
  %v1125 = vadd.f32 %v1117, %v61
  %v1126 = vadd.f32 %v1118, %v62
  %v1127 = vadd.f32 %v1119, %v63
  %v1128 = vadd.f32 %v1120, %v64
  %v1129 = vadd.f32 %v1121, %v65
  %v1130 = vadd.f32 %v1122, %v66
  %v1131 = vadd.f32 %v1123, %v67
  %v1132 = vadd.f32 %v1124, %v68
  %v1133 = vsel %vm327, %v1125, -inf
  %1134 = vmax.xlane.f32.xlu0 %v1133
  %v1135 = vpop.xlane.xlu0 %1134
  %v1136 = vsel %vm327, %v1126, -inf
  %1137 = vmax.xlane.f32.xlu0 %v1136
  %v1138 = vpop.xlane.xlu0 %1137
  %v1139 = vsel %vm327, %v1127, -inf
  %1140 = vmax.xlane.f32.xlu0 %v1139
  %v1141 = vpop.xlane.xlu0 %1140
  %v1142 = vsel %vm327, %v1128, -inf
  %1143 = vmax.xlane.f32.xlu0 %v1142
  %v1144 = vpop.xlane.xlu0 %1143
  %v1145 = vsel %vm327, %v1129, -inf
  %1146 = vmax.xlane.f32.xlu0 %v1145
  %v1147 = vpop.xlane.xlu0 %1146
  %v1148 = vsel %vm327, %v1130, -inf
  %1149 = vmax.xlane.f32.xlu0 %v1148
  %v1150 = vpop.xlane.xlu0 %1149
  %v1151 = vsel %vm327, %v1131, -inf
  %1152 = vmax.xlane.f32.xlu0 %v1151
  %v1153 = vpop.xlane.xlu0 %1152
  %v1154 = vsel %vm327, %v1132, -inf
  %1155 = vmax.xlane.f32.xlu0 %v1154
  %v1156 = vpop.xlane.xlu0 %1155
  %v1157 = vsub.f32 %v1125, %v1135
  %v1158 = vsub.f32 %v1126, %v1138
  %v1159 = vsub.f32 %v1127, %v1141
  %v1160 = vsub.f32 %v1128, %v1144
  %v1161 = vsub.f32 %v1129, %v1147
  %v1162 = vsub.f32 %v1130, %v1150
  %v1163 = vsub.f32 %v1131, %v1153
  %v1164 = vsub.f32 %v1132, %v1156
  %v1165 = vmul.f32 %v1157, 1.442695
  %v1166 = vpow.pop %v1165
  %v1167 = vmul.f32 %v1158, 1.442695
  %v1168 = vpow.pop %v1167
  %v1169 = vmul.f32 %v1159, 1.442695
  %v1170 = vpow.pop %v1169
  %v1171 = vmul.f32 %v1160, 1.442695
  %v1172 = vpow.pop %v1171
  %v1173 = vmul.f32 %v1161, 1.442695
  %v1174 = vpow.pop %v1173
  %v1175 = vmul.f32 %v1162, 1.442695
  %v1176 = vpow.pop %v1175
  %v1177 = vmul.f32 %v1163, 1.442695
  %v1178 = vpow.pop %v1177
  %v1179 = vmul.f32 %v1164, 1.442695
  %v1180 = vpow.pop %v1179
  %v1181 = vsel %vm327, %v1166, 0.0
  %1182 = vadd.xlane.f32.xlu0 %v1181
  %v1183 = vpop.xlane.xlu0 %1182
  %v1184 = vsel %vm327, %v1168, 0.0
  %1185 = vadd.xlane.f32.xlu0 %v1184
  %v1186 = vpop.xlane.xlu0 %1185
  %v1187 = vsel %vm327, %v1170, 0.0
  %1188 = vadd.xlane.f32.xlu0 %v1187
  %v1189 = vpop.xlane.xlu0 %1188
  %v1190 = vsel %vm327, %v1172, 0.0
  %1191 = vadd.xlane.f32.xlu0 %v1190
  %v1192 = vpop.xlane.xlu0 %1191
  %v1193 = vsel %vm327, %v1174, 0.0
  %1194 = vadd.xlane.f32.xlu0 %v1193
  %v1195 = vpop.xlane.xlu0 %1194
  %v1196 = vsel %vm327, %v1176, 0.0
  %1197 = vadd.xlane.f32.xlu0 %v1196
  %v1198 = vpop.xlane.xlu0 %1197
  %v1199 = vsel %vm327, %v1178, 0.0
  %1200 = vadd.xlane.f32.xlu0 %v1199
  %v1201 = vpop.xlane.xlu0 %1200
  %v1202 = vsel %vm327, %v1180, 0.0
  %1203 = vadd.xlane.f32.xlu0 %v1202
  %v1204 = vpop.xlane.xlu0 %1203
  %v1205 = vrcp.pop %v1183
  %v1206 = vmul.f32 %v1166, %v1205
  %v1207 = vrcp.pop %v1186
  %v1208 = vmul.f32 %v1168, %v1207
  %v1209 = vrcp.pop %v1189
  %v1210 = vmul.f32 %v1170, %v1209
  %v1211 = vrcp.pop %v1192
  %v1212 = vmul.f32 %v1172, %v1211
  %v1213 = vrcp.pop %v1195
  %v1214 = vmul.f32 %v1174, %v1213
  %v1215 = vrcp.pop %v1198
  %v1216 = vmul.f32 %v1176, %v1215
  %v1217 = vrcp.pop %v1201
  %v1218 = vmul.f32 %v1178, %v1217
  %v1219 = vrcp.pop %v1204
  %v1220 = vmul.f32 %v1180, %v1219
  %v1221 = vpack.c.bf16 %v1208, %v1206
  %v1222 = vpack.c.bf16 %v1212, %v1210
  %v1223 = vpack.c.bf16 %v1216, %v1214
  %v1224 = vpack.c.bf16 %v1220, %v1218
  %1225 = vrot.lane.b32.xlu0 %v1004, 48
  %v1226 = vpop.permute.xlu0 %1225
  %1227 = vrot.lane.b32.xlu0 %v1005, 48
  %v1228 = vpop.permute.xlu0 %1227
  %1229 = vrot.lane.b32.xlu0 %v1006, 48
  %v1230 = vpop.permute.xlu0 %1229
  %1231 = vrot.lane.b32.xlu0 %v1007, 48
  %v1232 = vpop.permute.xlu0 %1231
  %v1238 = vsel %vm327, %v1221, 0
  %v1241 = vsel %vm327, %v1222, 0
  %v1244 = vsel %vm327, %v1223, 0
  %v1247 = vsel %vm327, %v1224, 0
  %1249 = vmatprep.subr.bf16.mxu0 0
  %1250 = vmatpush1.bf16.msra.mxu0 %v1226
  %1251 = vmatprep.subr.bf16.mxu0 0
  %1252 = vmatpush1.bf16.msra.mxu0 %v1228
  %1253 = vmatprep.subr.bf16.mxu0 0
  %1254 = vmatpush1.bf16.msra.mxu0 %v1230
  %1255 = vmatprep.subr.bf16.mxu0 0
  %1256 = vmatpush1.bf16.msra.mxu0 %v1232
  %1257 = vmatprep.subr.bf16.mxu0 0
  %1258 = vmatpush1.bf16.msra.mxu0 0
  %1259 = vmatprep.subr.bf16.mxu0 0
  %1260 = vmatpush1.bf16.msra.mxu0 0
  %1261 = vmatprep.subr.bf16.mxu0 0
  %1262 = vmatpush1.bf16.msra.mxu0 0
  %1263 = vmatprep.subr.bf16.mxu0 0
  %1264 = vmatpush1.bf16.msra.mxu0 0
  %1265 = vmatprep.subr.bf16.mxu0 0
  %1266 = vmatpush1.bf16.msra.mxu0 0
  %1267 = vmatprep.subr.bf16.mxu0 0
  %1268 = vmatpush1.bf16.msra.mxu0 0
  %1269 = vmatprep.subr.bf16.mxu0 0
  %1270 = vmatpush1.bf16.msra.mxu0 0
  %1271 = vmatprep.subr.bf16.mxu0 0
  %1272 = vmatpush1.bf16.msra.mxu0 0
  %1273 = vmatprep.subr.bf16.mxu0 0
  %1274 = vmatpush1.bf16.msra.mxu0 0
  %1275 = vmatprep.subr.bf16.mxu0 0
  %1276 = vmatpush1.bf16.msra.mxu0 0
  %1277 = vmatprep.subr.bf16.mxu0 0
  %1278 = vmatpush1.bf16.msra.mxu0 0
  %1279 = vmatprep.subr.bf16.mxu0 0
  %1280 = vmatpush1.bf16.msra.mxu0 0
  %1281 = vmatprep.mubr.bf16.mxu0 0
  %1282 = vmatmul.mubr.bf16.gmra.mrb[0].mxu0 %v1238
  %v1283 = vpop.f32.mrb[0].mxu0
  %v1284 = vadd.f32 0.0, %v1283
  %v1285 = vpop.f32.mrb[0].mxu0
  %v1286 = vpop.f32.mrb[0].mxu0
  %v1287 = vadd.f32 0.0, %v1286
  %v1288 = vpop.f32.mrb[0].mxu0
  %1289 = vmatprep.mubr.bf16.mxu0 0
  %1290 = vmatmul.mubr.bf16.gmra.mrb[0].mxu0 %v1241
  %v1291 = vpop.f32.mrb[0].mxu0
  %v1292 = vadd.f32 0.0, %v1291
  %v1293 = vpop.f32.mrb[0].mxu0
  %v1294 = vpop.f32.mrb[0].mxu0
  %v1295 = vadd.f32 0.0, %v1294
  %v1296 = vpop.f32.mrb[0].mxu0
  %1297 = vmatprep.mubr.bf16.mxu0 0
  %1298 = vmatmul.mubr.bf16.gmra.mrb[0].mxu0 %v1244
  %v1299 = vpop.f32.mrb[0].mxu0
  %v1300 = vadd.f32 0.0, %v1299
  %v1301 = vpop.f32.mrb[0].mxu0
  %v1302 = vpop.f32.mrb[0].mxu0
  %v1303 = vadd.f32 0.0, %v1302
  %v1304 = vpop.f32.mrb[0].mxu0
  %1305 = vmatprep.mubr.bf16.mxu0 0
  %1306 = vmatmul.mubr.bf16.gmra.mrb[0].mxu0 %v1247
  %v1307 = vpop.f32.mrb[0].mxu0
  %v1308 = vadd.f32 0.0, %v1307
  %v1309 = vpop.f32.mrb[0].mxu0
  %v1310 = vpop.f32.mrb[0].mxu0
  %v1311 = vadd.f32 0.0, %v1310
  %v1312 = vpop.f32.mrb[0].mxu0
  %1313 = vdwg.mxu0
  %v1314 = vpack.c.bf16 %v1287, %v1284
  %v1315 = vpack.c.bf16 %v1295, %v1292
  %v1316 = vpack.c.bf16 %v1303, %v1300
  %v1317 = vpack.c.bf16 %v1311, %v1308
  %v1319 = vsel %vm221, %v1314, 0
  %v1322 = vsel %vm221, %v1315, 0
  %v1325 = vsel %vm221, %v1316, 0
  %v1328 = vsel %vm221, %v1317, 0
  %v1331 = vsel %vm847, %v75, 0
  %1333 = vmatprep.subr.bf16.mxu0 0
  %1334 = vmatpush1.bf16.msra.mxu0 %v1331
  %1335 = vmatprep.subr.bf16.mxu0 0
  %1336 = vmatpush1.bf16.msra.mxu0 0
  %1337 = vmatprep.subr.bf16.mxu0 0
  %1338 = vmatpush1.bf16.msra.mxu0 0
  %1339 = vmatprep.subr.bf16.mxu0 0
  %1340 = vmatpush1.bf16.msra.mxu0 0
  %1341 = vmatprep.subr.bf16.mxu0 0
  %1342 = vmatpush1.bf16.msra.mxu0 0
  %1343 = vmatprep.subr.bf16.mxu0 0
  %1344 = vmatpush1.bf16.msra.mxu0 0
  %1345 = vmatprep.subr.bf16.mxu0 0
  %1346 = vmatpush1.bf16.msra.mxu0 0
  %1347 = vmatprep.subr.bf16.mxu0 0
  %1348 = vmatpush1.bf16.msra.mxu0 0
  %1349 = vmatprep.subr.bf16.mxu0 0
  %1350 = vmatpush1.bf16.msra.mxu0 0
  %1351 = vmatprep.subr.bf16.mxu0 0
  %1352 = vmatpush1.bf16.msra.mxu0 0
  %1353 = vmatprep.subr.bf16.mxu0 0
  %1354 = vmatpush1.bf16.msra.mxu0 0
  %1355 = vmatprep.subr.bf16.mxu0 0
  %1356 = vmatpush1.bf16.msra.mxu0 0
  %1357 = vmatprep.subr.bf16.mxu0 0
  %1358 = vmatpush1.bf16.msra.mxu0 0
  %1359 = vmatprep.subr.bf16.mxu0 0
  %1360 = vmatpush1.bf16.msra.mxu0 0
  %1361 = vmatprep.subr.bf16.mxu0 0
  %1362 = vmatpush1.bf16.msra.mxu0 0
  %1363 = vmatprep.subr.bf16.mxu0 0
  %1364 = vmatpush1.bf16.msra.mxu0 0
  %1365 = vmatprep.mubr.bf16.mxu0 0
  %1366 = vmatmul.mubr.bf16.gmra.mrb[0].mxu0 %v1319
  %v1367 = vpop.f32.mrb[0].mxu0
  %v1368 = vadd.f32 0.0, %v1367
  %v1369 = vpop.f32.mrb[0].mxu0
  %v1370 = vpop.f32.mrb[0].mxu0
  %v1371 = vadd.f32 0.0, %v1370
  %v1372 = vpop.f32.mrb[0].mxu0
  %1373 = vmatprep.mubr.bf16.mxu0 0
  %1374 = vmatmul.mubr.bf16.gmra.mrb[0].mxu0 %v1322
  %v1375 = vpop.f32.mrb[0].mxu0
  %v1376 = vadd.f32 0.0, %v1375
  %v1377 = vpop.f32.mrb[0].mxu0
  %v1378 = vpop.f32.mrb[0].mxu0
  %v1379 = vadd.f32 0.0, %v1378
  %v1380 = vpop.f32.mrb[0].mxu0
  %1381 = vmatprep.mubr.bf16.mxu0 0
  %1382 = vmatmul.mubr.bf16.gmra.mrb[0].mxu0 %v1325
  %v1383 = vpop.f32.mrb[0].mxu0
  %v1384 = vadd.f32 0.0, %v1383
  %v1385 = vpop.f32.mrb[0].mxu0
  %v1386 = vpop.f32.mrb[0].mxu0
  %v1387 = vadd.f32 0.0, %v1386
  %v1388 = vpop.f32.mrb[0].mxu0
  %1389 = vmatprep.mubr.bf16.mxu0 0
  %1390 = vmatmul.mubr.bf16.gmra.mrb[0].mxu0 %v1328
  %v1391 = vpop.f32.mrb[0].mxu0
  %v1392 = vadd.f32 0.0, %v1391
  %v1393 = vpop.f32.mrb[0].mxu0
  %v1394 = vpop.f32.mrb[0].mxu0
  %v1395 = vadd.f32 0.0, %v1394
  %v1396 = vpop.f32.mrb[0].mxu0
  %1397 = vdwg.mxu0
  %v1398 = vadd.f32 %v966, %v1368
  %v1399 = vadd.f32 %v969, %v1371
  %v1400 = vadd.f32 %v974, %v1376
  %v1401 = vadd.f32 %v977, %v1379
  %v1402 = vadd.f32 %v982, %v1384
  %v1403 = vadd.f32 %v985, %v1387
  %v1404 = vadd.f32 %v990, %v1392
  %v1405 = vadd.f32 %v993, %v1395
  %v1406 = vld [vmem:[#allocation2] sm:$0xff]
  %v1407 = vld [vmem:[#allocation2 + $0x8] sm:$0xff]
  %v1408 = vld [vmem:[#allocation2 + $0x10] sm:$0xff]
  %v1409 = vld [vmem:[#allocation2 + $0x18] sm:$0xff]
  %v1410 = vld [vmem:[#allocation2 + $0x20] sm:$0xff]
  %v1411 = vld [vmem:[#allocation2 + $0x28] sm:$0xff]
  %v1412 = vld [vmem:[#allocation2 + $0x30] sm:$0xff]
  %v1413 = vld [vmem:[#allocation2 + $0x38] sm:$0xff]
  %v1414 = vpack.c.bf16 %v1407, %v1406
  %v1415 = vpack.c.bf16 %v1409, %v1408
  %v1416 = vpack.c.bf16 %v1411, %v1410
  %v1417 = vpack.c.bf16 %v1413, %v1412
  %1422 = vrot.lane.b32.xlu0 %v1414, 104
  %v1423 = vpop.permute.xlu0 %1422
  %1424 = vrot.lane.b32.xlu0 %v1415, 104
  %v1425 = vpop.permute.xlu0 %1424
  %1426 = vrot.lane.b32.xlu0 %v1416, 104
  %v1427 = vpop.permute.xlu0 %1426
  %1428 = vrot.lane.b32.xlu0 %v1417, 104
  %v1429 = vpop.permute.xlu0 %1428
  %1430 = vrot.lane.b32.xlu0 %v1414, 72
  %v1431 = vpop.permute.xlu0 %1430
  %1432 = vrot.lane.b32.xlu0 %v1415, 72
  %v1433 = vpop.permute.xlu0 %1432
  %1434 = vrot.lane.b32.xlu0 %v1416, 72
  %v1435 = vpop.permute.xlu0 %1434
  %1436 = vrot.lane.b32.xlu0 %v1417, 72
  %v1437 = vpop.permute.xlu0 %1436
  %v1439 = vsel %vm221, %v1423, 0
  %v1442 = vsel %vm221, %v1425, 0
  %v1445 = vsel %vm221, %v1427, 0
  %v1448 = vsel %vm221, %v1429, 0
  %v1451 = vsel %vm221, %v1431, 0
  %v1454 = vsel %vm221, %v1433, 0
  %v1457 = vsel %vm221, %v1435, 0
  %v1460 = vsel %vm221, %v1437, 0
  %1462 = vmatprep.subr.bf16.mxu0 0
  %1463 = vmatpush1.bf16.xpose.msra.mxu0 %v1451
  %1464 = vmatprep.subr.bf16.mxu0 0
  %1465 = vmatpush1.bf16.xpose.msra.mxu0 %v1454
  %1466 = vmatprep.subr.bf16.mxu0 0
  %1467 = vmatpush1.bf16.xpose.msra.mxu0 %v1457
  %1468 = vmatprep.subr.bf16.mxu0 0
  %1469 = vmatpush1.bf16.xpose.msra.mxu0 %v1460
  %1470 = vmatprep.subr.bf16.mxu0 0
  %1471 = vmatpush1.bf16.xpose.msra.mxu0 0
  %1472 = vmatprep.subr.bf16.mxu0 0
  %1473 = vmatpush1.bf16.xpose.msra.mxu0 0
  %1474 = vmatprep.subr.bf16.mxu0 0
  %1475 = vmatpush1.bf16.xpose.msra.mxu0 0
  %1476 = vmatprep.subr.bf16.mxu0 0
  %1477 = vmatpush1.bf16.xpose.msra.mxu0 0
  %1478 = vmatprep.subr.bf16.mxu0 0
  %1479 = vmatpush1.bf16.xpose.msra.mxu0 0
  %1480 = vmatprep.subr.bf16.mxu0 0
  %1481 = vmatpush1.bf16.xpose.msra.mxu0 0
  %1482 = vmatprep.subr.bf16.mxu0 0
  %1483 = vmatpush1.bf16.xpose.msra.mxu0 0
  %1484 = vmatprep.subr.bf16.mxu0 0
  %1485 = vmatpush1.bf16.xpose.msra.mxu0 0
  %1486 = vmatprep.subr.bf16.mxu0 0
  %1487 = vmatpush1.bf16.xpose.msra.mxu0 0
  %1488 = vmatprep.subr.bf16.mxu0 0
  %1489 = vmatpush1.bf16.xpose.msra.mxu0 0
  %1490 = vmatprep.subr.bf16.mxu0 0
  %1491 = vmatpush1.bf16.xpose.msra.mxu0 0
  %1492 = vmatprep.subr.bf16.mxu0 0
  %1493 = vmatpush1.bf16.xpose.msra.mxu0 0
  %1494 = vmatprep.mubr.bf16.mxu0 0
  %1495 = vmatmul.mubr.bf16.gmra.mrb[0].mxu0 %v1439
  %v1496 = vpop.f32.mrb[0].mxu0
  %v1497 = vadd.f32 0.0, %v1496
  %v1498 = vpop.f32.mrb[0].mxu0
  %v1499 = vpop.f32.mrb[0].mxu0
  %v1500 = vadd.f32 0.0, %v1499
  %v1501 = vpop.f32.mrb[0].mxu0
  %1502 = vmatprep.mubr.bf16.mxu0 0
  %1503 = vmatmul.mubr.bf16.gmra.mrb[0].mxu0 %v1442
  %v1504 = vpop.f32.mrb[0].mxu0
  %v1505 = vadd.f32 0.0, %v1504
  %v1506 = vpop.f32.mrb[0].mxu0
  %v1507 = vpop.f32.mrb[0].mxu0
  %v1508 = vadd.f32 0.0, %v1507
  %v1509 = vpop.f32.mrb[0].mxu0
  %1510 = vmatprep.mubr.bf16.mxu0 0
  %1511 = vmatmul.mubr.bf16.gmra.mrb[0].mxu0 %v1445
  %v1512 = vpop.f32.mrb[0].mxu0
  %v1513 = vadd.f32 0.0, %v1512
  %v1514 = vpop.f32.mrb[0].mxu0
  %v1515 = vpop.f32.mrb[0].mxu0
  %v1516 = vadd.f32 0.0, %v1515
  %v1517 = vpop.f32.mrb[0].mxu0
  %1518 = vmatprep.mubr.bf16.mxu0 0
  %1519 = vmatmul.mubr.bf16.gmra.mrb[0].mxu0 %v1448
  %v1520 = vpop.f32.mrb[0].mxu0
  %v1521 = vadd.f32 0.0, %v1520
  %v1522 = vpop.f32.mrb[0].mxu0
  %v1523 = vpop.f32.mrb[0].mxu0
  %v1524 = vadd.f32 0.0, %v1523
  %v1525 = vpop.f32.mrb[0].mxu0
  %1526 = vdwg.mxu0
  %v1527 = vmul.f32 %v1497, 0.35355338
  %v1528 = vmul.f32 %v1500, 0.35355338
  %v1529 = vmul.f32 %v1505, 0.35355338
  %v1530 = vmul.f32 %v1508, 0.35355338
  %v1531 = vmul.f32 %v1513, 0.35355338
  %v1532 = vmul.f32 %v1516, 0.35355338
  %v1533 = vmul.f32 %v1521, 0.35355338
  %v1534 = vmul.f32 %v1524, 0.35355338
  %v1535 = vadd.f32 %v1527, %v61
  %v1536 = vadd.f32 %v1528, %v62
  %v1537 = vadd.f32 %v1529, %v63
  %v1538 = vadd.f32 %v1530, %v64
  %v1539 = vadd.f32 %v1531, %v65
  %v1540 = vadd.f32 %v1532, %v66
  %v1541 = vadd.f32 %v1533, %v67
  %v1542 = vadd.f32 %v1534, %v68
  %v1543 = vsel %vm327, %v1535, -inf
  %1544 = vmax.xlane.f32.xlu0 %v1543
  %v1545 = vpop.xlane.xlu0 %1544
  %v1546 = vsel %vm327, %v1536, -inf
  %1547 = vmax.xlane.f32.xlu0 %v1546
  %v1548 = vpop.xlane.xlu0 %1547
  %v1549 = vsel %vm327, %v1537, -inf
  %1550 = vmax.xlane.f32.xlu0 %v1549
  %v1551 = vpop.xlane.xlu0 %1550
  %v1552 = vsel %vm327, %v1538, -inf
  %1553 = vmax.xlane.f32.xlu0 %v1552
  %v1554 = vpop.xlane.xlu0 %1553
  %v1555 = vsel %vm327, %v1539, -inf
  %1556 = vmax.xlane.f32.xlu0 %v1555
  %v1557 = vpop.xlane.xlu0 %1556
  %v1558 = vsel %vm327, %v1540, -inf
  %1559 = vmax.xlane.f32.xlu0 %v1558
  %v1560 = vpop.xlane.xlu0 %1559
  %v1561 = vsel %vm327, %v1541, -inf
  %1562 = vmax.xlane.f32.xlu0 %v1561
  %v1563 = vpop.xlane.xlu0 %1562
  %v1564 = vsel %vm327, %v1542, -inf
  %1565 = vmax.xlane.f32.xlu0 %v1564
  %v1566 = vpop.xlane.xlu0 %1565
  %v1567 = vsub.f32 %v1535, %v1545
  %v1568 = vsub.f32 %v1536, %v1548
  %v1569 = vsub.f32 %v1537, %v1551
  %v1570 = vsub.f32 %v1538, %v1554
  %v1571 = vsub.f32 %v1539, %v1557
  %v1572 = vsub.f32 %v1540, %v1560
  %v1573 = vsub.f32 %v1541, %v1563
  %v1574 = vsub.f32 %v1542, %v1566
  %v1575 = vmul.f32 %v1567, 1.442695
  %v1576 = vpow.pop %v1575
  %v1577 = vmul.f32 %v1568, 1.442695
  %v1578 = vpow.pop %v1577
  %v1579 = vmul.f32 %v1569, 1.442695
  %v1580 = vpow.pop %v1579
  %v1581 = vmul.f32 %v1570, 1.442695
  %v1582 = vpow.pop %v1581
  %v1583 = vmul.f32 %v1571, 1.442695
  %v1584 = vpow.pop %v1583
  %v1585 = vmul.f32 %v1572, 1.442695
  %v1586 = vpow.pop %v1585
  %v1587 = vmul.f32 %v1573, 1.442695
  %v1588 = vpow.pop %v1587
  %v1589 = vmul.f32 %v1574, 1.442695
  %v1590 = vpow.pop %v1589
  %v1591 = vsel %vm327, %v1576, 0.0
  %1592 = vadd.xlane.f32.xlu0 %v1591
  %v1593 = vpop.xlane.xlu0 %1592
  %v1594 = vsel %vm327, %v1578, 0.0
  %1595 = vadd.xlane.f32.xlu0 %v1594
  %v1596 = vpop.xlane.xlu0 %1595
  %v1597 = vsel %vm327, %v1580, 0.0
  %1598 = vadd.xlane.f32.xlu0 %v1597
  %v1599 = vpop.xlane.xlu0 %1598
  %v1600 = vsel %vm327, %v1582, 0.0
  %1601 = vadd.xlane.f32.xlu0 %v1600
  %v1602 = vpop.xlane.xlu0 %1601
  %v1603 = vsel %vm327, %v1584, 0.0
  %1604 = vadd.xlane.f32.xlu0 %v1603
  %v1605 = vpop.xlane.xlu0 %1604
  %v1606 = vsel %vm327, %v1586, 0.0
  %1607 = vadd.xlane.f32.xlu0 %v1606
  %v1608 = vpop.xlane.xlu0 %1607
  %v1609 = vsel %vm327, %v1588, 0.0
  %1610 = vadd.xlane.f32.xlu0 %v1609
  %v1611 = vpop.xlane.xlu0 %1610
  %v1612 = vsel %vm327, %v1590, 0.0
  %1613 = vadd.xlane.f32.xlu0 %v1612
  %v1614 = vpop.xlane.xlu0 %1613
  %v1615 = vrcp.pop %v1593
  %v1616 = vmul.f32 %v1576, %v1615
  %v1617 = vrcp.pop %v1596
  %v1618 = vmul.f32 %v1578, %v1617
  %v1619 = vrcp.pop %v1599
  %v1620 = vmul.f32 %v1580, %v1619
  %v1621 = vrcp.pop %v1602
  %v1622 = vmul.f32 %v1582, %v1621
  %v1623 = vrcp.pop %v1605
  %v1624 = vmul.f32 %v1584, %v1623
  %v1625 = vrcp.pop %v1608
  %v1626 = vmul.f32 %v1586, %v1625
  %v1627 = vrcp.pop %v1611
  %v1628 = vmul.f32 %v1588, %v1627
  %v1629 = vrcp.pop %v1614
  %v1630 = vmul.f32 %v1590, %v1629
  %v1631 = vpack.c.bf16 %v1618, %v1616
  %v1632 = vpack.c.bf16 %v1622, %v1620
  %v1633 = vpack.c.bf16 %v1626, %v1624
  %v1634 = vpack.c.bf16 %v1630, %v1628
  %1635 = vrot.lane.b32.xlu0 %v1414, 40
  %v1636 = vpop.permute.xlu0 %1635
  %1637 = vrot.lane.b32.xlu0 %v1415, 40
  %v1638 = vpop.permute.xlu0 %1637
  %1639 = vrot.lane.b32.xlu0 %v1416, 40
  %v1640 = vpop.permute.xlu0 %1639
  %1641 = vrot.lane.b32.xlu0 %v1417, 40
  %v1642 = vpop.permute.xlu0 %1641
  %v1648 = vsel %vm327, %v1631, 0
  %v1651 = vsel %vm327, %v1632, 0
  %v1654 = vsel %vm327, %v1633, 0
  %v1657 = vsel %vm327, %v1634, 0
  %1659 = vmatprep.subr.bf16.mxu0 0
  %1660 = vmatpush1.bf16.msra.mxu0 %v1636
  %1661 = vmatprep.subr.bf16.mxu0 0
  %1662 = vmatpush1.bf16.msra.mxu0 %v1638
  %1663 = vmatprep.subr.bf16.mxu0 0
  %1664 = vmatpush1.bf16.msra.mxu0 %v1640
  %1665 = vmatprep.subr.bf16.mxu0 0
  %1666 = vmatpush1.bf16.msra.mxu0 %v1642
  %1667 = vmatprep.subr.bf16.mxu0 0
  %1668 = vmatpush1.bf16.msra.mxu0 0
  %1669 = vmatprep.subr.bf16.mxu0 0
  %1670 = vmatpush1.bf16.msra.mxu0 0
  %1671 = vmatprep.subr.bf16.mxu0 0
  %1672 = vmatpush1.bf16.msra.mxu0 0
  %1673 = vmatprep.subr.bf16.mxu0 0
  %1674 = vmatpush1.bf16.msra.mxu0 0
  %1675 = vmatprep.subr.bf16.mxu0 0
  %1676 = vmatpush1.bf16.msra.mxu0 0
  %1677 = vmatprep.subr.bf16.mxu0 0
  %1678 = vmatpush1.bf16.msra.mxu0 0
  %1679 = vmatprep.subr.bf16.mxu0 0
  %1680 = vmatpush1.bf16.msra.mxu0 0
  %1681 = vmatprep.subr.bf16.mxu0 0
  %1682 = vmatpush1.bf16.msra.mxu0 0
  %1683 = vmatprep.subr.bf16.mxu0 0
  %1684 = vmatpush1.bf16.msra.mxu0 0
  %1685 = vmatprep.subr.bf16.mxu0 0
  %1686 = vmatpush1.bf16.msra.mxu0 0
  %1687 = vmatprep.subr.bf16.mxu0 0
  %1688 = vmatpush1.bf16.msra.mxu0 0
  %1689 = vmatprep.subr.bf16.mxu0 0
  %1690 = vmatpush1.bf16.msra.mxu0 0
  %1691 = vmatprep.mubr.bf16.mxu0 0
  %1692 = vmatmul.mubr.bf16.gmra.mrb[0].mxu0 %v1648
  %v1693 = vpop.f32.mrb[0].mxu0
  %v1694 = vadd.f32 0.0, %v1693
  %v1695 = vpop.f32.mrb[0].mxu0
  %v1696 = vpop.f32.mrb[0].mxu0
  %v1697 = vadd.f32 0.0, %v1696
  %v1698 = vpop.f32.mrb[0].mxu0
  %1699 = vmatprep.mubr.bf16.mxu0 0
  %1700 = vmatmul.mubr.bf16.gmra.mrb[0].mxu0 %v1651
  %v1701 = vpop.f32.mrb[0].mxu0
  %v1702 = vadd.f32 0.0, %v1701
  %v1703 = vpop.f32.mrb[0].mxu0
  %v1704 = vpop.f32.mrb[0].mxu0
  %v1705 = vadd.f32 0.0, %v1704
  %v1706 = vpop.f32.mrb[0].mxu0
  %1707 = vmatprep.mubr.bf16.mxu0 0
  %1708 = vmatmul.mubr.bf16.gmra.mrb[0].mxu0 %v1654
  %v1709 = vpop.f32.mrb[0].mxu0
  %v1710 = vadd.f32 0.0, %v1709
  %v1711 = vpop.f32.mrb[0].mxu0
  %v1712 = vpop.f32.mrb[0].mxu0
  %v1713 = vadd.f32 0.0, %v1712
  %v1714 = vpop.f32.mrb[0].mxu0
  %1715 = vmatprep.mubr.bf16.mxu0 0
  %1716 = vmatmul.mubr.bf16.gmra.mrb[0].mxu0 %v1657
  %v1717 = vpop.f32.mrb[0].mxu0
  %v1718 = vadd.f32 0.0, %v1717
  %v1719 = vpop.f32.mrb[0].mxu0
  %v1720 = vpop.f32.mrb[0].mxu0
  %v1721 = vadd.f32 0.0, %v1720
  %v1722 = vpop.f32.mrb[0].mxu0
  %1723 = vdwg.mxu0
  %v1724 = vpack.c.bf16 %v1697, %v1694
  %v1725 = vpack.c.bf16 %v1705, %v1702
  %v1726 = vpack.c.bf16 %v1713, %v1710
  %v1727 = vpack.c.bf16 %v1721, %v1718
  %v1729 = vsel %vm221, %v1724, 0
  %v1732 = vsel %vm221, %v1725, 0
  %v1735 = vsel %vm221, %v1726, 0
  %v1738 = vsel %vm221, %v1727, 0
  %v1741 = vsel %vm847, %v76, 0
  %1743 = vmatprep.subr.bf16.mxu0 0
  %1744 = vmatpush1.bf16.msra.mxu0 %v1741
  %1745 = vmatprep.subr.bf16.mxu0 0
  %1746 = vmatpush1.bf16.msra.mxu0 0
  %1747 = vmatprep.subr.bf16.mxu0 0
  %1748 = vmatpush1.bf16.msra.mxu0 0
  %1749 = vmatprep.subr.bf16.mxu0 0
  %1750 = vmatpush1.bf16.msra.mxu0 0
  %1751 = vmatprep.subr.bf16.mxu0 0
  %1752 = vmatpush1.bf16.msra.mxu0 0
  %1753 = vmatprep.subr.bf16.mxu0 0
  %1754 = vmatpush1.bf16.msra.mxu0 0
  %1755 = vmatprep.subr.bf16.mxu0 0
  %1756 = vmatpush1.bf16.msra.mxu0 0
  %1757 = vmatprep.subr.bf16.mxu0 0
  %1758 = vmatpush1.bf16.msra.mxu0 0
  %1759 = vmatprep.subr.bf16.mxu0 0
  %1760 = vmatpush1.bf16.msra.mxu0 0
  %1761 = vmatprep.subr.bf16.mxu0 0
  %1762 = vmatpush1.bf16.msra.mxu0 0
  %1763 = vmatprep.subr.bf16.mxu0 0
  %1764 = vmatpush1.bf16.msra.mxu0 0
  %1765 = vmatprep.subr.bf16.mxu0 0
  %1766 = vmatpush1.bf16.msra.mxu0 0
  %1767 = vmatprep.subr.bf16.mxu0 0
  %1768 = vmatpush1.bf16.msra.mxu0 0
  %1769 = vmatprep.subr.bf16.mxu0 0
  %1770 = vmatpush1.bf16.msra.mxu0 0
  %1771 = vmatprep.subr.bf16.mxu0 0
  %1772 = vmatpush1.bf16.msra.mxu0 0
  %1773 = vmatprep.subr.bf16.mxu0 0
  %1774 = vmatpush1.bf16.msra.mxu0 0
  %1775 = vmatprep.mubr.bf16.mxu0 0
  %1776 = vmatmul.mubr.bf16.gmra.mrb[0].mxu0 %v1729
  %v1777 = vpop.f32.mrb[0].mxu0
  %v1778 = vadd.f32 0.0, %v1777
  %v1779 = vpop.f32.mrb[0].mxu0
  %v1780 = vpop.f32.mrb[0].mxu0
  %v1781 = vadd.f32 0.0, %v1780
  %v1782 = vpop.f32.mrb[0].mxu0
  %1783 = vmatprep.mubr.bf16.mxu0 0
  %1784 = vmatmul.mubr.bf16.gmra.mrb[0].mxu0 %v1732
  %v1785 = vpop.f32.mrb[0].mxu0
  %v1786 = vadd.f32 0.0, %v1785
  %v1787 = vpop.f32.mrb[0].mxu0
  %v1788 = vpop.f32.mrb[0].mxu0
  %v1789 = vadd.f32 0.0, %v1788
  %v1790 = vpop.f32.mrb[0].mxu0
  %1791 = vmatprep.mubr.bf16.mxu0 0
  %1792 = vmatmul.mubr.bf16.gmra.mrb[0].mxu0 %v1735
  %v1793 = vpop.f32.mrb[0].mxu0
  %v1794 = vadd.f32 0.0, %v1793
  %v1795 = vpop.f32.mrb[0].mxu0
  %v1796 = vpop.f32.mrb[0].mxu0
  %v1797 = vadd.f32 0.0, %v1796
  %v1798 = vpop.f32.mrb[0].mxu0
  %1799 = vmatprep.mubr.bf16.mxu0 0
  %1800 = vmatmul.mubr.bf16.gmra.mrb[0].mxu0 %v1738
  %v1801 = vpop.f32.mrb[0].mxu0
  %v1802 = vadd.f32 0.0, %v1801
  %v1803 = vpop.f32.mrb[0].mxu0
  %v1804 = vpop.f32.mrb[0].mxu0
  %v1805 = vadd.f32 0.0, %v1804
  %v1806 = vpop.f32.mrb[0].mxu0
  %1807 = vdwg.mxu0
  %v1808 = vadd.f32 %v1398, %v1778
  %v1809 = vadd.f32 %v1399, %v1781
  %v1810 = vadd.f32 %v1400, %v1786
  %v1811 = vadd.f32 %v1401, %v1789
  %v1812 = vadd.f32 %v1402, %v1794
  %v1813 = vadd.f32 %v1403, %v1797
  %v1814 = vadd.f32 %v1404, %v1802
  %v1815 = vadd.f32 %v1405, %v1805
  %v1816 = vlaneseq
  %v1817 = vshrl.u32 %v1816, 7
  %v1818 = vsub.s32 1, %v1817
  %v1819 = vrot.slane %v89, %v1818
  %v1820 = vadd.f32 %v1808, %v1819
  %v1821 = vadd.f32 %v1809, %v1819
  %v1822 = vadd.f32 %v1810, %v1819
  %v1823 = vadd.f32 %v1811, %v1819
  %v1824 = vadd.f32 %v1812, %v1819
  %v1825 = vadd.f32 %v1813, %v1819
  %v1826 = vadd.f32 %v1814, %v1819
  %v1827 = vadd.f32 %v1815, %v1819
  %v1828 = vadd.f32 %v1820, %v36
  %v1829 = vadd.f32 %v1821, %v37
  %v1830 = vadd.f32 %v1822, %v38
  %v1831 = vadd.f32 %v1823, %v39
  %v1832 = vadd.f32 %v1824, %v40
  %v1833 = vadd.f32 %v1825, %v41
  %v1834 = vadd.f32 %v1826, %v42
  %v1835 = vadd.f32 %v1827, %v43
  %v1836 = vsel %vm110, %v1828, 0.0
  %1837 = vadd.xlane.f32.xlu0 %v1836
  %v1838 = vpop.xlane.xlu0 %1837
  %v1839 = vsel %vm110, %v1829, 0.0
  %1840 = vadd.xlane.f32.xlu0 %v1839
  %v1841 = vpop.xlane.xlu0 %1840
  %v1842 = vsel %vm110, %v1830, 0.0
  %1843 = vadd.xlane.f32.xlu0 %v1842
  %v1844 = vpop.xlane.xlu0 %1843
  %v1845 = vsel %vm110, %v1831, 0.0
  %1846 = vadd.xlane.f32.xlu0 %v1845
  %v1847 = vpop.xlane.xlu0 %1846
  %v1848 = vsel %vm110, %v1832, 0.0
  %1849 = vadd.xlane.f32.xlu0 %v1848
  %v1850 = vpop.xlane.xlu0 %1849
  %v1851 = vsel %vm110, %v1833, 0.0
  %1852 = vadd.xlane.f32.xlu0 %v1851
  %v1853 = vpop.xlane.xlu0 %1852
  %v1854 = vsel %vm110, %v1834, 0.0
  %1855 = vadd.xlane.f32.xlu0 %v1854
  %v1856 = vpop.xlane.xlu0 %1855
  %v1857 = vsel %vm110, %v1835, 0.0
  %1858 = vadd.xlane.f32.xlu0 %v1857
  %v1859 = vpop.xlane.xlu0 %1858
  %v1860 = vrcp.pop 32.0
  %v1861 = vmul.f32 %v1838, %v1860
  %v1862 = vmul.f32 %v1841, %v1860
  %v1863 = vmul.f32 %v1844, %v1860
  %v1864 = vmul.f32 %v1847, %v1860
  %v1865 = vmul.f32 %v1850, %v1860
  %v1866 = vmul.f32 %v1853, %v1860
  %v1867 = vmul.f32 %v1856, %v1860
  %v1868 = vmul.f32 %v1859, %v1860
  %v1869 = vsub.f32 %v1828, %v1861
  %v1870 = vsub.f32 %v1829, %v1862
  %v1871 = vsub.f32 %v1830, %v1863
  %v1872 = vsub.f32 %v1831, %v1864
  %v1873 = vsub.f32 %v1832, %v1865
  %v1874 = vsub.f32 %v1833, %v1866
  %v1875 = vsub.f32 %v1834, %v1867
  %v1876 = vsub.f32 %v1835, %v1868
  %v1877 = vmul.f32 %v1869, %v1869
  %v1878 = vmul.f32 %v1870, %v1870
  %v1879 = vmul.f32 %v1871, %v1871
  %v1880 = vmul.f32 %v1872, %v1872
  %v1881 = vmul.f32 %v1873, %v1873
  %v1882 = vmul.f32 %v1874, %v1874
  %v1883 = vmul.f32 %v1875, %v1875
  %v1884 = vmul.f32 %v1876, %v1876
  %v1885 = vsel %vm110, %v1877, 0.0
  %1886 = vadd.xlane.f32.xlu0 %v1885
  %v1887 = vpop.xlane.xlu0 %1886
  %v1888 = vsel %vm110, %v1878, 0.0
  %1889 = vadd.xlane.f32.xlu0 %v1888
  %v1890 = vpop.xlane.xlu0 %1889
  %v1891 = vsel %vm110, %v1879, 0.0
  %1892 = vadd.xlane.f32.xlu0 %v1891
  %v1893 = vpop.xlane.xlu0 %1892
  %v1894 = vsel %vm110, %v1880, 0.0
  %1895 = vadd.xlane.f32.xlu0 %v1894
  %v1896 = vpop.xlane.xlu0 %1895
  %v1897 = vsel %vm110, %v1881, 0.0
  %1898 = vadd.xlane.f32.xlu0 %v1897
  %v1899 = vpop.xlane.xlu0 %1898
  %v1900 = vsel %vm110, %v1882, 0.0
  %1901 = vadd.xlane.f32.xlu0 %v1900
  %v1902 = vpop.xlane.xlu0 %1901
  %v1903 = vsel %vm110, %v1883, 0.0
  %1904 = vadd.xlane.f32.xlu0 %v1903
  %v1905 = vpop.xlane.xlu0 %1904
  %v1906 = vsel %vm110, %v1884, 0.0
  %1907 = vadd.xlane.f32.xlu0 %v1906
  %v1908 = vpop.xlane.xlu0 %1907
  %v1909 = vmul.f32 %v1887, %v1860
  %v1910 = vmul.f32 %v1890, %v1860
  %v1911 = vmul.f32 %v1893, %v1860
  %v1912 = vmul.f32 %v1896, %v1860
  %v1913 = vmul.f32 %v1899, %v1860
  %v1914 = vmul.f32 %v1902, %v1860
  %v1915 = vmul.f32 %v1905, %v1860
  %v1916 = vmul.f32 %v1908, %v1860
  %v1917 = vadd.f32 %v1909, 1e-12
  %v1918 = vadd.f32 %v1910, 1e-12
  %v1919 = vadd.f32 %v1911, 1e-12
  %v1920 = vadd.f32 %v1912, 1e-12
  %v1921 = vadd.f32 %v1913, 1e-12
  %v1922 = vadd.f32 %v1914, 1e-12
  %v1923 = vadd.f32 %v1915, 1e-12
  %v1924 = vadd.f32 %v1916, 1e-12
  %v1925 = vrsqrt.pop %v1917
  %v1926 = vrsqrt.pop %v1918
  %v1927 = vrsqrt.pop %v1919
  %v1928 = vrsqrt.pop %v1920
  %v1929 = vrsqrt.pop %v1921
  %v1930 = vrsqrt.pop %v1922
  %v1931 = vrsqrt.pop %v1923
  %v1932 = vrsqrt.pop %v1924
  %v1933 = vmul.f32 %v1869, %v1925
  %v1934 = vmul.f32 %v1870, %v1926
  %v1935 = vmul.f32 %v1871, %v1927
  %v1936 = vmul.f32 %v1872, %v1928
  %v1937 = vmul.f32 %v1873, %v1929
  %v1938 = vmul.f32 %v1874, %v1930
  %v1939 = vmul.f32 %v1875, %v1931
  %v1940 = vmul.f32 %v1876, %v1932
  %v1941 = vlaneseq
  %v1942 = vshrl.u32 %v1941, 7
  %v1943 = vsub.s32 2, %v1942
  %v1944 = vrot.slane %v89, %v1943
  %v1945 = vmul.f32 %v1933, %v1944
  %v1946 = vmul.f32 %v1934, %v1944
  %v1947 = vmul.f32 %v1935, %v1944
  %v1948 = vmul.f32 %v1936, %v1944
  %v1949 = vmul.f32 %v1937, %v1944
  %v1950 = vmul.f32 %v1938, %v1944
  %v1951 = vmul.f32 %v1939, %v1944
  %v1952 = vmul.f32 %v1940, %v1944
  %v1953 = vlaneseq
  %v1954 = vshrl.u32 %v1953, 7
  %v1955 = vsub.s32 3, %v1954
  %v1956 = vrot.slane %v89, %v1955
  %v1957 = vadd.f32 %v1945, %v1956
  %v1958 = vadd.f32 %v1946, %v1956
  %v1959 = vadd.f32 %v1947, %v1956
  %v1960 = vadd.f32 %v1948, %v1956
  %v1961 = vadd.f32 %v1949, %v1956
  %v1962 = vadd.f32 %v1950, %v1956
  %v1963 = vadd.f32 %v1951, %v1956
  %v1964 = vadd.f32 %v1952, %v1956
  %v1965 = vpack.c.bf16 %v1958, %v1957
  %v1966 = vpack.c.bf16 %v1960, %v1959
  %v1967 = vpack.c.bf16 %v1962, %v1961
  %v1968 = vpack.c.bf16 %v1964, %v1963
  %v1969 = vlaneseq
  %v1970 = vshrl.u32 %v1969, 7
  %v1971 = vsub.s32 4, %v1970
  %v1972 = vrot.slane %v89, %v1971
  %v1977 = vunpack.c.l.b16 %v77
  %v1978 = vunpack.c.l.b16 %v78
  %v1979 = vunpack.c.l.b16 %v79
  %v1980 = vunpack.c.l.b16 %v80
  %v1981 = vpack.c.b16 %v1978, %v1977
  %v1982 = vpack.c.b16 %v1980, %v1979
  %v1986 = vsel %vm110, %v1965, 0
  %v1989 = vsel %vm110, %v1966, 0
  %v1992 = vsel %vm110, %v1967, 0
  %v1995 = vsel %vm110, %v1968, 0
  %1997 = vmatprep.subr.bf16.mxu0 0
  %1998 = vmatpush1.bf16.msra.mxu0 %v1981
  %1999 = vmatprep.subr.bf16.mxu0 0
  %2000 = vmatpush1.bf16.msra.mxu0 %v1982
  %2001 = vmatprep.subr.bf16.mxu0 0
  %2002 = vmatpush1.bf16.msra.mxu0 0
  %2003 = vmatprep.subr.bf16.mxu0 0
  %2004 = vmatpush1.bf16.msra.mxu0 0
  %2005 = vmatprep.subr.bf16.mxu0 0
  %2006 = vmatpush1.bf16.msra.mxu0 0
  %2007 = vmatprep.subr.bf16.mxu0 0
  %2008 = vmatpush1.bf16.msra.mxu0 0
  %2009 = vmatprep.subr.bf16.mxu0 0
  %2010 = vmatpush1.bf16.msra.mxu0 0
  %2011 = vmatprep.subr.bf16.mxu0 0
  %2012 = vmatpush1.bf16.msra.mxu0 0
  %2013 = vmatprep.subr.bf16.mxu0 0
  %2014 = vmatpush1.bf16.msra.mxu0 0
  %2015 = vmatprep.subr.bf16.mxu0 0
  %2016 = vmatpush1.bf16.msra.mxu0 0
  %2017 = vmatprep.subr.bf16.mxu0 0
  %2018 = vmatpush1.bf16.msra.mxu0 0
  %2019 = vmatprep.subr.bf16.mxu0 0
  %2020 = vmatpush1.bf16.msra.mxu0 0
  %2021 = vmatprep.subr.bf16.mxu0 0
  %2022 = vmatpush1.bf16.msra.mxu0 0
  %2023 = vmatprep.subr.bf16.mxu0 0
  %2024 = vmatpush1.bf16.msra.mxu0 0
  %2025 = vmatprep.subr.bf16.mxu0 0
  %2026 = vmatpush1.bf16.msra.mxu0 0
  %2027 = vmatprep.subr.bf16.mxu0 0
  %2028 = vmatpush1.bf16.msra.mxu0 0
  %2029 = vmatprep.mubr.bf16.mxu0 0
  %2030 = vmatmul.mubr.bf16.gmra.mrb[0].mxu0 %v1986
  %v2031 = vpop.f32.mrb[0].mxu0
  %v2032 = vadd.f32 %v1972, %v2031
  %v2033 = vpop.f32.mrb[0].mxu0
  %v2034 = vpop.f32.mrb[0].mxu0
  %v2035 = vadd.f32 %v1972, %v2034
  %v2036 = vpop.f32.mrb[0].mxu0
  %2037 = vmatprep.mubr.bf16.mxu0 0
  %2038 = vmatmul.mubr.bf16.gmra.mrb[0].mxu0 %v1989
  %v2039 = vpop.f32.mrb[0].mxu0
  %v2040 = vadd.f32 %v1972, %v2039
  %v2041 = vpop.f32.mrb[0].mxu0
  %v2042 = vpop.f32.mrb[0].mxu0
  %v2043 = vadd.f32 %v1972, %v2042
  %v2044 = vpop.f32.mrb[0].mxu0
  %2045 = vmatprep.mubr.bf16.mxu0 0
  %2046 = vmatmul.mubr.bf16.gmra.mrb[0].mxu0 %v1992
  %v2047 = vpop.f32.mrb[0].mxu0
  %v2048 = vadd.f32 %v1972, %v2047
  %v2049 = vpop.f32.mrb[0].mxu0
  %v2050 = vpop.f32.mrb[0].mxu0
  %v2051 = vadd.f32 %v1972, %v2050
  %v2052 = vpop.f32.mrb[0].mxu0
  %2053 = vmatprep.mubr.bf16.mxu0 0
  %2054 = vmatmul.mubr.bf16.gmra.mrb[0].mxu0 %v1995
  %v2055 = vpop.f32.mrb[0].mxu0
  %v2056 = vadd.f32 %v1972, %v2055
  %v2057 = vpop.f32.mrb[0].mxu0
  %v2058 = vpop.f32.mrb[0].mxu0
  %v2059 = vadd.f32 %v1972, %v2058
  %v2060 = vpop.f32.mrb[0].mxu0
  %2061 = vdwg.mxu0
  %v2062 = vmul.f32 %v2032, 0.5
  %v2063 = vmul.f32 %v2035, 0.5
  %v2064 = vmul.f32 %v2040, 0.5
  %v2065 = vmul.f32 %v2043, 0.5
  %v2066 = vmul.f32 %v2048, 0.5
  %v2067 = vmul.f32 %v2051, 0.5
  %v2068 = vmul.f32 %v2056, 0.5
  %v2069 = vmul.f32 %v2059, 0.5
  %v2070 = vmul.f32 %v2032, 0.044715
  %v2071 = vmul.f32 %v2035, 0.044715
  %v2072 = vmul.f32 %v2040, 0.044715
  %v2073 = vmul.f32 %v2043, 0.044715
  %v2074 = vmul.f32 %v2048, 0.044715
  %v2075 = vmul.f32 %v2051, 0.044715
  %v2076 = vmul.f32 %v2056, 0.044715
  %v2077 = vmul.f32 %v2059, 0.044715
  %v2078 = vmul.f32 %v2070, %v2032
  %v2079 = vmul.f32 %v2071, %v2035
  %v2080 = vmul.f32 %v2072, %v2040
  %v2081 = vmul.f32 %v2073, %v2043
  %v2082 = vmul.f32 %v2074, %v2048
  %v2083 = vmul.f32 %v2075, %v2051
  %v2084 = vmul.f32 %v2076, %v2056
  %v2085 = vmul.f32 %v2077, %v2059
  %v2086 = vmul.f32 %v2078, %v2032
  %v2087 = vmul.f32 %v2079, %v2035
  %v2088 = vmul.f32 %v2080, %v2040
  %v2089 = vmul.f32 %v2081, %v2043
  %v2090 = vmul.f32 %v2082, %v2048
  %v2091 = vmul.f32 %v2083, %v2051
  %v2092 = vmul.f32 %v2084, %v2056
  %v2093 = vmul.f32 %v2085, %v2059
  %v2094 = vadd.f32 %v2032, %v2086
  %v2095 = vadd.f32 %v2035, %v2087
  %v2096 = vadd.f32 %v2040, %v2088
  %v2097 = vadd.f32 %v2043, %v2089
  %v2098 = vadd.f32 %v2048, %v2090
  %v2099 = vadd.f32 %v2051, %v2091
  %v2100 = vadd.f32 %v2056, %v2092
  %v2101 = vadd.f32 %v2059, %v2093
  %v2102 = vmul.f32 %v2094, 0.7978846
  %v2103 = vmul.f32 %v2095, 0.7978846
  %v2104 = vmul.f32 %v2096, 0.7978846
  %v2105 = vmul.f32 %v2097, 0.7978846
  %v2106 = vmul.f32 %v2098, 0.7978846
  %v2107 = vmul.f32 %v2099, 0.7978846
  %v2108 = vmul.f32 %v2100, 0.7978846
  %v2109 = vmul.f32 %v2101, 0.7978846
  %v2110 = vtanh.pop %v2102
  %v2111 = vtanh.pop %v2103
  %v2112 = vtanh.pop %v2104
  %v2113 = vtanh.pop %v2105
  %v2114 = vtanh.pop %v2106
  %v2115 = vtanh.pop %v2107
  %v2116 = vtanh.pop %v2108
  %v2117 = vtanh.pop %v2109
  %v2118 = vadd.f32 %v2110, 1.0
  %v2119 = vadd.f32 %v2111, 1.0
  %v2120 = vadd.f32 %v2112, 1.0
  %v2121 = vadd.f32 %v2113, 1.0
  %v2122 = vadd.f32 %v2114, 1.0
  %v2123 = vadd.f32 %v2115, 1.0
  %v2124 = vadd.f32 %v2116, 1.0
  %v2125 = vadd.f32 %v2117, 1.0
  %v2126 = vmul.f32 %v2062, %v2118
  %v2127 = vmul.f32 %v2063, %v2119
  %v2128 = vmul.f32 %v2064, %v2120
  %v2129 = vmul.f32 %v2065, %v2121
  %v2130 = vmul.f32 %v2066, %v2122
  %v2131 = vmul.f32 %v2067, %v2123
  %v2132 = vmul.f32 %v2068, %v2124
  %v2133 = vmul.f32 %v2069, %v2125
  %v2134 = vpack.c.bf16 %v2127, %v2126
  %v2135 = vpack.c.bf16 %v2129, %v2128
  %v2136 = vpack.c.bf16 %v2131, %v2130
  %v2137 = vpack.c.bf16 %v2133, %v2132
  %v2138 = vlaneseq
  %v2139 = vshrl.u32 %v2138, 7
  %v2140 = vsub.s32 5, %v2139
  %v2141 = vrot.slane %v89, %v2140
  %v2150 = vunpack.c.l.b16 %v81
  %v2151 = vunpack.c.l.b16 %v82
  %v2152 = vunpack.c.l.b16 %v83
  %v2153 = vunpack.c.l.b16 %v84
  %v2154 = vunpack.c.l.b16 %v85
  %v2155 = vunpack.c.l.b16 %v86
  %v2156 = vunpack.c.l.b16 %v87
  %v2157 = vunpack.c.l.b16 %v88
  %v2158 = vpack.c.b16 %v2151, %v2150
  %v2159 = vpack.c.b16 %v2153, %v2152
  %v2160 = vpack.c.b16 %v2155, %v2154
  %v2161 = vpack.c.b16 %v2157, %v2156
  %v2167 = vsel %vm327, %v2134, 0
  %v2170 = vsel %vm327, %v2135, 0
  %v2173 = vsel %vm327, %v2136, 0
  %v2176 = vsel %vm327, %v2137, 0
  %2178 = vmatprep.subr.bf16.mxu0 0
  %2179 = vmatpush1.bf16.msra.mxu0 %v2158
  %2180 = vmatprep.subr.bf16.mxu0 0
  %2181 = vmatpush1.bf16.msra.mxu0 %v2159
  %2182 = vmatprep.subr.bf16.mxu0 0
  %2183 = vmatpush1.bf16.msra.mxu0 %v2160
  %2184 = vmatprep.subr.bf16.mxu0 0
  %2185 = vmatpush1.bf16.msra.mxu0 %v2161
  %2186 = vmatprep.subr.bf16.mxu0 0
  %2187 = vmatpush1.bf16.msra.mxu0 0
  %2188 = vmatprep.subr.bf16.mxu0 0
  %2189 = vmatpush1.bf16.msra.mxu0 0
  %2190 = vmatprep.subr.bf16.mxu0 0
  %2191 = vmatpush1.bf16.msra.mxu0 0
  %2192 = vmatprep.subr.bf16.mxu0 0
  %2193 = vmatpush1.bf16.msra.mxu0 0
  %2194 = vmatprep.subr.bf16.mxu0 0
  %2195 = vmatpush1.bf16.msra.mxu0 0
  %2196 = vmatprep.subr.bf16.mxu0 0
  %2197 = vmatpush1.bf16.msra.mxu0 0
  %2198 = vmatprep.subr.bf16.mxu0 0
  %2199 = vmatpush1.bf16.msra.mxu0 0
  %2200 = vmatprep.subr.bf16.mxu0 0
  %2201 = vmatpush1.bf16.msra.mxu0 0
  %2202 = vmatprep.subr.bf16.mxu0 0
  %2203 = vmatpush1.bf16.msra.mxu0 0
  %2204 = vmatprep.subr.bf16.mxu0 0
  %2205 = vmatpush1.bf16.msra.mxu0 0
  %2206 = vmatprep.subr.bf16.mxu0 0
  %2207 = vmatpush1.bf16.msra.mxu0 0
  %2208 = vmatprep.subr.bf16.mxu0 0
  %2209 = vmatpush1.bf16.msra.mxu0 0
  %2210 = vmatprep.mubr.bf16.mxu0 0
  %2211 = vmatmul.mubr.bf16.gmra.mrb[0].mxu0 %v2167
  %v2212 = vpop.f32.mrb[0].mxu0
  %v2213 = vadd.f32 %v2141, %v2212
  %v2214 = vpop.f32.mrb[0].mxu0
  %v2215 = vpop.f32.mrb[0].mxu0
  %v2216 = vadd.f32 %v2141, %v2215
  %v2217 = vpop.f32.mrb[0].mxu0
  %2218 = vmatprep.mubr.bf16.mxu0 0
  %2219 = vmatmul.mubr.bf16.gmra.mrb[0].mxu0 %v2170
  %v2220 = vpop.f32.mrb[0].mxu0
  %v2221 = vadd.f32 %v2141, %v2220
  %v2222 = vpop.f32.mrb[0].mxu0
  %v2223 = vpop.f32.mrb[0].mxu0
  %v2224 = vadd.f32 %v2141, %v2223
  %v2225 = vpop.f32.mrb[0].mxu0
  %2226 = vmatprep.mubr.bf16.mxu0 0
  %2227 = vmatmul.mubr.bf16.gmra.mrb[0].mxu0 %v2173
  %v2228 = vpop.f32.mrb[0].mxu0
  %v2229 = vadd.f32 %v2141, %v2228
  %v2230 = vpop.f32.mrb[0].mxu0
  %v2231 = vpop.f32.mrb[0].mxu0
  %v2232 = vadd.f32 %v2141, %v2231
  %v2233 = vpop.f32.mrb[0].mxu0
  %2234 = vmatprep.mubr.bf16.mxu0 0
  %2235 = vmatmul.mubr.bf16.gmra.mrb[0].mxu0 %v2176
  %v2236 = vpop.f32.mrb[0].mxu0
  %v2237 = vadd.f32 %v2141, %v2236
  %v2238 = vpop.f32.mrb[0].mxu0
  %v2239 = vpop.f32.mrb[0].mxu0
  %v2240 = vadd.f32 %v2141, %v2239
  %v2241 = vpop.f32.mrb[0].mxu0
  %2242 = vdwg.mxu0
  %v2243 = vadd.f32 %v2213, %v1957
  %v2244 = vadd.f32 %v2216, %v1958
  %v2245 = vadd.f32 %v2221, %v1959
  %v2246 = vadd.f32 %v2224, %v1960
  %v2247 = vadd.f32 %v2229, %v1961
  %v2248 = vadd.f32 %v2232, %v1962
  %v2249 = vadd.f32 %v2237, %v1963
  %v2250 = vadd.f32 %v2240, %v1964
  %v2251 = vsel %vm110, %v2243, 0.0
  %2252 = vadd.xlane.f32.xlu0 %v2251
  %v2253 = vpop.xlane.xlu0 %2252
  %v2254 = vsel %vm110, %v2244, 0.0
  %2255 = vadd.xlane.f32.xlu0 %v2254
  %v2256 = vpop.xlane.xlu0 %2255
  %v2257 = vsel %vm110, %v2245, 0.0
  %2258 = vadd.xlane.f32.xlu0 %v2257
  %v2259 = vpop.xlane.xlu0 %2258
  %v2260 = vsel %vm110, %v2246, 0.0
  %2261 = vadd.xlane.f32.xlu0 %v2260
  %v2262 = vpop.xlane.xlu0 %2261
  %v2263 = vsel %vm110, %v2247, 0.0
  %2264 = vadd.xlane.f32.xlu0 %v2263
  %v2265 = vpop.xlane.xlu0 %2264
  %v2266 = vsel %vm110, %v2248, 0.0
  %2267 = vadd.xlane.f32.xlu0 %v2266
  %v2268 = vpop.xlane.xlu0 %2267
  %v2269 = vsel %vm110, %v2249, 0.0
  %2270 = vadd.xlane.f32.xlu0 %v2269
  %v2271 = vpop.xlane.xlu0 %2270
  %v2272 = vsel %vm110, %v2250, 0.0
  %2273 = vadd.xlane.f32.xlu0 %v2272
  %v2274 = vpop.xlane.xlu0 %2273
  %v2275 = vmul.f32 %v2253, %v1860
  %v2276 = vmul.f32 %v2256, %v1860
  %v2277 = vmul.f32 %v2259, %v1860
  %v2278 = vmul.f32 %v2262, %v1860
  %v2279 = vmul.f32 %v2265, %v1860
  %v2280 = vmul.f32 %v2268, %v1860
  %v2281 = vmul.f32 %v2271, %v1860
  %v2282 = vmul.f32 %v2274, %v1860
  %v2283 = vsub.f32 %v2243, %v2275
  %v2284 = vsub.f32 %v2244, %v2276
  %v2285 = vsub.f32 %v2245, %v2277
  %v2286 = vsub.f32 %v2246, %v2278
  %v2287 = vsub.f32 %v2247, %v2279
  %v2288 = vsub.f32 %v2248, %v2280
  %v2289 = vsub.f32 %v2249, %v2281
  %v2290 = vsub.f32 %v2250, %v2282
  %v2291 = vmul.f32 %v2283, %v2283
  %v2292 = vmul.f32 %v2284, %v2284
  %v2293 = vmul.f32 %v2285, %v2285
  %v2294 = vmul.f32 %v2286, %v2286
  %v2295 = vmul.f32 %v2287, %v2287
  %v2296 = vmul.f32 %v2288, %v2288
  %v2297 = vmul.f32 %v2289, %v2289
  %v2298 = vmul.f32 %v2290, %v2290
  %v2299 = vsel %vm110, %v2291, 0.0
  %2300 = vadd.xlane.f32.xlu0 %v2299
  %v2301 = vpop.xlane.xlu0 %2300
  %v2302 = vsel %vm110, %v2292, 0.0
  %2303 = vadd.xlane.f32.xlu0 %v2302
  %v2304 = vpop.xlane.xlu0 %2303
  %v2305 = vsel %vm110, %v2293, 0.0
  %2306 = vadd.xlane.f32.xlu0 %v2305
  %v2307 = vpop.xlane.xlu0 %2306
  %v2308 = vsel %vm110, %v2294, 0.0
  %2309 = vadd.xlane.f32.xlu0 %v2308
  %v2310 = vpop.xlane.xlu0 %2309
  %v2311 = vsel %vm110, %v2295, 0.0
  %2312 = vadd.xlane.f32.xlu0 %v2311
  %v2313 = vpop.xlane.xlu0 %2312
  %v2314 = vsel %vm110, %v2296, 0.0
  %2315 = vadd.xlane.f32.xlu0 %v2314
  %v2316 = vpop.xlane.xlu0 %2315
  %v2317 = vsel %vm110, %v2297, 0.0
  %2318 = vadd.xlane.f32.xlu0 %v2317
  %v2319 = vpop.xlane.xlu0 %2318
  %v2320 = vsel %vm110, %v2298, 0.0
  %2321 = vadd.xlane.f32.xlu0 %v2320
  %v2322 = vpop.xlane.xlu0 %2321
  %v2323 = vmul.f32 %v2301, %v1860
  %v2324 = vmul.f32 %v2304, %v1860
  %v2325 = vmul.f32 %v2307, %v1860
  %v2326 = vmul.f32 %v2310, %v1860
  %v2327 = vmul.f32 %v2313, %v1860
  %v2328 = vmul.f32 %v2316, %v1860
  %v2329 = vmul.f32 %v2319, %v1860
  %v2330 = vmul.f32 %v2322, %v1860
  %v2331 = vadd.f32 %v2323, 1e-12
  %v2332 = vadd.f32 %v2324, 1e-12
  %v2333 = vadd.f32 %v2325, 1e-12
  %v2334 = vadd.f32 %v2326, 1e-12
  %v2335 = vadd.f32 %v2327, 1e-12
  %v2336 = vadd.f32 %v2328, 1e-12
  %v2337 = vadd.f32 %v2329, 1e-12
  %v2338 = vadd.f32 %v2330, 1e-12
  %v2339 = vrsqrt.pop %v2331
  %v2340 = vrsqrt.pop %v2332
  %v2341 = vrsqrt.pop %v2333
  %v2342 = vrsqrt.pop %v2334
  %v2343 = vrsqrt.pop %v2335
  %v2344 = vrsqrt.pop %v2336
  %v2345 = vrsqrt.pop %v2337
  %v2346 = vrsqrt.pop %v2338
  %v2347 = vmul.f32 %v2283, %v2339
  %v2348 = vmul.f32 %v2284, %v2340
  %v2349 = vmul.f32 %v2285, %v2341
  %v2350 = vmul.f32 %v2286, %v2342
  %v2351 = vmul.f32 %v2287, %v2343
  %v2352 = vmul.f32 %v2288, %v2344
  %v2353 = vmul.f32 %v2289, %v2345
  %v2354 = vmul.f32 %v2290, %v2346
  %v2355 = vlaneseq
  %v2356 = vshrl.u32 %v2355, 7
  %v2357 = vsub.s32 6, %v2356
  %v2358 = vrot.slane %v89, %v2357
  %v2359 = vmul.f32 %v2347, %v2358
  %v2360 = vmul.f32 %v2348, %v2358
  %v2361 = vmul.f32 %v2349, %v2358
  %v2362 = vmul.f32 %v2350, %v2358
  %v2363 = vmul.f32 %v2351, %v2358
  %v2364 = vmul.f32 %v2352, %v2358
  %v2365 = vmul.f32 %v2353, %v2358
  %v2366 = vmul.f32 %v2354, %v2358
  %v2367 = vlaneseq
  %v2368 = vshrl.u32 %v2367, 7
  %v2369 = vsub.s32 7, %v2368
  %v2370 = vrot.slane %v89, %v2369
  %v2371 = vadd.f32 %v2359, %v2370
  %v2372 = vadd.f32 %v2360, %v2370
  %v2373 = vadd.f32 %v2361, %v2370
  %v2374 = vadd.f32 %v2362, %v2370
  %v2375 = vadd.f32 %v2363, %v2370
  %v2376 = vadd.f32 %v2364, %v2370
  %v2377 = vadd.f32 %v2365, %v2370
  %v2378 = vadd.f32 %v2366, %v2370
  %s2379 = scalar_lea.vmem %s3, 16
  %v2380 = vld [vmem:[%s2379] sm:$0xf]
  %v2381 = vld [vmem:[%s2379 + $0x4] sm:$0xf]
  %v2382 = vld [vmem:[%s2379 + $0x8] sm:$0xf]
  %v2383 = vld [vmem:[%s2379 + $0xc] sm:$0xf]
  %s2384 = scalar_lea.vmem %s4, 16
  %v2385 = vld [vmem:[%s2384] sm:$0xf]
  %v2386 = vld [vmem:[%s2384 + $0x4] sm:$0xf]
  %v2387 = vld [vmem:[%s2384 + $0x8] sm:$0xf]
  %v2388 = vld [vmem:[%s2384 + $0xc] sm:$0xf]
  %s2389 = scalar_lea.vmem %s5, 16
  %v2390 = vld [vmem:[%s2389] sm:$0xf]
  %v2391 = vld [vmem:[%s2389 + $0x4] sm:$0xf]
  %v2392 = vld [vmem:[%s2389 + $0x8] sm:$0xf]
  %v2393 = vld [vmem:[%s2389 + $0xc] sm:$0xf]
  %s2394 = scalar_lea.vmem %s6, 32
  %v2395 = vld [vmem:[%s2394] sm:$0xf]
  %v2396 = vld [vmem:[%s2394 + $0x4] sm:$0xf]
  %v2397 = vld [vmem:[%s2394 + $0x8] sm:$0xf]
  %v2398 = vld [vmem:[%s2394 + $0xc] sm:$0xf]
  %v2399 = vld [vmem:[%s2394 + $0x10] sm:$0xf]
  %v2400 = vld [vmem:[%s2394 + $0x14] sm:$0xf]
  %v2401 = vld [vmem:[%s2394 + $0x18] sm:$0xf]
  %v2402 = vld [vmem:[%s2394 + $0x1c] sm:$0xf]
  %s2403 = scalar_lea.vmem %s7, 8
  %v2404 = vld [vmem:[%s2403] sm:$0xff]
  %v2405 = vpack.c.bf16 %v2372, %v2371
  %v2406 = vpack.c.bf16 %v2374, %v2373
  %v2407 = vpack.c.bf16 %v2376, %v2375
  %v2408 = vpack.c.bf16 %v2378, %v2377
  %v2409 = vlaneseq
  %v2410 = vshrl.u32 %v2409, 7
  %v2411 = vsub.s32 0, %v2410
  %v2412 = vrot.slane %v2404, %v2411
  %v2417 = vunpack.c.l.b16 %v2380
  %v2418 = vunpack.c.l.b16 %v2381
  %v2419 = vunpack.c.l.b16 %v2382
  %v2420 = vunpack.c.l.b16 %v2383
  %v2421 = vpack.c.b16 %v2418, %v2417
  %v2422 = vpack.c.b16 %v2420, %v2419
  %v2426 = vsel %vm110, %v2405, 0
  %v2429 = vsel %vm110, %v2406, 0
  %v2432 = vsel %vm110, %v2407, 0
  %v2435 = vsel %vm110, %v2408, 0
  %2437 = vmatprep.subr.bf16.mxu0 0
  %2438 = vmatpush1.bf16.msra.mxu0 %v2421
  %2439 = vmatprep.subr.bf16.mxu0 0
  %2440 = vmatpush1.bf16.msra.mxu0 %v2422
  %2441 = vmatprep.subr.bf16.mxu0 0
  %2442 = vmatpush1.bf16.msra.mxu0 0
  %2443 = vmatprep.subr.bf16.mxu0 0
  %2444 = vmatpush1.bf16.msra.mxu0 0
  %2445 = vmatprep.subr.bf16.mxu0 0
  %2446 = vmatpush1.bf16.msra.mxu0 0
  %2447 = vmatprep.subr.bf16.mxu0 0
  %2448 = vmatpush1.bf16.msra.mxu0 0
  %2449 = vmatprep.subr.bf16.mxu0 0
  %2450 = vmatpush1.bf16.msra.mxu0 0
  %2451 = vmatprep.subr.bf16.mxu0 0
  %2452 = vmatpush1.bf16.msra.mxu0 0
  %2453 = vmatprep.subr.bf16.mxu0 0
  %2454 = vmatpush1.bf16.msra.mxu0 0
  %2455 = vmatprep.subr.bf16.mxu0 0
  %2456 = vmatpush1.bf16.msra.mxu0 0
  %2457 = vmatprep.subr.bf16.mxu0 0
  %2458 = vmatpush1.bf16.msra.mxu0 0
  %2459 = vmatprep.subr.bf16.mxu0 0
  %2460 = vmatpush1.bf16.msra.mxu0 0
  %2461 = vmatprep.subr.bf16.mxu0 0
  %2462 = vmatpush1.bf16.msra.mxu0 0
  %2463 = vmatprep.subr.bf16.mxu0 0
  %2464 = vmatpush1.bf16.msra.mxu0 0
  %2465 = vmatprep.subr.bf16.mxu0 0
  %2466 = vmatpush1.bf16.msra.mxu0 0
  %2467 = vmatprep.subr.bf16.mxu0 0
  %2468 = vmatpush1.bf16.msra.mxu0 0
  %2469 = vmatprep.mubr.bf16.mxu0 0
  %2470 = vmatmul.mubr.bf16.gmra.mrb[0].mxu0 %v2426
  %v2471 = vpop.f32.mrb[0].mxu0
  %v2472 = vadd.f32 %v2412, %v2471
  %v2473 = vpop.f32.mrb[0].mxu0
  %v2474 = vpop.f32.mrb[0].mxu0
  %v2475 = vadd.f32 %v2412, %v2474
  %v2476 = vpop.f32.mrb[0].mxu0
  %2477 = vmatprep.mubr.bf16.mxu0 0
  %2478 = vmatmul.mubr.bf16.gmra.mrb[0].mxu0 %v2429
  %v2479 = vpop.f32.mrb[0].mxu0
  %v2480 = vadd.f32 %v2412, %v2479
  %v2481 = vpop.f32.mrb[0].mxu0
  %v2482 = vpop.f32.mrb[0].mxu0
  %v2483 = vadd.f32 %v2412, %v2482
  %v2484 = vpop.f32.mrb[0].mxu0
  %2485 = vmatprep.mubr.bf16.mxu0 0
  %2486 = vmatmul.mubr.bf16.gmra.mrb[0].mxu0 %v2432
  %v2487 = vpop.f32.mrb[0].mxu0
  %v2488 = vadd.f32 %v2412, %v2487
  %v2489 = vpop.f32.mrb[0].mxu0
  %v2490 = vpop.f32.mrb[0].mxu0
  %v2491 = vadd.f32 %v2412, %v2490
  %v2492 = vpop.f32.mrb[0].mxu0
  %2493 = vmatprep.mubr.bf16.mxu0 0
  %2494 = vmatmul.mubr.bf16.gmra.mrb[0].mxu0 %v2435
  %v2495 = vpop.f32.mrb[0].mxu0
  %v2496 = vadd.f32 %v2412, %v2495
  %v2497 = vpop.f32.mrb[0].mxu0
  %v2498 = vpop.f32.mrb[0].mxu0
  %v2499 = vadd.f32 %v2412, %v2498
  %v2500 = vpop.f32.mrb[0].mxu0
  %2501 = vdwg.mxu0
  %2502 = vst.msk [vmem:[#allocation2] sm:$0xff] %vm188, %v2472
  %2503 = vst.msk [vmem:[#allocation2 + $0x8] sm:$0xff] %vm188, %v2475
  %2504 = vst.msk [vmem:[#allocation2 + $0x10] sm:$0xff] %vm188, %v2480
  %2505 = vst.msk [vmem:[#allocation2 + $0x18] sm:$0xff] %vm188, %v2483
  %2506 = vst.msk [vmem:[#allocation2 + $0x20] sm:$0xff] %vm188, %v2488
  %2507 = vst.msk [vmem:[#allocation2 + $0x28] sm:$0xff] %vm188, %v2491
  %2508 = vst.msk [vmem:[#allocation2 + $0x30] sm:$0xff] %vm188, %v2496
  %2509 = vst.msk [vmem:[#allocation2 + $0x38] sm:$0xff] %vm188, %v2499
  %v2510 = vld [vmem:[#allocation2] sm:$0xff]
  %v2511 = vld [vmem:[#allocation2 + $0x8] sm:$0xff]
  %v2512 = vld [vmem:[#allocation2 + $0x10] sm:$0xff]
  %v2513 = vld [vmem:[#allocation2 + $0x18] sm:$0xff]
  %v2514 = vld [vmem:[#allocation2 + $0x20] sm:$0xff]
  %v2515 = vld [vmem:[#allocation2 + $0x28] sm:$0xff]
  %v2516 = vld [vmem:[#allocation2 + $0x30] sm:$0xff]
  %v2517 = vld [vmem:[#allocation2 + $0x38] sm:$0xff]
  %v2518 = vpack.c.bf16 %v2511, %v2510
  %v2519 = vpack.c.bf16 %v2513, %v2512
  %v2520 = vpack.c.bf16 %v2515, %v2514
  %v2521 = vpack.c.bf16 %v2517, %v2516
  %2526 = vrot.lane.b32.xlu0 %v2518, 96
  %v2527 = vpop.permute.xlu0 %2526
  %2528 = vrot.lane.b32.xlu0 %v2519, 96
  %v2529 = vpop.permute.xlu0 %2528
  %2530 = vrot.lane.b32.xlu0 %v2520, 96
  %v2531 = vpop.permute.xlu0 %2530
  %2532 = vrot.lane.b32.xlu0 %v2521, 96
  %v2533 = vpop.permute.xlu0 %2532
  %v2535 = vsel %vm221, %v2518, 0
  %v2538 = vsel %vm221, %v2519, 0
  %v2541 = vsel %vm221, %v2520, 0
  %v2544 = vsel %vm221, %v2521, 0
  %v2547 = vsel %vm221, %v2527, 0
  %v2550 = vsel %vm221, %v2529, 0
  %v2553 = vsel %vm221, %v2531, 0
  %v2556 = vsel %vm221, %v2533, 0
  %2558 = vmatprep.subr.bf16.mxu0 0
  %2559 = vmatpush1.bf16.xpose.msra.mxu0 %v2547
  %2560 = vmatprep.subr.bf16.mxu0 0
  %2561 = vmatpush1.bf16.xpose.msra.mxu0 %v2550
  %2562 = vmatprep.subr.bf16.mxu0 0
  %2563 = vmatpush1.bf16.xpose.msra.mxu0 %v2553
  %2564 = vmatprep.subr.bf16.mxu0 0
  %2565 = vmatpush1.bf16.xpose.msra.mxu0 %v2556
  %2566 = vmatprep.subr.bf16.mxu0 0
  %2567 = vmatpush1.bf16.xpose.msra.mxu0 0
  %2568 = vmatprep.subr.bf16.mxu0 0
  %2569 = vmatpush1.bf16.xpose.msra.mxu0 0
  %2570 = vmatprep.subr.bf16.mxu0 0
  %2571 = vmatpush1.bf16.xpose.msra.mxu0 0
  %2572 = vmatprep.subr.bf16.mxu0 0
  %2573 = vmatpush1.bf16.xpose.msra.mxu0 0
  %2574 = vmatprep.subr.bf16.mxu0 0
  %2575 = vmatpush1.bf16.xpose.msra.mxu0 0
  %2576 = vmatprep.subr.bf16.mxu0 0
  %2577 = vmatpush1.bf16.xpose.msra.mxu0 0
  %2578 = vmatprep.subr.bf16.mxu0 0
  %2579 = vmatpush1.bf16.xpose.msra.mxu0 0
  %2580 = vmatprep.subr.bf16.mxu0 0
  %2581 = vmatpush1.bf16.xpose.msra.mxu0 0
  %2582 = vmatprep.subr.bf16.mxu0 0
  %2583 = vmatpush1.bf16.xpose.msra.mxu0 0
  %2584 = vmatprep.subr.bf16.mxu0 0
  %2585 = vmatpush1.bf16.xpose.msra.mxu0 0
  %2586 = vmatprep.subr.bf16.mxu0 0
  %2587 = vmatpush1.bf16.xpose.msra.mxu0 0
  %2588 = vmatprep.subr.bf16.mxu0 0
  %2589 = vmatpush1.bf16.xpose.msra.mxu0 0
  %2590 = vmatprep.mubr.bf16.mxu0 0
  %2591 = vmatmul.mubr.bf16.gmra.mrb[0].mxu0 %v2535
  %v2592 = vpop.f32.mrb[0].mxu0
  %v2593 = vadd.f32 0.0, %v2592
  %v2594 = vpop.f32.mrb[0].mxu0
  %v2595 = vpop.f32.mrb[0].mxu0
  %v2596 = vadd.f32 0.0, %v2595
  %v2597 = vpop.f32.mrb[0].mxu0
  %2598 = vmatprep.mubr.bf16.mxu0 0
  %2599 = vmatmul.mubr.bf16.gmra.mrb[0].mxu0 %v2538
  %v2600 = vpop.f32.mrb[0].mxu0
  %v2601 = vadd.f32 0.0, %v2600
  %v2602 = vpop.f32.mrb[0].mxu0
  %v2603 = vpop.f32.mrb[0].mxu0
  %v2604 = vadd.f32 0.0, %v2603
  %v2605 = vpop.f32.mrb[0].mxu0
  %2606 = vmatprep.mubr.bf16.mxu0 0
  %2607 = vmatmul.mubr.bf16.gmra.mrb[0].mxu0 %v2541
  %v2608 = vpop.f32.mrb[0].mxu0
  %v2609 = vadd.f32 0.0, %v2608
  %v2610 = vpop.f32.mrb[0].mxu0
  %v2611 = vpop.f32.mrb[0].mxu0
  %v2612 = vadd.f32 0.0, %v2611
  %v2613 = vpop.f32.mrb[0].mxu0
  %2614 = vmatprep.mubr.bf16.mxu0 0
  %2615 = vmatmul.mubr.bf16.gmra.mrb[0].mxu0 %v2544
  %v2616 = vpop.f32.mrb[0].mxu0
  %v2617 = vadd.f32 0.0, %v2616
  %v2618 = vpop.f32.mrb[0].mxu0
  %v2619 = vpop.f32.mrb[0].mxu0
  %v2620 = vadd.f32 0.0, %v2619
  %v2621 = vpop.f32.mrb[0].mxu0
  %2622 = vdwg.mxu0
  %v2623 = vmul.f32 %v2593, 0.35355338
  %v2624 = vmul.f32 %v2596, 0.35355338
  %v2625 = vmul.f32 %v2601, 0.35355338
  %v2626 = vmul.f32 %v2604, 0.35355338
  %v2627 = vmul.f32 %v2609, 0.35355338
  %v2628 = vmul.f32 %v2612, 0.35355338
  %v2629 = vmul.f32 %v2617, 0.35355338
  %v2630 = vmul.f32 %v2620, 0.35355338
  %v2631 = vadd.f32 %v2623, %v61
  %v2632 = vadd.f32 %v2624, %v62
  %v2633 = vadd.f32 %v2625, %v63
  %v2634 = vadd.f32 %v2626, %v64
  %v2635 = vadd.f32 %v2627, %v65
  %v2636 = vadd.f32 %v2628, %v66
  %v2637 = vadd.f32 %v2629, %v67
  %v2638 = vadd.f32 %v2630, %v68
  %v2639 = vsel %vm327, %v2631, -inf
  %2640 = vmax.xlane.f32.xlu0 %v2639
  %v2641 = vpop.xlane.xlu0 %2640
  %v2642 = vsel %vm327, %v2632, -inf
  %2643 = vmax.xlane.f32.xlu0 %v2642
  %v2644 = vpop.xlane.xlu0 %2643
  %v2645 = vsel %vm327, %v2633, -inf
  %2646 = vmax.xlane.f32.xlu0 %v2645
  %v2647 = vpop.xlane.xlu0 %2646
  %v2648 = vsel %vm327, %v2634, -inf
  %2649 = vmax.xlane.f32.xlu0 %v2648
  %v2650 = vpop.xlane.xlu0 %2649
  %v2651 = vsel %vm327, %v2635, -inf
  %2652 = vmax.xlane.f32.xlu0 %v2651
  %v2653 = vpop.xlane.xlu0 %2652
  %v2654 = vsel %vm327, %v2636, -inf
  %2655 = vmax.xlane.f32.xlu0 %v2654
  %v2656 = vpop.xlane.xlu0 %2655
  %v2657 = vsel %vm327, %v2637, -inf
  %2658 = vmax.xlane.f32.xlu0 %v2657
  %v2659 = vpop.xlane.xlu0 %2658
  %v2660 = vsel %vm327, %v2638, -inf
  %2661 = vmax.xlane.f32.xlu0 %v2660
  %v2662 = vpop.xlane.xlu0 %2661
  %v2663 = vsub.f32 %v2631, %v2641
  %v2664 = vsub.f32 %v2632, %v2644
  %v2665 = vsub.f32 %v2633, %v2647
  %v2666 = vsub.f32 %v2634, %v2650
  %v2667 = vsub.f32 %v2635, %v2653
  %v2668 = vsub.f32 %v2636, %v2656
  %v2669 = vsub.f32 %v2637, %v2659
  %v2670 = vsub.f32 %v2638, %v2662
  %v2671 = vmul.f32 %v2663, 1.442695
  %v2672 = vpow.pop %v2671
  %v2673 = vmul.f32 %v2664, 1.442695
  %v2674 = vpow.pop %v2673
  %v2675 = vmul.f32 %v2665, 1.442695
  %v2676 = vpow.pop %v2675
  %v2677 = vmul.f32 %v2666, 1.442695
  %v2678 = vpow.pop %v2677
  %v2679 = vmul.f32 %v2667, 1.442695
  %v2680 = vpow.pop %v2679
  %v2681 = vmul.f32 %v2668, 1.442695
  %v2682 = vpow.pop %v2681
  %v2683 = vmul.f32 %v2669, 1.442695
  %v2684 = vpow.pop %v2683
  %v2685 = vmul.f32 %v2670, 1.442695
  %v2686 = vpow.pop %v2685
  %v2687 = vsel %vm327, %v2672, 0.0
  %2688 = vadd.xlane.f32.xlu0 %v2687
  %v2689 = vpop.xlane.xlu0 %2688
  %v2690 = vsel %vm327, %v2674, 0.0
  %2691 = vadd.xlane.f32.xlu0 %v2690
  %v2692 = vpop.xlane.xlu0 %2691
  %v2693 = vsel %vm327, %v2676, 0.0
  %2694 = vadd.xlane.f32.xlu0 %v2693
  %v2695 = vpop.xlane.xlu0 %2694
  %v2696 = vsel %vm327, %v2678, 0.0
  %2697 = vadd.xlane.f32.xlu0 %v2696
  %v2698 = vpop.xlane.xlu0 %2697
  %v2699 = vsel %vm327, %v2680, 0.0
  %2700 = vadd.xlane.f32.xlu0 %v2699
  %v2701 = vpop.xlane.xlu0 %2700
  %v2702 = vsel %vm327, %v2682, 0.0
  %2703 = vadd.xlane.f32.xlu0 %v2702
  %v2704 = vpop.xlane.xlu0 %2703
  %v2705 = vsel %vm327, %v2684, 0.0
  %2706 = vadd.xlane.f32.xlu0 %v2705
  %v2707 = vpop.xlane.xlu0 %2706
  %v2708 = vsel %vm327, %v2686, 0.0
  %2709 = vadd.xlane.f32.xlu0 %v2708
  %v2710 = vpop.xlane.xlu0 %2709
  %v2711 = vrcp.pop %v2689
  %v2712 = vmul.f32 %v2672, %v2711
  %v2713 = vrcp.pop %v2692
  %v2714 = vmul.f32 %v2674, %v2713
  %v2715 = vrcp.pop %v2695
  %v2716 = vmul.f32 %v2676, %v2715
  %v2717 = vrcp.pop %v2698
  %v2718 = vmul.f32 %v2678, %v2717
  %v2719 = vrcp.pop %v2701
  %v2720 = vmul.f32 %v2680, %v2719
  %v2721 = vrcp.pop %v2704
  %v2722 = vmul.f32 %v2682, %v2721
  %v2723 = vrcp.pop %v2707
  %v2724 = vmul.f32 %v2684, %v2723
  %v2725 = vrcp.pop %v2710
  %v2726 = vmul.f32 %v2686, %v2725
  %v2727 = vpack.c.bf16 %v2714, %v2712
  %v2728 = vpack.c.bf16 %v2718, %v2716
  %v2729 = vpack.c.bf16 %v2722, %v2720
  %v2730 = vpack.c.bf16 %v2726, %v2724
  %2731 = vrot.lane.b32.xlu0 %v2518, 64
  %v2732 = vpop.permute.xlu0 %2731
  %2733 = vrot.lane.b32.xlu0 %v2519, 64
  %v2734 = vpop.permute.xlu0 %2733
  %2735 = vrot.lane.b32.xlu0 %v2520, 64
  %v2736 = vpop.permute.xlu0 %2735
  %2737 = vrot.lane.b32.xlu0 %v2521, 64
  %v2738 = vpop.permute.xlu0 %2737
  %v2744 = vsel %vm327, %v2727, 0
  %v2747 = vsel %vm327, %v2728, 0
  %v2750 = vsel %vm327, %v2729, 0
  %v2753 = vsel %vm327, %v2730, 0
  %2755 = vmatprep.subr.bf16.mxu0 0
  %2756 = vmatpush1.bf16.msra.mxu0 %v2732
  %2757 = vmatprep.subr.bf16.mxu0 0
  %2758 = vmatpush1.bf16.msra.mxu0 %v2734
  %2759 = vmatprep.subr.bf16.mxu0 0
  %2760 = vmatpush1.bf16.msra.mxu0 %v2736
  %2761 = vmatprep.subr.bf16.mxu0 0
  %2762 = vmatpush1.bf16.msra.mxu0 %v2738
  %2763 = vmatprep.subr.bf16.mxu0 0
  %2764 = vmatpush1.bf16.msra.mxu0 0
  %2765 = vmatprep.subr.bf16.mxu0 0
  %2766 = vmatpush1.bf16.msra.mxu0 0
  %2767 = vmatprep.subr.bf16.mxu0 0
  %2768 = vmatpush1.bf16.msra.mxu0 0
  %2769 = vmatprep.subr.bf16.mxu0 0
  %2770 = vmatpush1.bf16.msra.mxu0 0
  %2771 = vmatprep.subr.bf16.mxu0 0
  %2772 = vmatpush1.bf16.msra.mxu0 0
  %2773 = vmatprep.subr.bf16.mxu0 0
  %2774 = vmatpush1.bf16.msra.mxu0 0
  %2775 = vmatprep.subr.bf16.mxu0 0
  %2776 = vmatpush1.bf16.msra.mxu0 0
  %2777 = vmatprep.subr.bf16.mxu0 0
  %2778 = vmatpush1.bf16.msra.mxu0 0
  %2779 = vmatprep.subr.bf16.mxu0 0
  %2780 = vmatpush1.bf16.msra.mxu0 0
  %2781 = vmatprep.subr.bf16.mxu0 0
  %2782 = vmatpush1.bf16.msra.mxu0 0
  %2783 = vmatprep.subr.bf16.mxu0 0
  %2784 = vmatpush1.bf16.msra.mxu0 0
  %2785 = vmatprep.subr.bf16.mxu0 0
  %2786 = vmatpush1.bf16.msra.mxu0 0
  %2787 = vmatprep.mubr.bf16.mxu0 0
  %2788 = vmatmul.mubr.bf16.gmra.mrb[0].mxu0 %v2744
  %v2789 = vpop.f32.mrb[0].mxu0
  %v2790 = vadd.f32 0.0, %v2789
  %v2791 = vpop.f32.mrb[0].mxu0
  %v2792 = vpop.f32.mrb[0].mxu0
  %v2793 = vadd.f32 0.0, %v2792
  %v2794 = vpop.f32.mrb[0].mxu0
  %2795 = vmatprep.mubr.bf16.mxu0 0
  %2796 = vmatmul.mubr.bf16.gmra.mrb[0].mxu0 %v2747
  %v2797 = vpop.f32.mrb[0].mxu0
  %v2798 = vadd.f32 0.0, %v2797
  %v2799 = vpop.f32.mrb[0].mxu0
  %v2800 = vpop.f32.mrb[0].mxu0
  %v2801 = vadd.f32 0.0, %v2800
  %v2802 = vpop.f32.mrb[0].mxu0
  %2803 = vmatprep.mubr.bf16.mxu0 0
  %2804 = vmatmul.mubr.bf16.gmra.mrb[0].mxu0 %v2750
  %v2805 = vpop.f32.mrb[0].mxu0
  %v2806 = vadd.f32 0.0, %v2805
  %v2807 = vpop.f32.mrb[0].mxu0
  %v2808 = vpop.f32.mrb[0].mxu0
  %v2809 = vadd.f32 0.0, %v2808
  %v2810 = vpop.f32.mrb[0].mxu0
  %2811 = vmatprep.mubr.bf16.mxu0 0
  %2812 = vmatmul.mubr.bf16.gmra.mrb[0].mxu0 %v2753
  %v2813 = vpop.f32.mrb[0].mxu0
  %v2814 = vadd.f32 0.0, %v2813
  %v2815 = vpop.f32.mrb[0].mxu0
  %v2816 = vpop.f32.mrb[0].mxu0
  %v2817 = vadd.f32 0.0, %v2816
  %v2818 = vpop.f32.mrb[0].mxu0
  %2819 = vdwg.mxu0
  %v2820 = vpack.c.bf16 %v2793, %v2790
  %v2821 = vpack.c.bf16 %v2801, %v2798
  %v2822 = vpack.c.bf16 %v2809, %v2806
  %v2823 = vpack.c.bf16 %v2817, %v2814
  %v2824 = vld [vmem:[#allocation2] sm:$0xff]
  %v2825 = vld [vmem:[#allocation2 + $0x8] sm:$0xff]
  %v2826 = vld [vmem:[#allocation2 + $0x10] sm:$0xff]
  %v2827 = vld [vmem:[#allocation2 + $0x18] sm:$0xff]
  %v2828 = vld [vmem:[#allocation2 + $0x20] sm:$0xff]
  %v2829 = vld [vmem:[#allocation2 + $0x28] sm:$0xff]
  %v2830 = vld [vmem:[#allocation2 + $0x30] sm:$0xff]
  %v2831 = vld [vmem:[#allocation2 + $0x38] sm:$0xff]
  %v2832 = vpack.c.bf16 %v2825, %v2824
  %v2833 = vpack.c.bf16 %v2827, %v2826
  %v2834 = vpack.c.bf16 %v2829, %v2828
  %v2835 = vpack.c.bf16 %v2831, %v2830
  %2840 = vrot.lane.b32.xlu0 %v2832, 120
  %v2841 = vpop.permute.xlu0 %2840
  %2842 = vrot.lane.b32.xlu0 %v2833, 120
  %v2843 = vpop.permute.xlu0 %2842
  %2844 = vrot.lane.b32.xlu0 %v2834, 120
  %v2845 = vpop.permute.xlu0 %2844
  %2846 = vrot.lane.b32.xlu0 %v2835, 120
  %v2847 = vpop.permute.xlu0 %2846
  %2848 = vrot.lane.b32.xlu0 %v2832, 88
  %v2849 = vpop.permute.xlu0 %2848
  %2850 = vrot.lane.b32.xlu0 %v2833, 88
  %v2851 = vpop.permute.xlu0 %2850
  %2852 = vrot.lane.b32.xlu0 %v2834, 88
  %v2853 = vpop.permute.xlu0 %2852
  %2854 = vrot.lane.b32.xlu0 %v2835, 88
  %v2855 = vpop.permute.xlu0 %2854
  %v2857 = vsel %vm221, %v2841, 0
  %v2860 = vsel %vm221, %v2843, 0
  %v2863 = vsel %vm221, %v2845, 0
  %v2866 = vsel %vm221, %v2847, 0
  %v2869 = vsel %vm221, %v2849, 0
  %v2872 = vsel %vm221, %v2851, 0
  %v2875 = vsel %vm221, %v2853, 0
  %v2878 = vsel %vm221, %v2855, 0
  %2880 = vmatprep.subr.bf16.mxu0 0
  %2881 = vmatpush1.bf16.xpose.msra.mxu0 %v2869
  %2882 = vmatprep.subr.bf16.mxu0 0
  %2883 = vmatpush1.bf16.xpose.msra.mxu0 %v2872
  %2884 = vmatprep.subr.bf16.mxu0 0
  %2885 = vmatpush1.bf16.xpose.msra.mxu0 %v2875
  %2886 = vmatprep.subr.bf16.mxu0 0
  %2887 = vmatpush1.bf16.xpose.msra.mxu0 %v2878
  %2888 = vmatprep.subr.bf16.mxu0 0
  %2889 = vmatpush1.bf16.xpose.msra.mxu0 0
  %2890 = vmatprep.subr.bf16.mxu0 0
  %2891 = vmatpush1.bf16.xpose.msra.mxu0 0
  %2892 = vmatprep.subr.bf16.mxu0 0
  %2893 = vmatpush1.bf16.xpose.msra.mxu0 0
  %2894 = vmatprep.subr.bf16.mxu0 0
  %2895 = vmatpush1.bf16.xpose.msra.mxu0 0
  %2896 = vmatprep.subr.bf16.mxu0 0
  %2897 = vmatpush1.bf16.xpose.msra.mxu0 0
  %2898 = vmatprep.subr.bf16.mxu0 0
  %2899 = vmatpush1.bf16.xpose.msra.mxu0 0
  %2900 = vmatprep.subr.bf16.mxu0 0
  %2901 = vmatpush1.bf16.xpose.msra.mxu0 0
  %2902 = vmatprep.subr.bf16.mxu0 0
  %2903 = vmatpush1.bf16.xpose.msra.mxu0 0
  %2904 = vmatprep.subr.bf16.mxu0 0
  %2905 = vmatpush1.bf16.xpose.msra.mxu0 0
  %2906 = vmatprep.subr.bf16.mxu0 0
  %2907 = vmatpush1.bf16.xpose.msra.mxu0 0
  %2908 = vmatprep.subr.bf16.mxu0 0
  %2909 = vmatpush1.bf16.xpose.msra.mxu0 0
  %2910 = vmatprep.subr.bf16.mxu0 0
  %2911 = vmatpush1.bf16.xpose.msra.mxu0 0
  %2912 = vmatprep.mubr.bf16.mxu0 0
  %2913 = vmatmul.mubr.bf16.gmra.mrb[0].mxu0 %v2857
  %v2914 = vpop.f32.mrb[0].mxu0
  %v2915 = vadd.f32 0.0, %v2914
  %v2916 = vpop.f32.mrb[0].mxu0
  %v2917 = vpop.f32.mrb[0].mxu0
  %v2918 = vadd.f32 0.0, %v2917
  %v2919 = vpop.f32.mrb[0].mxu0
  %2920 = vmatprep.mubr.bf16.mxu0 0
  %2921 = vmatmul.mubr.bf16.gmra.mrb[0].mxu0 %v2860
  %v2922 = vpop.f32.mrb[0].mxu0
  %v2923 = vadd.f32 0.0, %v2922
  %v2924 = vpop.f32.mrb[0].mxu0
  %v2925 = vpop.f32.mrb[0].mxu0
  %v2926 = vadd.f32 0.0, %v2925
  %v2927 = vpop.f32.mrb[0].mxu0
  %2928 = vmatprep.mubr.bf16.mxu0 0
  %2929 = vmatmul.mubr.bf16.gmra.mrb[0].mxu0 %v2863
  %v2930 = vpop.f32.mrb[0].mxu0
  %v2931 = vadd.f32 0.0, %v2930
  %v2932 = vpop.f32.mrb[0].mxu0
  %v2933 = vpop.f32.mrb[0].mxu0
  %v2934 = vadd.f32 0.0, %v2933
  %v2935 = vpop.f32.mrb[0].mxu0
  %2936 = vmatprep.mubr.bf16.mxu0 0
  %2937 = vmatmul.mubr.bf16.gmra.mrb[0].mxu0 %v2866
  %v2938 = vpop.f32.mrb[0].mxu0
  %v2939 = vadd.f32 0.0, %v2938
  %v2940 = vpop.f32.mrb[0].mxu0
  %v2941 = vpop.f32.mrb[0].mxu0
  %v2942 = vadd.f32 0.0, %v2941
  %v2943 = vpop.f32.mrb[0].mxu0
  %2944 = vdwg.mxu0
  %v2945 = vmul.f32 %v2915, 0.35355338
  %v2946 = vmul.f32 %v2918, 0.35355338
  %v2947 = vmul.f32 %v2923, 0.35355338
  %v2948 = vmul.f32 %v2926, 0.35355338
  %v2949 = vmul.f32 %v2931, 0.35355338
  %v2950 = vmul.f32 %v2934, 0.35355338
  %v2951 = vmul.f32 %v2939, 0.35355338
  %v2952 = vmul.f32 %v2942, 0.35355338
  %v2953 = vadd.f32 %v2945, %v61
  %v2954 = vadd.f32 %v2946, %v62
  %v2955 = vadd.f32 %v2947, %v63
  %v2956 = vadd.f32 %v2948, %v64
  %v2957 = vadd.f32 %v2949, %v65
  %v2958 = vadd.f32 %v2950, %v66
  %v2959 = vadd.f32 %v2951, %v67
  %v2960 = vadd.f32 %v2952, %v68
  %v2961 = vsel %vm327, %v2953, -inf
  %2962 = vmax.xlane.f32.xlu0 %v2961
  %v2963 = vpop.xlane.xlu0 %2962
  %v2964 = vsel %vm327, %v2954, -inf
  %2965 = vmax.xlane.f32.xlu0 %v2964
  %v2966 = vpop.xlane.xlu0 %2965
  %v2967 = vsel %vm327, %v2955, -inf
  %2968 = vmax.xlane.f32.xlu0 %v2967
  %v2969 = vpop.xlane.xlu0 %2968
  %v2970 = vsel %vm327, %v2956, -inf
  %2971 = vmax.xlane.f32.xlu0 %v2970
  %v2972 = vpop.xlane.xlu0 %2971
  %v2973 = vsel %vm327, %v2957, -inf
  %2974 = vmax.xlane.f32.xlu0 %v2973
  %v2975 = vpop.xlane.xlu0 %2974
  %v2976 = vsel %vm327, %v2958, -inf
  %2977 = vmax.xlane.f32.xlu0 %v2976
  %v2978 = vpop.xlane.xlu0 %2977
  %v2979 = vsel %vm327, %v2959, -inf
  %2980 = vmax.xlane.f32.xlu0 %v2979
  %v2981 = vpop.xlane.xlu0 %2980
  %v2982 = vsel %vm327, %v2960, -inf
  %2983 = vmax.xlane.f32.xlu0 %v2982
  %v2984 = vpop.xlane.xlu0 %2983
  %v2985 = vsub.f32 %v2953, %v2963
  %v2986 = vsub.f32 %v2954, %v2966
  %v2987 = vsub.f32 %v2955, %v2969
  %v2988 = vsub.f32 %v2956, %v2972
  %v2989 = vsub.f32 %v2957, %v2975
  %v2990 = vsub.f32 %v2958, %v2978
  %v2991 = vsub.f32 %v2959, %v2981
  %v2992 = vsub.f32 %v2960, %v2984
  %v2993 = vmul.f32 %v2985, 1.442695
  %v2994 = vpow.pop %v2993
  %v2995 = vmul.f32 %v2986, 1.442695
  %v2996 = vpow.pop %v2995
  %v2997 = vmul.f32 %v2987, 1.442695
  %v2998 = vpow.pop %v2997
  %v2999 = vmul.f32 %v2988, 1.442695
  %v3000 = vpow.pop %v2999
  %v3001 = vmul.f32 %v2989, 1.442695
  %v3002 = vpow.pop %v3001
  %v3003 = vmul.f32 %v2990, 1.442695
  %v3004 = vpow.pop %v3003
  %v3005 = vmul.f32 %v2991, 1.442695
  %v3006 = vpow.pop %v3005
  %v3007 = vmul.f32 %v2992, 1.442695
  %v3008 = vpow.pop %v3007
  %v3009 = vsel %vm327, %v2994, 0.0
  %3010 = vadd.xlane.f32.xlu0 %v3009
  %v3011 = vpop.xlane.xlu0 %3010
  %v3012 = vsel %vm327, %v2996, 0.0
  %3013 = vadd.xlane.f32.xlu0 %v3012
  %v3014 = vpop.xlane.xlu0 %3013
  %v3015 = vsel %vm327, %v2998, 0.0
  %3016 = vadd.xlane.f32.xlu0 %v3015
  %v3017 = vpop.xlane.xlu0 %3016
  %v3018 = vsel %vm327, %v3000, 0.0
  %3019 = vadd.xlane.f32.xlu0 %v3018
  %v3020 = vpop.xlane.xlu0 %3019
  %v3021 = vsel %vm327, %v3002, 0.0
  %3022 = vadd.xlane.f32.xlu0 %v3021
  %v3023 = vpop.xlane.xlu0 %3022
  %v3024 = vsel %vm327, %v3004, 0.0
  %3025 = vadd.xlane.f32.xlu0 %v3024
  %v3026 = vpop.xlane.xlu0 %3025
  %v3027 = vsel %vm327, %v3006, 0.0
  %3028 = vadd.xlane.f32.xlu0 %v3027
  %v3029 = vpop.xlane.xlu0 %3028
  %v3030 = vsel %vm327, %v3008, 0.0
  %3031 = vadd.xlane.f32.xlu0 %v3030
  %v3032 = vpop.xlane.xlu0 %3031
  %v3033 = vrcp.pop %v3011
  %v3034 = vmul.f32 %v2994, %v3033
  %v3035 = vrcp.pop %v3014
  %v3036 = vmul.f32 %v2996, %v3035
  %v3037 = vrcp.pop %v3017
  %v3038 = vmul.f32 %v2998, %v3037
  %v3039 = vrcp.pop %v3020
  %v3040 = vmul.f32 %v3000, %v3039
  %v3041 = vrcp.pop %v3023
  %v3042 = vmul.f32 %v3002, %v3041
  %v3043 = vrcp.pop %v3026
  %v3044 = vmul.f32 %v3004, %v3043
  %v3045 = vrcp.pop %v3029
  %v3046 = vmul.f32 %v3006, %v3045
  %v3047 = vrcp.pop %v3032
  %v3048 = vmul.f32 %v3008, %v3047
  %v3049 = vpack.c.bf16 %v3036, %v3034
  %v3050 = vpack.c.bf16 %v3040, %v3038
  %v3051 = vpack.c.bf16 %v3044, %v3042
  %v3052 = vpack.c.bf16 %v3048, %v3046
  %3053 = vrot.lane.b32.xlu0 %v2832, 56
  %v3054 = vpop.permute.xlu0 %3053
  %3055 = vrot.lane.b32.xlu0 %v2833, 56
  %v3056 = vpop.permute.xlu0 %3055
  %3057 = vrot.lane.b32.xlu0 %v2834, 56
  %v3058 = vpop.permute.xlu0 %3057
  %3059 = vrot.lane.b32.xlu0 %v2835, 56
  %v3060 = vpop.permute.xlu0 %3059
  %v3066 = vsel %vm327, %v3049, 0
  %v3069 = vsel %vm327, %v3050, 0
  %v3072 = vsel %vm327, %v3051, 0
  %v3075 = vsel %vm327, %v3052, 0
  %3077 = vmatprep.subr.bf16.mxu0 0
  %3078 = vmatpush1.bf16.msra.mxu0 %v3054
  %3079 = vmatprep.subr.bf16.mxu0 0
  %3080 = vmatpush1.bf16.msra.mxu0 %v3056
  %3081 = vmatprep.subr.bf16.mxu0 0
  %3082 = vmatpush1.bf16.msra.mxu0 %v3058
  %3083 = vmatprep.subr.bf16.mxu0 0
  %3084 = vmatpush1.bf16.msra.mxu0 %v3060
  %3085 = vmatprep.subr.bf16.mxu0 0
  %3086 = vmatpush1.bf16.msra.mxu0 0
  %3087 = vmatprep.subr.bf16.mxu0 0
  %3088 = vmatpush1.bf16.msra.mxu0 0
  %3089 = vmatprep.subr.bf16.mxu0 0
  %3090 = vmatpush1.bf16.msra.mxu0 0
  %3091 = vmatprep.subr.bf16.mxu0 0
  %3092 = vmatpush1.bf16.msra.mxu0 0
  %3093 = vmatprep.subr.bf16.mxu0 0
  %3094 = vmatpush1.bf16.msra.mxu0 0
  %3095 = vmatprep.subr.bf16.mxu0 0
  %3096 = vmatpush1.bf16.msra.mxu0 0
  %3097 = vmatprep.subr.bf16.mxu0 0
  %3098 = vmatpush1.bf16.msra.mxu0 0
  %3099 = vmatprep.subr.bf16.mxu0 0
  %3100 = vmatpush1.bf16.msra.mxu0 0
  %3101 = vmatprep.subr.bf16.mxu0 0
  %3102 = vmatpush1.bf16.msra.mxu0 0
  %3103 = vmatprep.subr.bf16.mxu0 0
  %3104 = vmatpush1.bf16.msra.mxu0 0
  %3105 = vmatprep.subr.bf16.mxu0 0
  %3106 = vmatpush1.bf16.msra.mxu0 0
  %3107 = vmatprep.subr.bf16.mxu0 0
  %3108 = vmatpush1.bf16.msra.mxu0 0
  %3109 = vmatprep.mubr.bf16.mxu0 0
  %3110 = vmatmul.mubr.bf16.gmra.mrb[0].mxu0 %v3066
  %v3111 = vpop.f32.mrb[0].mxu0
  %v3112 = vadd.f32 0.0, %v3111
  %v3113 = vpop.f32.mrb[0].mxu0
  %v3114 = vpop.f32.mrb[0].mxu0
  %v3115 = vadd.f32 0.0, %v3114
  %v3116 = vpop.f32.mrb[0].mxu0
  %3117 = vmatprep.mubr.bf16.mxu0 0
  %3118 = vmatmul.mubr.bf16.gmra.mrb[0].mxu0 %v3069
  %v3119 = vpop.f32.mrb[0].mxu0
  %v3120 = vadd.f32 0.0, %v3119
  %v3121 = vpop.f32.mrb[0].mxu0
  %v3122 = vpop.f32.mrb[0].mxu0
  %v3123 = vadd.f32 0.0, %v3122
  %v3124 = vpop.f32.mrb[0].mxu0
  %3125 = vmatprep.mubr.bf16.mxu0 0
  %3126 = vmatmul.mubr.bf16.gmra.mrb[0].mxu0 %v3072
  %v3127 = vpop.f32.mrb[0].mxu0
  %v3128 = vadd.f32 0.0, %v3127
  %v3129 = vpop.f32.mrb[0].mxu0
  %v3130 = vpop.f32.mrb[0].mxu0
  %v3131 = vadd.f32 0.0, %v3130
  %v3132 = vpop.f32.mrb[0].mxu0
  %3133 = vmatprep.mubr.bf16.mxu0 0
  %3134 = vmatmul.mubr.bf16.gmra.mrb[0].mxu0 %v3075
  %v3135 = vpop.f32.mrb[0].mxu0
  %v3136 = vadd.f32 0.0, %v3135
  %v3137 = vpop.f32.mrb[0].mxu0
  %v3138 = vpop.f32.mrb[0].mxu0
  %v3139 = vadd.f32 0.0, %v3138
  %v3140 = vpop.f32.mrb[0].mxu0
  %3141 = vdwg.mxu0
  %v3142 = vpack.c.bf16 %v3115, %v3112
  %v3143 = vpack.c.bf16 %v3123, %v3120
  %v3144 = vpack.c.bf16 %v3131, %v3128
  %v3145 = vpack.c.bf16 %v3139, %v3136
  %v3147 = vsel %vm221, %v3142, 0
  %v3150 = vsel %vm221, %v3143, 0
  %v3153 = vsel %vm221, %v3144, 0
  %v3156 = vsel %vm221, %v3145, 0
  %v3159 = vsel %vm847, %v2386, 0
  %3161 = vmatprep.subr.bf16.mxu0 0
  %3162 = vmatpush1.bf16.msra.mxu0 %v3159
  %3163 = vmatprep.subr.bf16.mxu0 0
  %3164 = vmatpush1.bf16.msra.mxu0 0
  %3165 = vmatprep.subr.bf16.mxu0 0
  %3166 = vmatpush1.bf16.msra.mxu0 0
  %3167 = vmatprep.subr.bf16.mxu0 0
  %3168 = vmatpush1.bf16.msra.mxu0 0
  %3169 = vmatprep.subr.bf16.mxu0 0
  %3170 = vmatpush1.bf16.msra.mxu0 0
  %3171 = vmatprep.subr.bf16.mxu0 0
  %3172 = vmatpush1.bf16.msra.mxu0 0
  %3173 = vmatprep.subr.bf16.mxu0 0
  %3174 = vmatpush1.bf16.msra.mxu0 0
  %3175 = vmatprep.subr.bf16.mxu0 0
  %3176 = vmatpush1.bf16.msra.mxu0 0
  %3177 = vmatprep.subr.bf16.mxu0 0
  %3178 = vmatpush1.bf16.msra.mxu0 0
  %3179 = vmatprep.subr.bf16.mxu0 0
  %3180 = vmatpush1.bf16.msra.mxu0 0
  %3181 = vmatprep.subr.bf16.mxu0 0
  %3182 = vmatpush1.bf16.msra.mxu0 0
  %3183 = vmatprep.subr.bf16.mxu0 0
  %3184 = vmatpush1.bf16.msra.mxu0 0
  %3185 = vmatprep.subr.bf16.mxu0 0
  %3186 = vmatpush1.bf16.msra.mxu0 0
  %3187 = vmatprep.subr.bf16.mxu0 0
  %3188 = vmatpush1.bf16.msra.mxu0 0
  %3189 = vmatprep.subr.bf16.mxu0 0
  %3190 = vmatpush1.bf16.msra.mxu0 0
  %3191 = vmatprep.subr.bf16.mxu0 0
  %3192 = vmatpush1.bf16.msra.mxu0 0
  %3193 = vmatprep.mubr.bf16.mxu0 0
  %3194 = vmatmul.mubr.bf16.gmra.mrb[0].mxu0 %v3147
  %v3195 = vpop.f32.mrb[0].mxu0
  %v3196 = vadd.f32 0.0, %v3195
  %v3197 = vpop.f32.mrb[0].mxu0
  %v3198 = vpop.f32.mrb[0].mxu0
  %v3199 = vadd.f32 0.0, %v3198
  %v3200 = vpop.f32.mrb[0].mxu0
  %3201 = vmatprep.mubr.bf16.mxu0 0
  %3202 = vmatmul.mubr.bf16.gmra.mrb[0].mxu0 %v3150
  %v3203 = vpop.f32.mrb[0].mxu0
  %v3204 = vadd.f32 0.0, %v3203
  %v3205 = vpop.f32.mrb[0].mxu0
  %v3206 = vpop.f32.mrb[0].mxu0
  %v3207 = vadd.f32 0.0, %v3206
  %v3208 = vpop.f32.mrb[0].mxu0
  %3209 = vmatprep.mubr.bf16.mxu0 0
  %3210 = vmatmul.mubr.bf16.gmra.mrb[0].mxu0 %v3153
  %v3211 = vpop.f32.mrb[0].mxu0
  %v3212 = vadd.f32 0.0, %v3211
  %v3213 = vpop.f32.mrb[0].mxu0
  %v3214 = vpop.f32.mrb[0].mxu0
  %v3215 = vadd.f32 0.0, %v3214
  %v3216 = vpop.f32.mrb[0].mxu0
  %3217 = vmatprep.mubr.bf16.mxu0 0
  %3218 = vmatmul.mubr.bf16.gmra.mrb[0].mxu0 %v3156
  %v3219 = vpop.f32.mrb[0].mxu0
  %v3220 = vadd.f32 0.0, %v3219
  %v3221 = vpop.f32.mrb[0].mxu0
  %v3222 = vpop.f32.mrb[0].mxu0
  %v3223 = vadd.f32 0.0, %v3222
  %v3224 = vpop.f32.mrb[0].mxu0
  %3225 = vdwg.mxu0
  %v3227 = vsel %vm221, %v2820, 0
  %v3230 = vsel %vm221, %v2821, 0
  %v3233 = vsel %vm221, %v2822, 0
  %v3236 = vsel %vm221, %v2823, 0
  %v3239 = vsel %vm847, %v2385, 0
  %3241 = vmatprep.subr.bf16.mxu0 0
  %3242 = vmatpush1.bf16.msra.mxu0 %v3239
  %3243 = vmatprep.subr.bf16.mxu0 0
  %3244 = vmatpush1.bf16.msra.mxu0 0
  %3245 = vmatprep.subr.bf16.mxu0 0
  %3246 = vmatpush1.bf16.msra.mxu0 0
  %3247 = vmatprep.subr.bf16.mxu0 0
  %3248 = vmatpush1.bf16.msra.mxu0 0
  %3249 = vmatprep.subr.bf16.mxu0 0
  %3250 = vmatpush1.bf16.msra.mxu0 0
  %3251 = vmatprep.subr.bf16.mxu0 0
  %3252 = vmatpush1.bf16.msra.mxu0 0
  %3253 = vmatprep.subr.bf16.mxu0 0
  %3254 = vmatpush1.bf16.msra.mxu0 0
  %3255 = vmatprep.subr.bf16.mxu0 0
  %3256 = vmatpush1.bf16.msra.mxu0 0
  %3257 = vmatprep.subr.bf16.mxu0 0
  %3258 = vmatpush1.bf16.msra.mxu0 0
  %3259 = vmatprep.subr.bf16.mxu0 0
  %3260 = vmatpush1.bf16.msra.mxu0 0
  %3261 = vmatprep.subr.bf16.mxu0 0
  %3262 = vmatpush1.bf16.msra.mxu0 0
  %3263 = vmatprep.subr.bf16.mxu0 0
  %3264 = vmatpush1.bf16.msra.mxu0 0
  %3265 = vmatprep.subr.bf16.mxu0 0
  %3266 = vmatpush1.bf16.msra.mxu0 0
  %3267 = vmatprep.subr.bf16.mxu0 0
  %3268 = vmatpush1.bf16.msra.mxu0 0
  %3269 = vmatprep.subr.bf16.mxu0 0
  %3270 = vmatpush1.bf16.msra.mxu0 0
  %3271 = vmatprep.subr.bf16.mxu0 0
  %3272 = vmatpush1.bf16.msra.mxu0 0
  %3273 = vmatprep.mubr.bf16.mxu0 0
  %3274 = vmatmul.mubr.bf16.gmra.mrb[0].mxu0 %v3227
  %v3275 = vpop.f32.mrb[0].mxu0
  %v3276 = vadd.f32 %v3196, %v3275
  %v3277 = vpop.f32.mrb[0].mxu0
  %v3278 = vpop.f32.mrb[0].mxu0
  %v3279 = vadd.f32 %v3199, %v3278
  %v3280 = vpop.f32.mrb[0].mxu0
  %3281 = vmatprep.mubr.bf16.mxu0 0
  %3282 = vmatmul.mubr.bf16.gmra.mrb[0].mxu0 %v3230
  %v3283 = vpop.f32.mrb[0].mxu0
  %v3284 = vadd.f32 %v3204, %v3283
  %v3285 = vpop.f32.mrb[0].mxu0
  %v3286 = vpop.f32.mrb[0].mxu0
  %v3287 = vadd.f32 %v3207, %v3286
  %v3288 = vpop.f32.mrb[0].mxu0
  %3289 = vmatprep.mubr.bf16.mxu0 0
  %3290 = vmatmul.mubr.bf16.gmra.mrb[0].mxu0 %v3233
  %v3291 = vpop.f32.mrb[0].mxu0
  %v3292 = vadd.f32 %v3212, %v3291
  %v3293 = vpop.f32.mrb[0].mxu0
  %v3294 = vpop.f32.mrb[0].mxu0
  %v3295 = vadd.f32 %v3215, %v3294
  %v3296 = vpop.f32.mrb[0].mxu0
  %3297 = vmatprep.mubr.bf16.mxu0 0
  %3298 = vmatmul.mubr.bf16.gmra.mrb[0].mxu0 %v3236
  %v3299 = vpop.f32.mrb[0].mxu0
  %v3300 = vadd.f32 %v3220, %v3299
  %v3301 = vpop.f32.mrb[0].mxu0
  %v3302 = vpop.f32.mrb[0].mxu0
  %v3303 = vadd.f32 %v3223, %v3302
  %v3304 = vpop.f32.mrb[0].mxu0
  %3305 = vdwg.mxu0
  %v3306 = vld [vmem:[#allocation2] sm:$0xff]
  %v3307 = vld [vmem:[#allocation2 + $0x8] sm:$0xff]
  %v3308 = vld [vmem:[#allocation2 + $0x10] sm:$0xff]
  %v3309 = vld [vmem:[#allocation2 + $0x18] sm:$0xff]
  %v3310 = vld [vmem:[#allocation2 + $0x20] sm:$0xff]
  %v3311 = vld [vmem:[#allocation2 + $0x28] sm:$0xff]
  %v3312 = vld [vmem:[#allocation2 + $0x30] sm:$0xff]
  %v3313 = vld [vmem:[#allocation2 + $0x38] sm:$0xff]
  %v3314 = vpack.c.bf16 %v3307, %v3306
  %v3315 = vpack.c.bf16 %v3309, %v3308
  %v3316 = vpack.c.bf16 %v3311, %v3310
  %v3317 = vpack.c.bf16 %v3313, %v3312
  %3322 = vrot.lane.b32.xlu0 %v3314, 112
  %v3323 = vpop.permute.xlu0 %3322
  %3324 = vrot.lane.b32.xlu0 %v3315, 112
  %v3325 = vpop.permute.xlu0 %3324
  %3326 = vrot.lane.b32.xlu0 %v3316, 112
  %v3327 = vpop.permute.xlu0 %3326
  %3328 = vrot.lane.b32.xlu0 %v3317, 112
  %v3329 = vpop.permute.xlu0 %3328
  %3330 = vrot.lane.b32.xlu0 %v3314, 80
  %v3331 = vpop.permute.xlu0 %3330
  %3332 = vrot.lane.b32.xlu0 %v3315, 80
  %v3333 = vpop.permute.xlu0 %3332
  %3334 = vrot.lane.b32.xlu0 %v3316, 80
  %v3335 = vpop.permute.xlu0 %3334
  %3336 = vrot.lane.b32.xlu0 %v3317, 80
  %v3337 = vpop.permute.xlu0 %3336
  %v3339 = vsel %vm221, %v3323, 0
  %v3342 = vsel %vm221, %v3325, 0
  %v3345 = vsel %vm221, %v3327, 0
  %v3348 = vsel %vm221, %v3329, 0
  %v3351 = vsel %vm221, %v3331, 0
  %v3354 = vsel %vm221, %v3333, 0
  %v3357 = vsel %vm221, %v3335, 0
  %v3360 = vsel %vm221, %v3337, 0
  %3362 = vmatprep.subr.bf16.mxu0 0
  %3363 = vmatpush1.bf16.xpose.msra.mxu0 %v3351
  %3364 = vmatprep.subr.bf16.mxu0 0
  %3365 = vmatpush1.bf16.xpose.msra.mxu0 %v3354
  %3366 = vmatprep.subr.bf16.mxu0 0
  %3367 = vmatpush1.bf16.xpose.msra.mxu0 %v3357
  %3368 = vmatprep.subr.bf16.mxu0 0
  %3369 = vmatpush1.bf16.xpose.msra.mxu0 %v3360
  %3370 = vmatprep.subr.bf16.mxu0 0
  %3371 = vmatpush1.bf16.xpose.msra.mxu0 0
  %3372 = vmatprep.subr.bf16.mxu0 0
  %3373 = vmatpush1.bf16.xpose.msra.mxu0 0
  %3374 = vmatprep.subr.bf16.mxu0 0
  %3375 = vmatpush1.bf16.xpose.msra.mxu0 0
  %3376 = vmatprep.subr.bf16.mxu0 0
  %3377 = vmatpush1.bf16.xpose.msra.mxu0 0
  %3378 = vmatprep.subr.bf16.mxu0 0
  %3379 = vmatpush1.bf16.xpose.msra.mxu0 0
  %3380 = vmatprep.subr.bf16.mxu0 0
  %3381 = vmatpush1.bf16.xpose.msra.mxu0 0
  %3382 = vmatprep.subr.bf16.mxu0 0
  %3383 = vmatpush1.bf16.xpose.msra.mxu0 0
  %3384 = vmatprep.subr.bf16.mxu0 0
  %3385 = vmatpush1.bf16.xpose.msra.mxu0 0
  %3386 = vmatprep.subr.bf16.mxu0 0
  %3387 = vmatpush1.bf16.xpose.msra.mxu0 0
  %3388 = vmatprep.subr.bf16.mxu0 0
  %3389 = vmatpush1.bf16.xpose.msra.mxu0 0
  %3390 = vmatprep.subr.bf16.mxu0 0
  %3391 = vmatpush1.bf16.xpose.msra.mxu0 0
  %3392 = vmatprep.subr.bf16.mxu0 0
  %3393 = vmatpush1.bf16.xpose.msra.mxu0 0
  %3394 = vmatprep.mubr.bf16.mxu0 0
  %3395 = vmatmul.mubr.bf16.gmra.mrb[0].mxu0 %v3339
  %v3396 = vpop.f32.mrb[0].mxu0
  %v3397 = vadd.f32 0.0, %v3396
  %v3398 = vpop.f32.mrb[0].mxu0
  %v3399 = vpop.f32.mrb[0].mxu0
  %v3400 = vadd.f32 0.0, %v3399
  %v3401 = vpop.f32.mrb[0].mxu0
  %3402 = vmatprep.mubr.bf16.mxu0 0
  %3403 = vmatmul.mubr.bf16.gmra.mrb[0].mxu0 %v3342
  %v3404 = vpop.f32.mrb[0].mxu0
  %v3405 = vadd.f32 0.0, %v3404
  %v3406 = vpop.f32.mrb[0].mxu0
  %v3407 = vpop.f32.mrb[0].mxu0
  %v3408 = vadd.f32 0.0, %v3407
  %v3409 = vpop.f32.mrb[0].mxu0
  %3410 = vmatprep.mubr.bf16.mxu0 0
  %3411 = vmatmul.mubr.bf16.gmra.mrb[0].mxu0 %v3345
  %v3412 = vpop.f32.mrb[0].mxu0
  %v3413 = vadd.f32 0.0, %v3412
  %v3414 = vpop.f32.mrb[0].mxu0
  %v3415 = vpop.f32.mrb[0].mxu0
  %v3416 = vadd.f32 0.0, %v3415
  %v3417 = vpop.f32.mrb[0].mxu0
  %3418 = vmatprep.mubr.bf16.mxu0 0
  %3419 = vmatmul.mubr.bf16.gmra.mrb[0].mxu0 %v3348
  %v3420 = vpop.f32.mrb[0].mxu0
  %v3421 = vadd.f32 0.0, %v3420
  %v3422 = vpop.f32.mrb[0].mxu0
  %v3423 = vpop.f32.mrb[0].mxu0
  %v3424 = vadd.f32 0.0, %v3423
  %v3425 = vpop.f32.mrb[0].mxu0
  %3426 = vdwg.mxu0
  %v3427 = vmul.f32 %v3397, 0.35355338
  %v3428 = vmul.f32 %v3400, 0.35355338
  %v3429 = vmul.f32 %v3405, 0.35355338
  %v3430 = vmul.f32 %v3408, 0.35355338
  %v3431 = vmul.f32 %v3413, 0.35355338
  %v3432 = vmul.f32 %v3416, 0.35355338
  %v3433 = vmul.f32 %v3421, 0.35355338
  %v3434 = vmul.f32 %v3424, 0.35355338
  %v3435 = vadd.f32 %v3427, %v61
  %v3436 = vadd.f32 %v3428, %v62
  %v3437 = vadd.f32 %v3429, %v63
  %v3438 = vadd.f32 %v3430, %v64
  %v3439 = vadd.f32 %v3431, %v65
  %v3440 = vadd.f32 %v3432, %v66
  %v3441 = vadd.f32 %v3433, %v67
  %v3442 = vadd.f32 %v3434, %v68
  %v3443 = vsel %vm327, %v3435, -inf
  %3444 = vmax.xlane.f32.xlu0 %v3443
  %v3445 = vpop.xlane.xlu0 %3444
  %v3446 = vsel %vm327, %v3436, -inf
  %3447 = vmax.xlane.f32.xlu0 %v3446
  %v3448 = vpop.xlane.xlu0 %3447
  %v3449 = vsel %vm327, %v3437, -inf
  %3450 = vmax.xlane.f32.xlu0 %v3449
  %v3451 = vpop.xlane.xlu0 %3450
  %v3452 = vsel %vm327, %v3438, -inf
  %3453 = vmax.xlane.f32.xlu0 %v3452
  %v3454 = vpop.xlane.xlu0 %3453
  %v3455 = vsel %vm327, %v3439, -inf
  %3456 = vmax.xlane.f32.xlu0 %v3455
  %v3457 = vpop.xlane.xlu0 %3456
  %v3458 = vsel %vm327, %v3440, -inf
  %3459 = vmax.xlane.f32.xlu0 %v3458
  %v3460 = vpop.xlane.xlu0 %3459
  %v3461 = vsel %vm327, %v3441, -inf
  %3462 = vmax.xlane.f32.xlu0 %v3461
  %v3463 = vpop.xlane.xlu0 %3462
  %v3464 = vsel %vm327, %v3442, -inf
  %3465 = vmax.xlane.f32.xlu0 %v3464
  %v3466 = vpop.xlane.xlu0 %3465
  %v3467 = vsub.f32 %v3435, %v3445
  %v3468 = vsub.f32 %v3436, %v3448
  %v3469 = vsub.f32 %v3437, %v3451
  %v3470 = vsub.f32 %v3438, %v3454
  %v3471 = vsub.f32 %v3439, %v3457
  %v3472 = vsub.f32 %v3440, %v3460
  %v3473 = vsub.f32 %v3441, %v3463
  %v3474 = vsub.f32 %v3442, %v3466
  %v3475 = vmul.f32 %v3467, 1.442695
  %v3476 = vpow.pop %v3475
  %v3477 = vmul.f32 %v3468, 1.442695
  %v3478 = vpow.pop %v3477
  %v3479 = vmul.f32 %v3469, 1.442695
  %v3480 = vpow.pop %v3479
  %v3481 = vmul.f32 %v3470, 1.442695
  %v3482 = vpow.pop %v3481
  %v3483 = vmul.f32 %v3471, 1.442695
  %v3484 = vpow.pop %v3483
  %v3485 = vmul.f32 %v3472, 1.442695
  %v3486 = vpow.pop %v3485
  %v3487 = vmul.f32 %v3473, 1.442695
  %v3488 = vpow.pop %v3487
  %v3489 = vmul.f32 %v3474, 1.442695
  %v3490 = vpow.pop %v3489
  %v3491 = vsel %vm327, %v3476, 0.0
  %3492 = vadd.xlane.f32.xlu0 %v3491
  %v3493 = vpop.xlane.xlu0 %3492
  %v3494 = vsel %vm327, %v3478, 0.0
  %3495 = vadd.xlane.f32.xlu0 %v3494
  %v3496 = vpop.xlane.xlu0 %3495
  %v3497 = vsel %vm327, %v3480, 0.0
  %3498 = vadd.xlane.f32.xlu0 %v3497
  %v3499 = vpop.xlane.xlu0 %3498
  %v3500 = vsel %vm327, %v3482, 0.0
  %3501 = vadd.xlane.f32.xlu0 %v3500
  %v3502 = vpop.xlane.xlu0 %3501
  %v3503 = vsel %vm327, %v3484, 0.0
  %3504 = vadd.xlane.f32.xlu0 %v3503
  %v3505 = vpop.xlane.xlu0 %3504
  %v3506 = vsel %vm327, %v3486, 0.0
  %3507 = vadd.xlane.f32.xlu0 %v3506
  %v3508 = vpop.xlane.xlu0 %3507
  %v3509 = vsel %vm327, %v3488, 0.0
  %3510 = vadd.xlane.f32.xlu0 %v3509
  %v3511 = vpop.xlane.xlu0 %3510
  %v3512 = vsel %vm327, %v3490, 0.0
  %3513 = vadd.xlane.f32.xlu0 %v3512
  %v3514 = vpop.xlane.xlu0 %3513
  %v3515 = vrcp.pop %v3493
  %v3516 = vmul.f32 %v3476, %v3515
  %v3517 = vrcp.pop %v3496
  %v3518 = vmul.f32 %v3478, %v3517
  %v3519 = vrcp.pop %v3499
  %v3520 = vmul.f32 %v3480, %v3519
  %v3521 = vrcp.pop %v3502
  %v3522 = vmul.f32 %v3482, %v3521
  %v3523 = vrcp.pop %v3505
  %v3524 = vmul.f32 %v3484, %v3523
  %v3525 = vrcp.pop %v3508
  %v3526 = vmul.f32 %v3486, %v3525
  %v3527 = vrcp.pop %v3511
  %v3528 = vmul.f32 %v3488, %v3527
  %v3529 = vrcp.pop %v3514
  %v3530 = vmul.f32 %v3490, %v3529
  %v3531 = vpack.c.bf16 %v3518, %v3516
  %v3532 = vpack.c.bf16 %v3522, %v3520
  %v3533 = vpack.c.bf16 %v3526, %v3524
  %v3534 = vpack.c.bf16 %v3530, %v3528
  %3535 = vrot.lane.b32.xlu0 %v3314, 48
  %v3536 = vpop.permute.xlu0 %3535
  %3537 = vrot.lane.b32.xlu0 %v3315, 48
  %v3538 = vpop.permute.xlu0 %3537
  %3539 = vrot.lane.b32.xlu0 %v3316, 48
  %v3540 = vpop.permute.xlu0 %3539
  %3541 = vrot.lane.b32.xlu0 %v3317, 48
  %v3542 = vpop.permute.xlu0 %3541
  %v3548 = vsel %vm327, %v3531, 0
  %v3551 = vsel %vm327, %v3532, 0
  %v3554 = vsel %vm327, %v3533, 0
  %v3557 = vsel %vm327, %v3534, 0
  %3559 = vmatprep.subr.bf16.mxu0 0
  %3560 = vmatpush1.bf16.msra.mxu0 %v3536
  %3561 = vmatprep.subr.bf16.mxu0 0
  %3562 = vmatpush1.bf16.msra.mxu0 %v3538
  %3563 = vmatprep.subr.bf16.mxu0 0
  %3564 = vmatpush1.bf16.msra.mxu0 %v3540
  %3565 = vmatprep.subr.bf16.mxu0 0
  %3566 = vmatpush1.bf16.msra.mxu0 %v3542
  %3567 = vmatprep.subr.bf16.mxu0 0
  %3568 = vmatpush1.bf16.msra.mxu0 0
  %3569 = vmatprep.subr.bf16.mxu0 0
  %3570 = vmatpush1.bf16.msra.mxu0 0
  %3571 = vmatprep.subr.bf16.mxu0 0
  %3572 = vmatpush1.bf16.msra.mxu0 0
  %3573 = vmatprep.subr.bf16.mxu0 0
  %3574 = vmatpush1.bf16.msra.mxu0 0
  %3575 = vmatprep.subr.bf16.mxu0 0
  %3576 = vmatpush1.bf16.msra.mxu0 0
  %3577 = vmatprep.subr.bf16.mxu0 0
  %3578 = vmatpush1.bf16.msra.mxu0 0
  %3579 = vmatprep.subr.bf16.mxu0 0
  %3580 = vmatpush1.bf16.msra.mxu0 0
  %3581 = vmatprep.subr.bf16.mxu0 0
  %3582 = vmatpush1.bf16.msra.mxu0 0
  %3583 = vmatprep.subr.bf16.mxu0 0
  %3584 = vmatpush1.bf16.msra.mxu0 0
  %3585 = vmatprep.subr.bf16.mxu0 0
  %3586 = vmatpush1.bf16.msra.mxu0 0
  %3587 = vmatprep.subr.bf16.mxu0 0
  %3588 = vmatpush1.bf16.msra.mxu0 0
  %3589 = vmatprep.subr.bf16.mxu0 0
  %3590 = vmatpush1.bf16.msra.mxu0 0
  %3591 = vmatprep.mubr.bf16.mxu0 0
  %3592 = vmatmul.mubr.bf16.gmra.mrb[0].mxu0 %v3548
  %v3593 = vpop.f32.mrb[0].mxu0
  %v3594 = vadd.f32 0.0, %v3593
  %v3595 = vpop.f32.mrb[0].mxu0
  %v3596 = vpop.f32.mrb[0].mxu0
  %v3597 = vadd.f32 0.0, %v3596
  %v3598 = vpop.f32.mrb[0].mxu0
  %3599 = vmatprep.mubr.bf16.mxu0 0
  %3600 = vmatmul.mubr.bf16.gmra.mrb[0].mxu0 %v3551
  %v3601 = vpop.f32.mrb[0].mxu0
  %v3602 = vadd.f32 0.0, %v3601
  %v3603 = vpop.f32.mrb[0].mxu0
  %v3604 = vpop.f32.mrb[0].mxu0
  %v3605 = vadd.f32 0.0, %v3604
  %v3606 = vpop.f32.mrb[0].mxu0
  %3607 = vmatprep.mubr.bf16.mxu0 0
  %3608 = vmatmul.mubr.bf16.gmra.mrb[0].mxu0 %v3554
  %v3609 = vpop.f32.mrb[0].mxu0
  %v3610 = vadd.f32 0.0, %v3609
  %v3611 = vpop.f32.mrb[0].mxu0
  %v3612 = vpop.f32.mrb[0].mxu0
  %v3613 = vadd.f32 0.0, %v3612
  %v3614 = vpop.f32.mrb[0].mxu0
  %3615 = vmatprep.mubr.bf16.mxu0 0
  %3616 = vmatmul.mubr.bf16.gmra.mrb[0].mxu0 %v3557
  %v3617 = vpop.f32.mrb[0].mxu0
  %v3618 = vadd.f32 0.0, %v3617
  %v3619 = vpop.f32.mrb[0].mxu0
  %v3620 = vpop.f32.mrb[0].mxu0
  %v3621 = vadd.f32 0.0, %v3620
  %v3622 = vpop.f32.mrb[0].mxu0
  %3623 = vdwg.mxu0
  %v3624 = vpack.c.bf16 %v3597, %v3594
  %v3625 = vpack.c.bf16 %v3605, %v3602
  %v3626 = vpack.c.bf16 %v3613, %v3610
  %v3627 = vpack.c.bf16 %v3621, %v3618
  %v3629 = vsel %vm221, %v3624, 0
  %v3632 = vsel %vm221, %v3625, 0
  %v3635 = vsel %vm221, %v3626, 0
  %v3638 = vsel %vm221, %v3627, 0
  %v3641 = vsel %vm847, %v2387, 0
  %3643 = vmatprep.subr.bf16.mxu0 0
  %3644 = vmatpush1.bf16.msra.mxu0 %v3641
  %3645 = vmatprep.subr.bf16.mxu0 0
  %3646 = vmatpush1.bf16.msra.mxu0 0
  %3647 = vmatprep.subr.bf16.mxu0 0
  %3648 = vmatpush1.bf16.msra.mxu0 0
  %3649 = vmatprep.subr.bf16.mxu0 0
  %3650 = vmatpush1.bf16.msra.mxu0 0
  %3651 = vmatprep.subr.bf16.mxu0 0
  %3652 = vmatpush1.bf16.msra.mxu0 0
  %3653 = vmatprep.subr.bf16.mxu0 0
  %3654 = vmatpush1.bf16.msra.mxu0 0
  %3655 = vmatprep.subr.bf16.mxu0 0
  %3656 = vmatpush1.bf16.msra.mxu0 0
  %3657 = vmatprep.subr.bf16.mxu0 0
  %3658 = vmatpush1.bf16.msra.mxu0 0
  %3659 = vmatprep.subr.bf16.mxu0 0
  %3660 = vmatpush1.bf16.msra.mxu0 0
  %3661 = vmatprep.subr.bf16.mxu0 0
  %3662 = vmatpush1.bf16.msra.mxu0 0
  %3663 = vmatprep.subr.bf16.mxu0 0
  %3664 = vmatpush1.bf16.msra.mxu0 0
  %3665 = vmatprep.subr.bf16.mxu0 0
  %3666 = vmatpush1.bf16.msra.mxu0 0
  %3667 = vmatprep.subr.bf16.mxu0 0
  %3668 = vmatpush1.bf16.msra.mxu0 0
  %3669 = vmatprep.subr.bf16.mxu0 0
  %3670 = vmatpush1.bf16.msra.mxu0 0
  %3671 = vmatprep.subr.bf16.mxu0 0
  %3672 = vmatpush1.bf16.msra.mxu0 0
  %3673 = vmatprep.subr.bf16.mxu0 0
  %3674 = vmatpush1.bf16.msra.mxu0 0
  %3675 = vmatprep.mubr.bf16.mxu0 0
  %3676 = vmatmul.mubr.bf16.gmra.mrb[0].mxu0 %v3629
  %v3677 = vpop.f32.mrb[0].mxu0
  %v3678 = vadd.f32 0.0, %v3677
  %v3679 = vpop.f32.mrb[0].mxu0
  %v3680 = vpop.f32.mrb[0].mxu0
  %v3681 = vadd.f32 0.0, %v3680
  %v3682 = vpop.f32.mrb[0].mxu0
  %3683 = vmatprep.mubr.bf16.mxu0 0
  %3684 = vmatmul.mubr.bf16.gmra.mrb[0].mxu0 %v3632
  %v3685 = vpop.f32.mrb[0].mxu0
  %v3686 = vadd.f32 0.0, %v3685
  %v3687 = vpop.f32.mrb[0].mxu0
  %v3688 = vpop.f32.mrb[0].mxu0
  %v3689 = vadd.f32 0.0, %v3688
  %v3690 = vpop.f32.mrb[0].mxu0
  %3691 = vmatprep.mubr.bf16.mxu0 0
  %3692 = vmatmul.mubr.bf16.gmra.mrb[0].mxu0 %v3635
  %v3693 = vpop.f32.mrb[0].mxu0
  %v3694 = vadd.f32 0.0, %v3693
  %v3695 = vpop.f32.mrb[0].mxu0
  %v3696 = vpop.f32.mrb[0].mxu0
  %v3697 = vadd.f32 0.0, %v3696
  %v3698 = vpop.f32.mrb[0].mxu0
  %3699 = vmatprep.mubr.bf16.mxu0 0
  %3700 = vmatmul.mubr.bf16.gmra.mrb[0].mxu0 %v3638
  %v3701 = vpop.f32.mrb[0].mxu0
  %v3702 = vadd.f32 0.0, %v3701
  %v3703 = vpop.f32.mrb[0].mxu0
  %v3704 = vpop.f32.mrb[0].mxu0
  %v3705 = vadd.f32 0.0, %v3704
  %v3706 = vpop.f32.mrb[0].mxu0
  %3707 = vdwg.mxu0
  %v3708 = vadd.f32 %v3276, %v3678
  %v3709 = vadd.f32 %v3279, %v3681
  %v3710 = vadd.f32 %v3284, %v3686
  %v3711 = vadd.f32 %v3287, %v3689
  %v3712 = vadd.f32 %v3292, %v3694
  %v3713 = vadd.f32 %v3295, %v3697
  %v3714 = vadd.f32 %v3300, %v3702
  %v3715 = vadd.f32 %v3303, %v3705
  %v3716 = vld [vmem:[#allocation2] sm:$0xff]
  %v3717 = vld [vmem:[#allocation2 + $0x8] sm:$0xff]
  %v3718 = vld [vmem:[#allocation2 + $0x10] sm:$0xff]
  %v3719 = vld [vmem:[#allocation2 + $0x18] sm:$0xff]
  %v3720 = vld [vmem:[#allocation2 + $0x20] sm:$0xff]
  %v3721 = vld [vmem:[#allocation2 + $0x28] sm:$0xff]
  %v3722 = vld [vmem:[#allocation2 + $0x30] sm:$0xff]
  %v3723 = vld [vmem:[#allocation2 + $0x38] sm:$0xff]
  %v3724 = vpack.c.bf16 %v3717, %v3716
  %v3725 = vpack.c.bf16 %v3719, %v3718
  %v3726 = vpack.c.bf16 %v3721, %v3720
  %v3727 = vpack.c.bf16 %v3723, %v3722
  %3732 = vrot.lane.b32.xlu0 %v3724, 104
  %v3733 = vpop.permute.xlu0 %3732
  %3734 = vrot.lane.b32.xlu0 %v3725, 104
  %v3735 = vpop.permute.xlu0 %3734
  %3736 = vrot.lane.b32.xlu0 %v3726, 104
  %v3737 = vpop.permute.xlu0 %3736
  %3738 = vrot.lane.b32.xlu0 %v3727, 104
  %v3739 = vpop.permute.xlu0 %3738
  %3740 = vrot.lane.b32.xlu0 %v3724, 72
  %v3741 = vpop.permute.xlu0 %3740
  %3742 = vrot.lane.b32.xlu0 %v3725, 72
  %v3743 = vpop.permute.xlu0 %3742
  %3744 = vrot.lane.b32.xlu0 %v3726, 72
  %v3745 = vpop.permute.xlu0 %3744
  %3746 = vrot.lane.b32.xlu0 %v3727, 72
  %v3747 = vpop.permute.xlu0 %3746
  %v3749 = vsel %vm221, %v3733, 0
  %v3752 = vsel %vm221, %v3735, 0
  %v3755 = vsel %vm221, %v3737, 0
  %v3758 = vsel %vm221, %v3739, 0
  %v3761 = vsel %vm221, %v3741, 0
  %v3764 = vsel %vm221, %v3743, 0
  %v3767 = vsel %vm221, %v3745, 0
  %v3770 = vsel %vm221, %v3747, 0
  %3772 = vmatprep.subr.bf16.mxu0 0
  %3773 = vmatpush1.bf16.xpose.msra.mxu0 %v3761
  %3774 = vmatprep.subr.bf16.mxu0 0
  %3775 = vmatpush1.bf16.xpose.msra.mxu0 %v3764
  %3776 = vmatprep.subr.bf16.mxu0 0
  %3777 = vmatpush1.bf16.xpose.msra.mxu0 %v3767
  %3778 = vmatprep.subr.bf16.mxu0 0
  %3779 = vmatpush1.bf16.xpose.msra.mxu0 %v3770
  %3780 = vmatprep.subr.bf16.mxu0 0
  %3781 = vmatpush1.bf16.xpose.msra.mxu0 0
  %3782 = vmatprep.subr.bf16.mxu0 0
  %3783 = vmatpush1.bf16.xpose.msra.mxu0 0
  %3784 = vmatprep.subr.bf16.mxu0 0
  %3785 = vmatpush1.bf16.xpose.msra.mxu0 0
  %3786 = vmatprep.subr.bf16.mxu0 0
  %3787 = vmatpush1.bf16.xpose.msra.mxu0 0
  %3788 = vmatprep.subr.bf16.mxu0 0
  %3789 = vmatpush1.bf16.xpose.msra.mxu0 0
  %3790 = vmatprep.subr.bf16.mxu0 0
  %3791 = vmatpush1.bf16.xpose.msra.mxu0 0
  %3792 = vmatprep.subr.bf16.mxu0 0
  %3793 = vmatpush1.bf16.xpose.msra.mxu0 0
  %3794 = vmatprep.subr.bf16.mxu0 0
  %3795 = vmatpush1.bf16.xpose.msra.mxu0 0
  %3796 = vmatprep.subr.bf16.mxu0 0
  %3797 = vmatpush1.bf16.xpose.msra.mxu0 0
  %3798 = vmatprep.subr.bf16.mxu0 0
  %3799 = vmatpush1.bf16.xpose.msra.mxu0 0
  %3800 = vmatprep.subr.bf16.mxu0 0
  %3801 = vmatpush1.bf16.xpose.msra.mxu0 0
  %3802 = vmatprep.subr.bf16.mxu0 0
  %3803 = vmatpush1.bf16.xpose.msra.mxu0 0
  %3804 = vmatprep.mubr.bf16.mxu0 0
  %3805 = vmatmul.mubr.bf16.gmra.mrb[0].mxu0 %v3749
  %v3806 = vpop.f32.mrb[0].mxu0
  %v3807 = vadd.f32 0.0, %v3806
  %v3808 = vpop.f32.mrb[0].mxu0
  %v3809 = vpop.f32.mrb[0].mxu0
  %v3810 = vadd.f32 0.0, %v3809
  %v3811 = vpop.f32.mrb[0].mxu0
  %3812 = vmatprep.mubr.bf16.mxu0 0
  %3813 = vmatmul.mubr.bf16.gmra.mrb[0].mxu0 %v3752
  %v3814 = vpop.f32.mrb[0].mxu0
  %v3815 = vadd.f32 0.0, %v3814
  %v3816 = vpop.f32.mrb[0].mxu0
  %v3817 = vpop.f32.mrb[0].mxu0
  %v3818 = vadd.f32 0.0, %v3817
  %v3819 = vpop.f32.mrb[0].mxu0
  %3820 = vmatprep.mubr.bf16.mxu0 0
  %3821 = vmatmul.mubr.bf16.gmra.mrb[0].mxu0 %v3755
  %v3822 = vpop.f32.mrb[0].mxu0
  %v3823 = vadd.f32 0.0, %v3822
  %v3824 = vpop.f32.mrb[0].mxu0
  %v3825 = vpop.f32.mrb[0].mxu0
  %v3826 = vadd.f32 0.0, %v3825
  %v3827 = vpop.f32.mrb[0].mxu0
  %3828 = vmatprep.mubr.bf16.mxu0 0
  %3829 = vmatmul.mubr.bf16.gmra.mrb[0].mxu0 %v3758
  %v3830 = vpop.f32.mrb[0].mxu0
  %v3831 = vadd.f32 0.0, %v3830
  %v3832 = vpop.f32.mrb[0].mxu0
  %v3833 = vpop.f32.mrb[0].mxu0
  %v3834 = vadd.f32 0.0, %v3833
  %v3835 = vpop.f32.mrb[0].mxu0
  %3836 = vdwg.mxu0
  %v3837 = vmul.f32 %v3807, 0.35355338
  %v3838 = vmul.f32 %v3810, 0.35355338
  %v3839 = vmul.f32 %v3815, 0.35355338
  %v3840 = vmul.f32 %v3818, 0.35355338
  %v3841 = vmul.f32 %v3823, 0.35355338
  %v3842 = vmul.f32 %v3826, 0.35355338
  %v3843 = vmul.f32 %v3831, 0.35355338
  %v3844 = vmul.f32 %v3834, 0.35355338
  %v3845 = vadd.f32 %v3837, %v61
  %v3846 = vadd.f32 %v3838, %v62
  %v3847 = vadd.f32 %v3839, %v63
  %v3848 = vadd.f32 %v3840, %v64
  %v3849 = vadd.f32 %v3841, %v65
  %v3850 = vadd.f32 %v3842, %v66
  %v3851 = vadd.f32 %v3843, %v67
  %v3852 = vadd.f32 %v3844, %v68
  %v3853 = vsel %vm327, %v3845, -inf
  %3854 = vmax.xlane.f32.xlu0 %v3853
  %v3855 = vpop.xlane.xlu0 %3854
  %v3856 = vsel %vm327, %v3846, -inf
  %3857 = vmax.xlane.f32.xlu0 %v3856
  %v3858 = vpop.xlane.xlu0 %3857
  %v3859 = vsel %vm327, %v3847, -inf
  %3860 = vmax.xlane.f32.xlu0 %v3859
  %v3861 = vpop.xlane.xlu0 %3860
  %v3862 = vsel %vm327, %v3848, -inf
  %3863 = vmax.xlane.f32.xlu0 %v3862
  %v3864 = vpop.xlane.xlu0 %3863
  %v3865 = vsel %vm327, %v3849, -inf
  %3866 = vmax.xlane.f32.xlu0 %v3865
  %v3867 = vpop.xlane.xlu0 %3866
  %v3868 = vsel %vm327, %v3850, -inf
  %3869 = vmax.xlane.f32.xlu0 %v3868
  %v3870 = vpop.xlane.xlu0 %3869
  %v3871 = vsel %vm327, %v3851, -inf
  %3872 = vmax.xlane.f32.xlu0 %v3871
  %v3873 = vpop.xlane.xlu0 %3872
  %v3874 = vsel %vm327, %v3852, -inf
  %3875 = vmax.xlane.f32.xlu0 %v3874
  %v3876 = vpop.xlane.xlu0 %3875
  %v3877 = vsub.f32 %v3845, %v3855
  %v3878 = vsub.f32 %v3846, %v3858
  %v3879 = vsub.f32 %v3847, %v3861
  %v3880 = vsub.f32 %v3848, %v3864
  %v3881 = vsub.f32 %v3849, %v3867
  %v3882 = vsub.f32 %v3850, %v3870
  %v3883 = vsub.f32 %v3851, %v3873
  %v3884 = vsub.f32 %v3852, %v3876
  %v3885 = vmul.f32 %v3877, 1.442695
  %v3886 = vpow.pop %v3885
  %v3887 = vmul.f32 %v3878, 1.442695
  %v3888 = vpow.pop %v3887
  %v3889 = vmul.f32 %v3879, 1.442695
  %v3890 = vpow.pop %v3889
  %v3891 = vmul.f32 %v3880, 1.442695
  %v3892 = vpow.pop %v3891
  %v3893 = vmul.f32 %v3881, 1.442695
  %v3894 = vpow.pop %v3893
  %v3895 = vmul.f32 %v3882, 1.442695
  %v3896 = vpow.pop %v3895
  %v3897 = vmul.f32 %v3883, 1.442695
  %v3898 = vpow.pop %v3897
  %v3899 = vmul.f32 %v3884, 1.442695
  %v3900 = vpow.pop %v3899
  %v3901 = vsel %vm327, %v3886, 0.0
  %3902 = vadd.xlane.f32.xlu0 %v3901
  %v3903 = vpop.xlane.xlu0 %3902
  %v3904 = vsel %vm327, %v3888, 0.0
  %3905 = vadd.xlane.f32.xlu0 %v3904
  %v3906 = vpop.xlane.xlu0 %3905
  %v3907 = vsel %vm327, %v3890, 0.0
  %3908 = vadd.xlane.f32.xlu0 %v3907
  %v3909 = vpop.xlane.xlu0 %3908
  %v3910 = vsel %vm327, %v3892, 0.0
  %3911 = vadd.xlane.f32.xlu0 %v3910
  %v3912 = vpop.xlane.xlu0 %3911
  %v3913 = vsel %vm327, %v3894, 0.0
  %3914 = vadd.xlane.f32.xlu0 %v3913
  %v3915 = vpop.xlane.xlu0 %3914
  %v3916 = vsel %vm327, %v3896, 0.0
  %3917 = vadd.xlane.f32.xlu0 %v3916
  %v3918 = vpop.xlane.xlu0 %3917
  %v3919 = vsel %vm327, %v3898, 0.0
  %3920 = vadd.xlane.f32.xlu0 %v3919
  %v3921 = vpop.xlane.xlu0 %3920
  %v3922 = vsel %vm327, %v3900, 0.0
  %3923 = vadd.xlane.f32.xlu0 %v3922
  %v3924 = vpop.xlane.xlu0 %3923
  %v3925 = vrcp.pop %v3903
  %v3926 = vmul.f32 %v3886, %v3925
  %v3927 = vrcp.pop %v3906
  %v3928 = vmul.f32 %v3888, %v3927
  %v3929 = vrcp.pop %v3909
  %v3930 = vmul.f32 %v3890, %v3929
  %v3931 = vrcp.pop %v3912
  %v3932 = vmul.f32 %v3892, %v3931
  %v3933 = vrcp.pop %v3915
  %v3934 = vmul.f32 %v3894, %v3933
  %v3935 = vrcp.pop %v3918
  %v3936 = vmul.f32 %v3896, %v3935
  %v3937 = vrcp.pop %v3921
  %v3938 = vmul.f32 %v3898, %v3937
  %v3939 = vrcp.pop %v3924
  %v3940 = vmul.f32 %v3900, %v3939
  %v3941 = vpack.c.bf16 %v3928, %v3926
  %v3942 = vpack.c.bf16 %v3932, %v3930
  %v3943 = vpack.c.bf16 %v3936, %v3934
  %v3944 = vpack.c.bf16 %v3940, %v3938
  %3945 = vrot.lane.b32.xlu0 %v3724, 40
  %v3946 = vpop.permute.xlu0 %3945
  %3947 = vrot.lane.b32.xlu0 %v3725, 40
  %v3948 = vpop.permute.xlu0 %3947
  %3949 = vrot.lane.b32.xlu0 %v3726, 40
  %v3950 = vpop.permute.xlu0 %3949
  %3951 = vrot.lane.b32.xlu0 %v3727, 40
  %v3952 = vpop.permute.xlu0 %3951
  %v3958 = vsel %vm327, %v3941, 0
  %v3961 = vsel %vm327, %v3942, 0
  %v3964 = vsel %vm327, %v3943, 0
  %v3967 = vsel %vm327, %v3944, 0
  %3969 = vmatprep.subr.bf16.mxu0 0
  %3970 = vmatpush1.bf16.msra.mxu0 %v3946
  %3971 = vmatprep.subr.bf16.mxu0 0
  %3972 = vmatpush1.bf16.msra.mxu0 %v3948
  %3973 = vmatprep.subr.bf16.mxu0 0
  %3974 = vmatpush1.bf16.msra.mxu0 %v3950
  %3975 = vmatprep.subr.bf16.mxu0 0
  %3976 = vmatpush1.bf16.msra.mxu0 %v3952
  %3977 = vmatprep.subr.bf16.mxu0 0
  %3978 = vmatpush1.bf16.msra.mxu0 0
  %3979 = vmatprep.subr.bf16.mxu0 0
  %3980 = vmatpush1.bf16.msra.mxu0 0
  %3981 = vmatprep.subr.bf16.mxu0 0
  %3982 = vmatpush1.bf16.msra.mxu0 0
  %3983 = vmatprep.subr.bf16.mxu0 0
  %3984 = vmatpush1.bf16.msra.mxu0 0
  %3985 = vmatprep.subr.bf16.mxu0 0
  %3986 = vmatpush1.bf16.msra.mxu0 0
  %3987 = vmatprep.subr.bf16.mxu0 0
  %3988 = vmatpush1.bf16.msra.mxu0 0
  %3989 = vmatprep.subr.bf16.mxu0 0
  %3990 = vmatpush1.bf16.msra.mxu0 0
  %3991 = vmatprep.subr.bf16.mxu0 0
  %3992 = vmatpush1.bf16.msra.mxu0 0
  %3993 = vmatprep.subr.bf16.mxu0 0
  %3994 = vmatpush1.bf16.msra.mxu0 0
  %3995 = vmatprep.subr.bf16.mxu0 0
  %3996 = vmatpush1.bf16.msra.mxu0 0
  %3997 = vmatprep.subr.bf16.mxu0 0
  %3998 = vmatpush1.bf16.msra.mxu0 0
  %3999 = vmatprep.subr.bf16.mxu0 0
  %4000 = vmatpush1.bf16.msra.mxu0 0
  %4001 = vmatprep.mubr.bf16.mxu0 0
  %4002 = vmatmul.mubr.bf16.gmra.mrb[0].mxu0 %v3958
  %v4003 = vpop.f32.mrb[0].mxu0
  %v4004 = vadd.f32 0.0, %v4003
  %v4005 = vpop.f32.mrb[0].mxu0
  %v4006 = vpop.f32.mrb[0].mxu0
  %v4007 = vadd.f32 0.0, %v4006
  %v4008 = vpop.f32.mrb[0].mxu0
  %4009 = vmatprep.mubr.bf16.mxu0 0
  %4010 = vmatmul.mubr.bf16.gmra.mrb[0].mxu0 %v3961
  %v4011 = vpop.f32.mrb[0].mxu0
  %v4012 = vadd.f32 0.0, %v4011
  %v4013 = vpop.f32.mrb[0].mxu0
  %v4014 = vpop.f32.mrb[0].mxu0
  %v4015 = vadd.f32 0.0, %v4014
  %v4016 = vpop.f32.mrb[0].mxu0
  %4017 = vmatprep.mubr.bf16.mxu0 0
  %4018 = vmatmul.mubr.bf16.gmra.mrb[0].mxu0 %v3964
  %v4019 = vpop.f32.mrb[0].mxu0
  %v4020 = vadd.f32 0.0, %v4019
  %v4021 = vpop.f32.mrb[0].mxu0
  %v4022 = vpop.f32.mrb[0].mxu0
  %v4023 = vadd.f32 0.0, %v4022
  %v4024 = vpop.f32.mrb[0].mxu0
  %4025 = vmatprep.mubr.bf16.mxu0 0
  %4026 = vmatmul.mubr.bf16.gmra.mrb[0].mxu0 %v3967
  %v4027 = vpop.f32.mrb[0].mxu0
  %v4028 = vadd.f32 0.0, %v4027
  %v4029 = vpop.f32.mrb[0].mxu0
  %v4030 = vpop.f32.mrb[0].mxu0
  %v4031 = vadd.f32 0.0, %v4030
  %v4032 = vpop.f32.mrb[0].mxu0
  %4033 = vdwg.mxu0
  %v4034 = vpack.c.bf16 %v4007, %v4004
  %v4035 = vpack.c.bf16 %v4015, %v4012
  %v4036 = vpack.c.bf16 %v4023, %v4020
  %v4037 = vpack.c.bf16 %v4031, %v4028
  %v4039 = vsel %vm221, %v4034, 0
  %v4042 = vsel %vm221, %v4035, 0
  %v4045 = vsel %vm221, %v4036, 0
  %v4048 = vsel %vm221, %v4037, 0
  %v4051 = vsel %vm847, %v2388, 0
  %4053 = vmatprep.subr.bf16.mxu0 0
  %4054 = vmatpush1.bf16.msra.mxu0 %v4051
  %4055 = vmatprep.subr.bf16.mxu0 0
  %4056 = vmatpush1.bf16.msra.mxu0 0
  %4057 = vmatprep.subr.bf16.mxu0 0
  %4058 = vmatpush1.bf16.msra.mxu0 0
  %4059 = vmatprep.subr.bf16.mxu0 0
  %4060 = vmatpush1.bf16.msra.mxu0 0
  %4061 = vmatprep.subr.bf16.mxu0 0
  %4062 = vmatpush1.bf16.msra.mxu0 0
  %4063 = vmatprep.subr.bf16.mxu0 0
  %4064 = vmatpush1.bf16.msra.mxu0 0
  %4065 = vmatprep.subr.bf16.mxu0 0
  %4066 = vmatpush1.bf16.msra.mxu0 0
  %4067 = vmatprep.subr.bf16.mxu0 0
  %4068 = vmatpush1.bf16.msra.mxu0 0
  %4069 = vmatprep.subr.bf16.mxu0 0
  %4070 = vmatpush1.bf16.msra.mxu0 0
  %4071 = vmatprep.subr.bf16.mxu0 0
  %4072 = vmatpush1.bf16.msra.mxu0 0
  %4073 = vmatprep.subr.bf16.mxu0 0
  %4074 = vmatpush1.bf16.msra.mxu0 0
  %4075 = vmatprep.subr.bf16.mxu0 0
  %4076 = vmatpush1.bf16.msra.mxu0 0
  %4077 = vmatprep.subr.bf16.mxu0 0
  %4078 = vmatpush1.bf16.msra.mxu0 0
  %4079 = vmatprep.subr.bf16.mxu0 0
  %4080 = vmatpush1.bf16.msra.mxu0 0
  %4081 = vmatprep.subr.bf16.mxu0 0
  %4082 = vmatpush1.bf16.msra.mxu0 0
  %4083 = vmatprep.subr.bf16.mxu0 0
  %4084 = vmatpush1.bf16.msra.mxu0 0
  %4085 = vmatprep.mubr.bf16.mxu0 0
  %4086 = vmatmul.mubr.bf16.gmra.mrb[0].mxu0 %v4039
  %v4087 = vpop.f32.mrb[0].mxu0
  %v4088 = vadd.f32 0.0, %v4087
  %v4089 = vpop.f32.mrb[0].mxu0
  %v4090 = vpop.f32.mrb[0].mxu0
  %v4091 = vadd.f32 0.0, %v4090
  %v4092 = vpop.f32.mrb[0].mxu0
  %4093 = vmatprep.mubr.bf16.mxu0 0
  %4094 = vmatmul.mubr.bf16.gmra.mrb[0].mxu0 %v4042
  %v4095 = vpop.f32.mrb[0].mxu0
  %v4096 = vadd.f32 0.0, %v4095
  %v4097 = vpop.f32.mrb[0].mxu0
  %v4098 = vpop.f32.mrb[0].mxu0
  %v4099 = vadd.f32 0.0, %v4098
  %v4100 = vpop.f32.mrb[0].mxu0
  %4101 = vmatprep.mubr.bf16.mxu0 0
  %4102 = vmatmul.mubr.bf16.gmra.mrb[0].mxu0 %v4045
  %v4103 = vpop.f32.mrb[0].mxu0
  %v4104 = vadd.f32 0.0, %v4103
  %v4105 = vpop.f32.mrb[0].mxu0
  %v4106 = vpop.f32.mrb[0].mxu0
  %v4107 = vadd.f32 0.0, %v4106
  %v4108 = vpop.f32.mrb[0].mxu0
  %4109 = vmatprep.mubr.bf16.mxu0 0
  %4110 = vmatmul.mubr.bf16.gmra.mrb[0].mxu0 %v4048
  %v4111 = vpop.f32.mrb[0].mxu0
  %v4112 = vadd.f32 0.0, %v4111
  %v4113 = vpop.f32.mrb[0].mxu0
  %v4114 = vpop.f32.mrb[0].mxu0
  %v4115 = vadd.f32 0.0, %v4114
  %v4116 = vpop.f32.mrb[0].mxu0
  %4117 = vdwg.mxu0
  %v4118 = vadd.f32 %v3708, %v4088
  %v4119 = vadd.f32 %v3709, %v4091
  %v4120 = vadd.f32 %v3710, %v4096
  %v4121 = vadd.f32 %v3711, %v4099
  %v4122 = vadd.f32 %v3712, %v4104
  %v4123 = vadd.f32 %v3713, %v4107
  %v4124 = vadd.f32 %v3714, %v4112
  %v4125 = vadd.f32 %v3715, %v4115
  %v4126 = vlaneseq
  %v4127 = vshrl.u32 %v4126, 7
  %v4128 = vsub.s32 1, %v4127
  %v4129 = vrot.slane %v2404, %v4128
  %v4130 = vadd.f32 %v4118, %v4129
  %v4131 = vadd.f32 %v4119, %v4129
  %v4132 = vadd.f32 %v4120, %v4129
  %v4133 = vadd.f32 %v4121, %v4129
  %v4134 = vadd.f32 %v4122, %v4129
  %v4135 = vadd.f32 %v4123, %v4129
  %v4136 = vadd.f32 %v4124, %v4129
  %v4137 = vadd.f32 %v4125, %v4129
  %v4138 = vadd.f32 %v4130, %v2371
  %v4139 = vadd.f32 %v4131, %v2372
  %v4140 = vadd.f32 %v4132, %v2373
  %v4141 = vadd.f32 %v4133, %v2374
  %v4142 = vadd.f32 %v4134, %v2375
  %v4143 = vadd.f32 %v4135, %v2376
  %v4144 = vadd.f32 %v4136, %v2377
  %v4145 = vadd.f32 %v4137, %v2378
  %v4146 = vsel %vm110, %v4138, 0.0
  %4147 = vadd.xlane.f32.xlu0 %v4146
  %v4148 = vpop.xlane.xlu0 %4147
  %v4149 = vsel %vm110, %v4139, 0.0
  %4150 = vadd.xlane.f32.xlu0 %v4149
  %v4151 = vpop.xlane.xlu0 %4150
  %v4152 = vsel %vm110, %v4140, 0.0
  %4153 = vadd.xlane.f32.xlu0 %v4152
  %v4154 = vpop.xlane.xlu0 %4153
  %v4155 = vsel %vm110, %v4141, 0.0
  %4156 = vadd.xlane.f32.xlu0 %v4155
  %v4157 = vpop.xlane.xlu0 %4156
  %v4158 = vsel %vm110, %v4142, 0.0
  %4159 = vadd.xlane.f32.xlu0 %v4158
  %v4160 = vpop.xlane.xlu0 %4159
  %v4161 = vsel %vm110, %v4143, 0.0
  %4162 = vadd.xlane.f32.xlu0 %v4161
  %v4163 = vpop.xlane.xlu0 %4162
  %v4164 = vsel %vm110, %v4144, 0.0
  %4165 = vadd.xlane.f32.xlu0 %v4164
  %v4166 = vpop.xlane.xlu0 %4165
  %v4167 = vsel %vm110, %v4145, 0.0
  %4168 = vadd.xlane.f32.xlu0 %v4167
  %v4169 = vpop.xlane.xlu0 %4168
  %v4170 = vmul.f32 %v4148, %v1860
  %v4171 = vmul.f32 %v4151, %v1860
  %v4172 = vmul.f32 %v4154, %v1860
  %v4173 = vmul.f32 %v4157, %v1860
  %v4174 = vmul.f32 %v4160, %v1860
  %v4175 = vmul.f32 %v4163, %v1860
  %v4176 = vmul.f32 %v4166, %v1860
  %v4177 = vmul.f32 %v4169, %v1860
  %v4178 = vsub.f32 %v4138, %v4170
  %v4179 = vsub.f32 %v4139, %v4171
  %v4180 = vsub.f32 %v4140, %v4172
  %v4181 = vsub.f32 %v4141, %v4173
  %v4182 = vsub.f32 %v4142, %v4174
  %v4183 = vsub.f32 %v4143, %v4175
  %v4184 = vsub.f32 %v4144, %v4176
  %v4185 = vsub.f32 %v4145, %v4177
  %v4186 = vmul.f32 %v4178, %v4178
  %v4187 = vmul.f32 %v4179, %v4179
  %v4188 = vmul.f32 %v4180, %v4180
  %v4189 = vmul.f32 %v4181, %v4181
  %v4190 = vmul.f32 %v4182, %v4182
  %v4191 = vmul.f32 %v4183, %v4183
  %v4192 = vmul.f32 %v4184, %v4184
  %v4193 = vmul.f32 %v4185, %v4185
  %v4194 = vsel %vm110, %v4186, 0.0
  %4195 = vadd.xlane.f32.xlu0 %v4194
  %v4196 = vpop.xlane.xlu0 %4195
  %v4197 = vsel %vm110, %v4187, 0.0
  %4198 = vadd.xlane.f32.xlu0 %v4197
  %v4199 = vpop.xlane.xlu0 %4198
  %v4200 = vsel %vm110, %v4188, 0.0
  %4201 = vadd.xlane.f32.xlu0 %v4200
  %v4202 = vpop.xlane.xlu0 %4201
  %v4203 = vsel %vm110, %v4189, 0.0
  %4204 = vadd.xlane.f32.xlu0 %v4203
  %v4205 = vpop.xlane.xlu0 %4204
  %v4206 = vsel %vm110, %v4190, 0.0
  %4207 = vadd.xlane.f32.xlu0 %v4206
  %v4208 = vpop.xlane.xlu0 %4207
  %v4209 = vsel %vm110, %v4191, 0.0
  %4210 = vadd.xlane.f32.xlu0 %v4209
  %v4211 = vpop.xlane.xlu0 %4210
  %v4212 = vsel %vm110, %v4192, 0.0
  %4213 = vadd.xlane.f32.xlu0 %v4212
  %v4214 = vpop.xlane.xlu0 %4213
  %v4215 = vsel %vm110, %v4193, 0.0
  %4216 = vadd.xlane.f32.xlu0 %v4215
  %v4217 = vpop.xlane.xlu0 %4216
  %v4218 = vmul.f32 %v4196, %v1860
  %v4219 = vmul.f32 %v4199, %v1860
  %v4220 = vmul.f32 %v4202, %v1860
  %v4221 = vmul.f32 %v4205, %v1860
  %v4222 = vmul.f32 %v4208, %v1860
  %v4223 = vmul.f32 %v4211, %v1860
  %v4224 = vmul.f32 %v4214, %v1860
  %v4225 = vmul.f32 %v4217, %v1860
  %v4226 = vadd.f32 %v4218, 1e-12
  %v4227 = vadd.f32 %v4219, 1e-12
  %v4228 = vadd.f32 %v4220, 1e-12
  %v4229 = vadd.f32 %v4221, 1e-12
  %v4230 = vadd.f32 %v4222, 1e-12
  %v4231 = vadd.f32 %v4223, 1e-12
  %v4232 = vadd.f32 %v4224, 1e-12
  %v4233 = vadd.f32 %v4225, 1e-12
  %v4234 = vrsqrt.pop %v4226
  %v4235 = vrsqrt.pop %v4227
  %v4236 = vrsqrt.pop %v4228
  %v4237 = vrsqrt.pop %v4229
  %v4238 = vrsqrt.pop %v4230
  %v4239 = vrsqrt.pop %v4231
  %v4240 = vrsqrt.pop %v4232
  %v4241 = vrsqrt.pop %v4233
  %v4242 = vmul.f32 %v4178, %v4234
  %v4243 = vmul.f32 %v4179, %v4235
  %v4244 = vmul.f32 %v4180, %v4236
  %v4245 = vmul.f32 %v4181, %v4237
  %v4246 = vmul.f32 %v4182, %v4238
  %v4247 = vmul.f32 %v4183, %v4239
  %v4248 = vmul.f32 %v4184, %v4240
  %v4249 = vmul.f32 %v4185, %v4241
  %v4250 = vlaneseq
  %v4251 = vshrl.u32 %v4250, 7
  %v4252 = vsub.s32 2, %v4251
  %v4253 = vrot.slane %v2404, %v4252
  %v4254 = vmul.f32 %v4242, %v4253
  %v4255 = vmul.f32 %v4243, %v4253
  %v4256 = vmul.f32 %v4244, %v4253
  %v4257 = vmul.f32 %v4245, %v4253
  %v4258 = vmul.f32 %v4246, %v4253
  %v4259 = vmul.f32 %v4247, %v4253
  %v4260 = vmul.f32 %v4248, %v4253
  %v4261 = vmul.f32 %v4249, %v4253
  %v4262 = vlaneseq
  %v4263 = vshrl.u32 %v4262, 7
  %v4264 = vsub.s32 3, %v4263
  %v4265 = vrot.slane %v2404, %v4264
  %v4266 = vadd.f32 %v4254, %v4265
  %v4267 = vadd.f32 %v4255, %v4265
  %v4268 = vadd.f32 %v4256, %v4265
  %v4269 = vadd.f32 %v4257, %v4265
  %v4270 = vadd.f32 %v4258, %v4265
  %v4271 = vadd.f32 %v4259, %v4265
  %v4272 = vadd.f32 %v4260, %v4265
  %v4273 = vadd.f32 %v4261, %v4265
  %v4274 = vpack.c.bf16 %v4267, %v4266
  %v4275 = vpack.c.bf16 %v4269, %v4268
  %v4276 = vpack.c.bf16 %v4271, %v4270
  %v4277 = vpack.c.bf16 %v4273, %v4272
  %v4278 = vlaneseq
  %v4279 = vshrl.u32 %v4278, 7
  %v4280 = vsub.s32 4, %v4279
  %v4281 = vrot.slane %v2404, %v4280
  %v4286 = vunpack.c.l.b16 %v2390
  %v4287 = vunpack.c.l.b16 %v2391
  %v4288 = vunpack.c.l.b16 %v2392
  %v4289 = vunpack.c.l.b16 %v2393
  %v4290 = vpack.c.b16 %v4287, %v4286
  %v4291 = vpack.c.b16 %v4289, %v4288
  %v4295 = vsel %vm110, %v4274, 0
  %v4298 = vsel %vm110, %v4275, 0
  %v4301 = vsel %vm110, %v4276, 0
  %v4304 = vsel %vm110, %v4277, 0
  %4306 = vmatprep.subr.bf16.mxu0 0
  %4307 = vmatpush1.bf16.msra.mxu0 %v4290
  %4308 = vmatprep.subr.bf16.mxu0 0
  %4309 = vmatpush1.bf16.msra.mxu0 %v4291
  %4310 = vmatprep.subr.bf16.mxu0 0
  %4311 = vmatpush1.bf16.msra.mxu0 0
  %4312 = vmatprep.subr.bf16.mxu0 0
  %4313 = vmatpush1.bf16.msra.mxu0 0
  %4314 = vmatprep.subr.bf16.mxu0 0
  %4315 = vmatpush1.bf16.msra.mxu0 0
  %4316 = vmatprep.subr.bf16.mxu0 0
  %4317 = vmatpush1.bf16.msra.mxu0 0
  %4318 = vmatprep.subr.bf16.mxu0 0
  %4319 = vmatpush1.bf16.msra.mxu0 0
  %4320 = vmatprep.subr.bf16.mxu0 0
  %4321 = vmatpush1.bf16.msra.mxu0 0
  %4322 = vmatprep.subr.bf16.mxu0 0
  %4323 = vmatpush1.bf16.msra.mxu0 0
  %4324 = vmatprep.subr.bf16.mxu0 0
  %4325 = vmatpush1.bf16.msra.mxu0 0
  %4326 = vmatprep.subr.bf16.mxu0 0
  %4327 = vmatpush1.bf16.msra.mxu0 0
  %4328 = vmatprep.subr.bf16.mxu0 0
  %4329 = vmatpush1.bf16.msra.mxu0 0
  %4330 = vmatprep.subr.bf16.mxu0 0
  %4331 = vmatpush1.bf16.msra.mxu0 0
  %4332 = vmatprep.subr.bf16.mxu0 0
  %4333 = vmatpush1.bf16.msra.mxu0 0
  %4334 = vmatprep.subr.bf16.mxu0 0
  %4335 = vmatpush1.bf16.msra.mxu0 0
  %4336 = vmatprep.subr.bf16.mxu0 0
  %4337 = vmatpush1.bf16.msra.mxu0 0
  %4338 = vmatprep.mubr.bf16.mxu0 0
  %4339 = vmatmul.mubr.bf16.gmra.mrb[0].mxu0 %v4295
  %v4340 = vpop.f32.mrb[0].mxu0
  %v4341 = vadd.f32 %v4281, %v4340
  %v4342 = vpop.f32.mrb[0].mxu0
  %v4343 = vpop.f32.mrb[0].mxu0
  %v4344 = vadd.f32 %v4281, %v4343
  %v4345 = vpop.f32.mrb[0].mxu0
  %4346 = vmatprep.mubr.bf16.mxu0 0
  %4347 = vmatmul.mubr.bf16.gmra.mrb[0].mxu0 %v4298
  %v4348 = vpop.f32.mrb[0].mxu0
  %v4349 = vadd.f32 %v4281, %v4348
  %v4350 = vpop.f32.mrb[0].mxu0
  %v4351 = vpop.f32.mrb[0].mxu0
  %v4352 = vadd.f32 %v4281, %v4351
  %v4353 = vpop.f32.mrb[0].mxu0
  %4354 = vmatprep.mubr.bf16.mxu0 0
  %4355 = vmatmul.mubr.bf16.gmra.mrb[0].mxu0 %v4301
  %v4356 = vpop.f32.mrb[0].mxu0
  %v4357 = vadd.f32 %v4281, %v4356
  %v4358 = vpop.f32.mrb[0].mxu0
  %v4359 = vpop.f32.mrb[0].mxu0
  %v4360 = vadd.f32 %v4281, %v4359
  %v4361 = vpop.f32.mrb[0].mxu0
  %4362 = vmatprep.mubr.bf16.mxu0 0
  %4363 = vmatmul.mubr.bf16.gmra.mrb[0].mxu0 %v4304
  %v4364 = vpop.f32.mrb[0].mxu0
  %v4365 = vadd.f32 %v4281, %v4364
  %v4366 = vpop.f32.mrb[0].mxu0
  %v4367 = vpop.f32.mrb[0].mxu0
  %v4368 = vadd.f32 %v4281, %v4367
  %v4369 = vpop.f32.mrb[0].mxu0
  %4370 = vdwg.mxu0
  %v4371 = vmul.f32 %v4341, 0.5
  %v4372 = vmul.f32 %v4344, 0.5
  %v4373 = vmul.f32 %v4349, 0.5
  %v4374 = vmul.f32 %v4352, 0.5
  %v4375 = vmul.f32 %v4357, 0.5
  %v4376 = vmul.f32 %v4360, 0.5
  %v4377 = vmul.f32 %v4365, 0.5
  %v4378 = vmul.f32 %v4368, 0.5
  %v4379 = vmul.f32 %v4341, 0.044715
  %v4380 = vmul.f32 %v4344, 0.044715
  %v4381 = vmul.f32 %v4349, 0.044715
  %v4382 = vmul.f32 %v4352, 0.044715
  %v4383 = vmul.f32 %v4357, 0.044715
  %v4384 = vmul.f32 %v4360, 0.044715
  %v4385 = vmul.f32 %v4365, 0.044715
  %v4386 = vmul.f32 %v4368, 0.044715
  %v4387 = vmul.f32 %v4379, %v4341
  %v4388 = vmul.f32 %v4380, %v4344
  %v4389 = vmul.f32 %v4381, %v4349
  %v4390 = vmul.f32 %v4382, %v4352
  %v4391 = vmul.f32 %v4383, %v4357
  %v4392 = vmul.f32 %v4384, %v4360
  %v4393 = vmul.f32 %v4385, %v4365
  %v4394 = vmul.f32 %v4386, %v4368
  %v4395 = vmul.f32 %v4387, %v4341
  %v4396 = vmul.f32 %v4388, %v4344
  %v4397 = vmul.f32 %v4389, %v4349
  %v4398 = vmul.f32 %v4390, %v4352
  %v4399 = vmul.f32 %v4391, %v4357
  %v4400 = vmul.f32 %v4392, %v4360
  %v4401 = vmul.f32 %v4393, %v4365
  %v4402 = vmul.f32 %v4394, %v4368
  %v4403 = vadd.f32 %v4341, %v4395
  %v4404 = vadd.f32 %v4344, %v4396
  %v4405 = vadd.f32 %v4349, %v4397
  %v4406 = vadd.f32 %v4352, %v4398
  %v4407 = vadd.f32 %v4357, %v4399
  %v4408 = vadd.f32 %v4360, %v4400
  %v4409 = vadd.f32 %v4365, %v4401
  %v4410 = vadd.f32 %v4368, %v4402
  %v4411 = vmul.f32 %v4403, 0.7978846
  %v4412 = vmul.f32 %v4404, 0.7978846
  %v4413 = vmul.f32 %v4405, 0.7978846
  %v4414 = vmul.f32 %v4406, 0.7978846
  %v4415 = vmul.f32 %v4407, 0.7978846
  %v4416 = vmul.f32 %v4408, 0.7978846
  %v4417 = vmul.f32 %v4409, 0.7978846
  %v4418 = vmul.f32 %v4410, 0.7978846
  %v4419 = vtanh.pop %v4411
  %v4420 = vtanh.pop %v4412
  %v4421 = vtanh.pop %v4413
  %v4422 = vtanh.pop %v4414
  %v4423 = vtanh.pop %v4415
  %v4424 = vtanh.pop %v4416
  %v4425 = vtanh.pop %v4417
  %v4426 = vtanh.pop %v4418
  %v4427 = vadd.f32 %v4419, 1.0
  %v4428 = vadd.f32 %v4420, 1.0
  %v4429 = vadd.f32 %v4421, 1.0
  %v4430 = vadd.f32 %v4422, 1.0
  %v4431 = vadd.f32 %v4423, 1.0
  %v4432 = vadd.f32 %v4424, 1.0
  %v4433 = vadd.f32 %v4425, 1.0
  %v4434 = vadd.f32 %v4426, 1.0
  %v4435 = vmul.f32 %v4371, %v4427
  %v4436 = vmul.f32 %v4372, %v4428
  %v4437 = vmul.f32 %v4373, %v4429
  %v4438 = vmul.f32 %v4374, %v4430
  %v4439 = vmul.f32 %v4375, %v4431
  %v4440 = vmul.f32 %v4376, %v4432
  %v4441 = vmul.f32 %v4377, %v4433
  %v4442 = vmul.f32 %v4378, %v4434
  %v4443 = vpack.c.bf16 %v4436, %v4435
  %v4444 = vpack.c.bf16 %v4438, %v4437
  %v4445 = vpack.c.bf16 %v4440, %v4439
  %v4446 = vpack.c.bf16 %v4442, %v4441
  %v4447 = vlaneseq
  %v4448 = vshrl.u32 %v4447, 7
  %v4449 = vsub.s32 5, %v4448
  %v4450 = vrot.slane %v2404, %v4449
  %v4459 = vunpack.c.l.b16 %v2395
  %v4460 = vunpack.c.l.b16 %v2396
  %v4461 = vunpack.c.l.b16 %v2397
  %v4462 = vunpack.c.l.b16 %v2398
  %v4463 = vunpack.c.l.b16 %v2399
  %v4464 = vunpack.c.l.b16 %v2400
  %v4465 = vunpack.c.l.b16 %v2401
  %v4466 = vunpack.c.l.b16 %v2402
  %v4467 = vpack.c.b16 %v4460, %v4459
  %v4468 = vpack.c.b16 %v4462, %v4461
  %v4469 = vpack.c.b16 %v4464, %v4463
  %v4470 = vpack.c.b16 %v4466, %v4465
  %v4476 = vsel %vm327, %v4443, 0
  %v4479 = vsel %vm327, %v4444, 0
  %v4482 = vsel %vm327, %v4445, 0
  %v4485 = vsel %vm327, %v4446, 0
  %4487 = vmatprep.subr.bf16.mxu0 0
  %4488 = vmatpush1.bf16.msra.mxu0 %v4467
  %4489 = vmatprep.subr.bf16.mxu0 0
  %4490 = vmatpush1.bf16.msra.mxu0 %v4468
  %4491 = vmatprep.subr.bf16.mxu0 0
  %4492 = vmatpush1.bf16.msra.mxu0 %v4469
  %4493 = vmatprep.subr.bf16.mxu0 0
  %4494 = vmatpush1.bf16.msra.mxu0 %v4470
  %4495 = vmatprep.subr.bf16.mxu0 0
  %4496 = vmatpush1.bf16.msra.mxu0 0
  %4497 = vmatprep.subr.bf16.mxu0 0
  %4498 = vmatpush1.bf16.msra.mxu0 0
  %4499 = vmatprep.subr.bf16.mxu0 0
  %4500 = vmatpush1.bf16.msra.mxu0 0
  %4501 = vmatprep.subr.bf16.mxu0 0
  %4502 = vmatpush1.bf16.msra.mxu0 0
  %4503 = vmatprep.subr.bf16.mxu0 0
  %4504 = vmatpush1.bf16.msra.mxu0 0
  %4505 = vmatprep.subr.bf16.mxu0 0
  %4506 = vmatpush1.bf16.msra.mxu0 0
  %4507 = vmatprep.subr.bf16.mxu0 0
  %4508 = vmatpush1.bf16.msra.mxu0 0
  %4509 = vmatprep.subr.bf16.mxu0 0
  %4510 = vmatpush1.bf16.msra.mxu0 0
  %4511 = vmatprep.subr.bf16.mxu0 0
  %4512 = vmatpush1.bf16.msra.mxu0 0
  %4513 = vmatprep.subr.bf16.mxu0 0
  %4514 = vmatpush1.bf16.msra.mxu0 0
  %4515 = vmatprep.subr.bf16.mxu0 0
  %4516 = vmatpush1.bf16.msra.mxu0 0
  %4517 = vmatprep.subr.bf16.mxu0 0
  %4518 = vmatpush1.bf16.msra.mxu0 0
  %4519 = vmatprep.mubr.bf16.mxu0 0
  %4520 = vmatmul.mubr.bf16.gmra.mrb[0].mxu0 %v4476
  %v4521 = vpop.f32.mrb[0].mxu0
  %v4522 = vadd.f32 %v4450, %v4521
  %v4523 = vpop.f32.mrb[0].mxu0
  %v4524 = vpop.f32.mrb[0].mxu0
  %v4525 = vadd.f32 %v4450, %v4524
  %v4526 = vpop.f32.mrb[0].mxu0
  %4527 = vmatprep.mubr.bf16.mxu0 0
  %4528 = vmatmul.mubr.bf16.gmra.mrb[0].mxu0 %v4479
  %v4529 = vpop.f32.mrb[0].mxu0
  %v4530 = vadd.f32 %v4450, %v4529
  %v4531 = vpop.f32.mrb[0].mxu0
  %v4532 = vpop.f32.mrb[0].mxu0
  %v4533 = vadd.f32 %v4450, %v4532
  %v4534 = vpop.f32.mrb[0].mxu0
  %4535 = vmatprep.mubr.bf16.mxu0 0
  %4536 = vmatmul.mubr.bf16.gmra.mrb[0].mxu0 %v4482
  %v4537 = vpop.f32.mrb[0].mxu0
  %v4538 = vadd.f32 %v4450, %v4537
  %v4539 = vpop.f32.mrb[0].mxu0
  %v4540 = vpop.f32.mrb[0].mxu0
  %v4541 = vadd.f32 %v4450, %v4540
  %v4542 = vpop.f32.mrb[0].mxu0
  %4543 = vmatprep.mubr.bf16.mxu0 0
  %4544 = vmatmul.mubr.bf16.gmra.mrb[0].mxu0 %v4485
  %v4545 = vpop.f32.mrb[0].mxu0
  %v4546 = vadd.f32 %v4450, %v4545
  %v4547 = vpop.f32.mrb[0].mxu0
  %v4548 = vpop.f32.mrb[0].mxu0
  %v4549 = vadd.f32 %v4450, %v4548
  %v4550 = vpop.f32.mrb[0].mxu0
  %4551 = vdwg.mxu0
  %v4552 = vadd.f32 %v4522, %v4266
  %v4553 = vadd.f32 %v4525, %v4267
  %v4554 = vadd.f32 %v4530, %v4268
  %v4555 = vadd.f32 %v4533, %v4269
  %v4556 = vadd.f32 %v4538, %v4270
  %v4557 = vadd.f32 %v4541, %v4271
  %v4558 = vadd.f32 %v4546, %v4272
  %v4559 = vadd.f32 %v4549, %v4273
  %v4560 = vsel %vm110, %v4552, 0.0
  %4561 = vadd.xlane.f32.xlu0 %v4560
  %v4562 = vpop.xlane.xlu0 %4561
  %v4563 = vsel %vm110, %v4553, 0.0
  %4564 = vadd.xlane.f32.xlu0 %v4563
  %v4565 = vpop.xlane.xlu0 %4564
  %v4566 = vsel %vm110, %v4554, 0.0
  %4567 = vadd.xlane.f32.xlu0 %v4566
  %v4568 = vpop.xlane.xlu0 %4567
  %v4569 = vsel %vm110, %v4555, 0.0
  %4570 = vadd.xlane.f32.xlu0 %v4569
  %v4571 = vpop.xlane.xlu0 %4570
  %v4572 = vsel %vm110, %v4556, 0.0
  %4573 = vadd.xlane.f32.xlu0 %v4572
  %v4574 = vpop.xlane.xlu0 %4573
  %v4575 = vsel %vm110, %v4557, 0.0
  %4576 = vadd.xlane.f32.xlu0 %v4575
  %v4577 = vpop.xlane.xlu0 %4576
  %v4578 = vsel %vm110, %v4558, 0.0
  %4579 = vadd.xlane.f32.xlu0 %v4578
  %v4580 = vpop.xlane.xlu0 %4579
  %v4581 = vsel %vm110, %v4559, 0.0
  %4582 = vadd.xlane.f32.xlu0 %v4581
  %v4583 = vpop.xlane.xlu0 %4582
  %v4584 = vmul.f32 %v4562, %v1860
  %v4585 = vmul.f32 %v4565, %v1860
  %v4586 = vmul.f32 %v4568, %v1860
  %v4587 = vmul.f32 %v4571, %v1860
  %v4588 = vmul.f32 %v4574, %v1860
  %v4589 = vmul.f32 %v4577, %v1860
  %v4590 = vmul.f32 %v4580, %v1860
  %v4591 = vmul.f32 %v4583, %v1860
  %v4592 = vsub.f32 %v4552, %v4584
  %v4593 = vsub.f32 %v4553, %v4585
  %v4594 = vsub.f32 %v4554, %v4586
  %v4595 = vsub.f32 %v4555, %v4587
  %v4596 = vsub.f32 %v4556, %v4588
  %v4597 = vsub.f32 %v4557, %v4589
  %v4598 = vsub.f32 %v4558, %v4590
  %v4599 = vsub.f32 %v4559, %v4591
  %v4600 = vmul.f32 %v4592, %v4592
  %v4601 = vmul.f32 %v4593, %v4593
  %v4602 = vmul.f32 %v4594, %v4594
  %v4603 = vmul.f32 %v4595, %v4595
  %v4604 = vmul.f32 %v4596, %v4596
  %v4605 = vmul.f32 %v4597, %v4597
  %v4606 = vmul.f32 %v4598, %v4598
  %v4607 = vmul.f32 %v4599, %v4599
  %v4608 = vsel %vm110, %v4600, 0.0
  %4609 = vadd.xlane.f32.xlu0 %v4608
  %v4610 = vpop.xlane.xlu0 %4609
  %v4611 = vsel %vm110, %v4601, 0.0
  %4612 = vadd.xlane.f32.xlu0 %v4611
  %v4613 = vpop.xlane.xlu0 %4612
  %v4614 = vsel %vm110, %v4602, 0.0
  %4615 = vadd.xlane.f32.xlu0 %v4614
  %v4616 = vpop.xlane.xlu0 %4615
  %v4617 = vsel %vm110, %v4603, 0.0
  %4618 = vadd.xlane.f32.xlu0 %v4617
  %v4619 = vpop.xlane.xlu0 %4618
  %v4620 = vsel %vm110, %v4604, 0.0
  %4621 = vadd.xlane.f32.xlu0 %v4620
  %v4622 = vpop.xlane.xlu0 %4621
  %v4623 = vsel %vm110, %v4605, 0.0
  %4624 = vadd.xlane.f32.xlu0 %v4623
  %v4625 = vpop.xlane.xlu0 %4624
  %v4626 = vsel %vm110, %v4606, 0.0
  %4627 = vadd.xlane.f32.xlu0 %v4626
  %v4628 = vpop.xlane.xlu0 %4627
  %v4629 = vsel %vm110, %v4607, 0.0
  %4630 = vadd.xlane.f32.xlu0 %v4629
  %v4631 = vpop.xlane.xlu0 %4630
  %v4632 = vmul.f32 %v4610, %v1860
  %v4633 = vmul.f32 %v4613, %v1860
  %v4634 = vmul.f32 %v4616, %v1860
  %v4635 = vmul.f32 %v4619, %v1860
  %v4636 = vmul.f32 %v4622, %v1860
  %v4637 = vmul.f32 %v4625, %v1860
  %v4638 = vmul.f32 %v4628, %v1860
  %v4639 = vmul.f32 %v4631, %v1860
  %v4640 = vadd.f32 %v4632, 1e-12
  %v4641 = vadd.f32 %v4633, 1e-12
  %v4642 = vadd.f32 %v4634, 1e-12
  %v4643 = vadd.f32 %v4635, 1e-12
  %v4644 = vadd.f32 %v4636, 1e-12
  %v4645 = vadd.f32 %v4637, 1e-12
  %v4646 = vadd.f32 %v4638, 1e-12
  %v4647 = vadd.f32 %v4639, 1e-12
  %v4648 = vrsqrt.pop %v4640
  %v4649 = vrsqrt.pop %v4641
  %v4650 = vrsqrt.pop %v4642
  %v4651 = vrsqrt.pop %v4643
  %v4652 = vrsqrt.pop %v4644
  %v4653 = vrsqrt.pop %v4645
  %v4654 = vrsqrt.pop %v4646
  %v4655 = vrsqrt.pop %v4647
  %v4656 = vmul.f32 %v4592, %v4648
  %v4657 = vmul.f32 %v4593, %v4649
  %v4658 = vmul.f32 %v4594, %v4650
  %v4659 = vmul.f32 %v4595, %v4651
  %v4660 = vmul.f32 %v4596, %v4652
  %v4661 = vmul.f32 %v4597, %v4653
  %v4662 = vmul.f32 %v4598, %v4654
  %v4663 = vmul.f32 %v4599, %v4655
  %v4664 = vlaneseq
  %v4665 = vshrl.u32 %v4664, 7
  %v4666 = vsub.s32 6, %v4665
  %v4667 = vrot.slane %v2404, %v4666
  %v4668 = vmul.f32 %v4656, %v4667
  %v4669 = vmul.f32 %v4657, %v4667
  %v4670 = vmul.f32 %v4658, %v4667
  %v4671 = vmul.f32 %v4659, %v4667
  %v4672 = vmul.f32 %v4660, %v4667
  %v4673 = vmul.f32 %v4661, %v4667
  %v4674 = vmul.f32 %v4662, %v4667
  %v4675 = vmul.f32 %v4663, %v4667
  %v4676 = vlaneseq
  %v4677 = vshrl.u32 %v4676, 7
  %v4678 = vsub.s32 7, %v4677
  %v4679 = vrot.slane %v2404, %v4678
  %v4680 = vadd.f32 %v4668, %v4679
  %v4681 = vadd.f32 %v4669, %v4679
  %v4682 = vadd.f32 %v4670, %v4679
  %v4683 = vadd.f32 %v4671, %v4679
  %v4684 = vadd.f32 %v4672, %v4679
  %v4685 = vadd.f32 %v4673, %v4679
  %v4686 = vadd.f32 %v4674, %v4679
  %v4687 = vadd.f32 %v4675, %v4679
  %v4688 = vlaneseq
  %v4689 = vshrl.u32 %v4688, 7
  %v4690 = vmul.u32 %v4689, 8
  %v4691 = vlaneseq
  %v4692 = vand.u32 %v4691, 127
  %vm4693 = vcmp.eq.s32.totalorder %v4690, %v4692
  %v4694 = vsel %vm4693, 1, 0
  %v4695 = vcvt.s32.f32 %v4694
  %v4696 = vpack.c.bf16 %v4695, %v4695
  %v4697 = vpack.c.bf16 %v4681, %v4680
  %v4698 = vpack.c.bf16 %v4683, %v4682
  %v4699 = vpack.c.bf16 %v4685, %v4684
  %v4700 = vpack.c.bf16 %v4687, %v4686
  %v4702 = vsel %vm327, %v4696, 0
  %4704 = vmatprep.subr.bf16.mxu0 0
  %4705 = vmatpush1.bf16.msra.mxu0 %v4697
  %4706 = vmatprep.subr.bf16.mxu0 0
  %4707 = vmatpush1.bf16.msra.mxu0 %v4698
  %4708 = vmatprep.subr.bf16.mxu0 0
  %4709 = vmatpush1.bf16.msra.mxu0 %v4699
  %4710 = vmatprep.subr.bf16.mxu0 0
  %4711 = vmatpush1.bf16.msra.mxu0 %v4700
  %4712 = vmatprep.subr.bf16.mxu0 0
  %4713 = vmatpush1.bf16.msra.mxu0 0
  %4714 = vmatprep.subr.bf16.mxu0 0
  %4715 = vmatpush1.bf16.msra.mxu0 0
  %4716 = vmatprep.subr.bf16.mxu0 0
  %4717 = vmatpush1.bf16.msra.mxu0 0
  %4718 = vmatprep.subr.bf16.mxu0 0
  %4719 = vmatpush1.bf16.msra.mxu0 0
  %4720 = vmatprep.subr.bf16.mxu0 0
  %4721 = vmatpush1.bf16.msra.mxu0 0
  %4722 = vmatprep.subr.bf16.mxu0 0
  %4723 = vmatpush1.bf16.msra.mxu0 0
  %4724 = vmatprep.subr.bf16.mxu0 0
  %4725 = vmatpush1.bf16.msra.mxu0 0
  %4726 = vmatprep.subr.bf16.mxu0 0
  %4727 = vmatpush1.bf16.msra.mxu0 0
  %4728 = vmatprep.subr.bf16.mxu0 0
  %4729 = vmatpush1.bf16.msra.mxu0 0
  %4730 = vmatprep.subr.bf16.mxu0 0
  %4731 = vmatpush1.bf16.msra.mxu0 0
  %4732 = vmatprep.subr.bf16.mxu0 0
  %4733 = vmatpush1.bf16.msra.mxu0 0
  %4734 = vmatprep.subr.bf16.mxu0 0
  %4735 = vmatpush1.bf16.msra.mxu0 0
  %4736 = vmatprep.mubr.bf16.mxu0 0
  %4737 = vmatmul.mubr.bf16.gmra.mrb[0].mxu0 %v4702
  %v4738 = vpop.f32.mrb[0].mxu0
  %v4739 = vadd.f32 0.0, %v4738
  %v4740 = vpop.f32.mrb[0].mxu0
  %v4741 = vpop.f32.mrb[0].mxu0
  %v4742 = vpop.f32.mrb[0].mxu0
  %4743 = vdwg.mxu0
  %v4744 = vpack.c.bf16 %v4739, %v4739
  %v4745 = vld [vmem:[%s8] sm:$0xf]
  %v4746 = vld [vmem:[%s8 + $0x4] sm:$0xf]
  %v4747 = vld [vmem:[%s8 + $0x8] sm:$0xf]
  %v4748 = vld [vmem:[%s8 + $0xc] sm:$0xf]
  %v4749 = vld [vmem:[%s9] sm:$0x1]
  %v4750 = vlaneseq
  %v4751 = vshrl.u32 %v4750, 7
  %v4752 = vsub.s32 0, %v4751
  %v4753 = vrot.slane %v4749, %v4752
  %v4758 = vunpack.c.l.b16 %v4745
  %v4759 = vunpack.c.l.b16 %v4746
  %v4760 = vunpack.c.l.b16 %v4747
  %v4761 = vunpack.c.l.b16 %v4748
  %v4762 = vpack.c.b16 %v4759, %v4758
  %v4763 = vpack.c.b16 %v4761, %v4760
  %v4767 = vsel %vm110, %v4744, 0
  %4769 = vmatprep.subr.bf16.mxu0 0
  %4770 = vmatpush1.bf16.msra.mxu0 %v4762
  %4771 = vmatprep.subr.bf16.mxu0 0
  %4772 = vmatpush1.bf16.msra.mxu0 %v4763
  %4773 = vmatprep.subr.bf16.mxu0 0
  %4774 = vmatpush1.bf16.msra.mxu0 0
  %4775 = vmatprep.subr.bf16.mxu0 0
  %4776 = vmatpush1.bf16.msra.mxu0 0
  %4777 = vmatprep.subr.bf16.mxu0 0
  %4778 = vmatpush1.bf16.msra.mxu0 0
  %4779 = vmatprep.subr.bf16.mxu0 0
  %4780 = vmatpush1.bf16.msra.mxu0 0
  %4781 = vmatprep.subr.bf16.mxu0 0
  %4782 = vmatpush1.bf16.msra.mxu0 0
  %4783 = vmatprep.subr.bf16.mxu0 0
  %4784 = vmatpush1.bf16.msra.mxu0 0
  %4785 = vmatprep.subr.bf16.mxu0 0
  %4786 = vmatpush1.bf16.msra.mxu0 0
  %4787 = vmatprep.subr.bf16.mxu0 0
  %4788 = vmatpush1.bf16.msra.mxu0 0
  %4789 = vmatprep.subr.bf16.mxu0 0
  %4790 = vmatpush1.bf16.msra.mxu0 0
  %4791 = vmatprep.subr.bf16.mxu0 0
  %4792 = vmatpush1.bf16.msra.mxu0 0
  %4793 = vmatprep.subr.bf16.mxu0 0
  %4794 = vmatpush1.bf16.msra.mxu0 0
  %4795 = vmatprep.subr.bf16.mxu0 0
  %4796 = vmatpush1.bf16.msra.mxu0 0
  %4797 = vmatprep.subr.bf16.mxu0 0
  %4798 = vmatpush1.bf16.msra.mxu0 0
  %4799 = vmatprep.subr.bf16.mxu0 0
  %4800 = vmatpush1.bf16.msra.mxu0 0
  %4801 = vmatprep.mubr.bf16.mxu0 0
  %4802 = vmatmul.mubr.bf16.gmra.mrb[0].mxu0 %v4767
  %v4803 = vpop.f32.mrb[0].mxu0
  %v4804 = vadd.f32 %v4753, %v4803
  %v4805 = vpop.f32.mrb[0].mxu0
  %v4806 = vpop.f32.mrb[0].mxu0
  %v4807 = vpop.f32.mrb[0].mxu0
  %4808 = vdwg.mxu0
  %v4809 = vtanh.pop %v4804
  %v4810 = vpack.c.bf16 %v4809, %v4809
  %s4811 = scalar_lea.vmem %s8, 16
  %v4812 = vld [vmem:[%s4811] sm:$0xf]
  %v4813 = vld [vmem:[%s4811 + $0x4] sm:$0xf]
  %v4814 = vld [vmem:[%s4811 + $0x8] sm:$0xf]
  %v4815 = vld [vmem:[%s4811 + $0xc] sm:$0xf]
  %v4816 = vld [vmem:[%s9 + $0x1] sm:$0x1]
  %v4817 = vlaneseq
  %v4818 = vshrl.u32 %v4817, 7
  %v4819 = vsub.s32 0, %v4818
  %v4820 = vrot.slane %v4816, %v4819
  %v4825 = vunpack.c.l.b16 %v4812
  %v4826 = vunpack.c.l.b16 %v4813
  %v4827 = vunpack.c.l.b16 %v4814
  %v4828 = vunpack.c.l.b16 %v4815
  %v4829 = vpack.c.b16 %v4826, %v4825
  %v4830 = vpack.c.b16 %v4828, %v4827
  %v4834 = vsel %vm110, %v4810, 0
  %4836 = vmatprep.subr.bf16.mxu0 0
  %4837 = vmatpush1.bf16.msra.mxu0 %v4829
  %4838 = vmatprep.subr.bf16.mxu0 0
  %4839 = vmatpush1.bf16.msra.mxu0 %v4830
  %4840 = vmatprep.subr.bf16.mxu0 0
  %4841 = vmatpush1.bf16.msra.mxu0 0
  %4842 = vmatprep.subr.bf16.mxu0 0
  %4843 = vmatpush1.bf16.msra.mxu0 0
  %4844 = vmatprep.subr.bf16.mxu0 0
  %4845 = vmatpush1.bf16.msra.mxu0 0
  %4846 = vmatprep.subr.bf16.mxu0 0
  %4847 = vmatpush1.bf16.msra.mxu0 0
  %4848 = vmatprep.subr.bf16.mxu0 0
  %4849 = vmatpush1.bf16.msra.mxu0 0
  %4850 = vmatprep.subr.bf16.mxu0 0
  %4851 = vmatpush1.bf16.msra.mxu0 0
  %4852 = vmatprep.subr.bf16.mxu0 0
  %4853 = vmatpush1.bf16.msra.mxu0 0
  %4854 = vmatprep.subr.bf16.mxu0 0
  %4855 = vmatpush1.bf16.msra.mxu0 0
  %4856 = vmatprep.subr.bf16.mxu0 0
  %4857 = vmatpush1.bf16.msra.mxu0 0
  %4858 = vmatprep.subr.bf16.mxu0 0
  %4859 = vmatpush1.bf16.msra.mxu0 0
  %4860 = vmatprep.subr.bf16.mxu0 0
  %4861 = vmatpush1.bf16.msra.mxu0 0
  %4862 = vmatprep.subr.bf16.mxu0 0
  %4863 = vmatpush1.bf16.msra.mxu0 0
  %4864 = vmatprep.subr.bf16.mxu0 0
  %4865 = vmatpush1.bf16.msra.mxu0 0
  %4866 = vmatprep.subr.bf16.mxu0 0
  %4867 = vmatpush1.bf16.msra.mxu0 0
  %4868 = vmatprep.mubr.bf16.mxu0 0
  %4869 = vmatmul.mubr.bf16.gmra.mrb[0].mxu0 %v4834
  %v4870 = vpop.f32.mrb[0].mxu0
  %v4871 = vadd.f32 %v4820, %v4870
  %v4872 = vpop.f32.mrb[0].mxu0
  %v4873 = vpop.f32.mrb[0].mxu0
  %v4874 = vpop.f32.mrb[0].mxu0
  %4875 = vdwg.mxu0
  %4876 = vst [vmem:[%s10] sm:$0xff] %v4871
  // Predicated region
  $region42: #{bert_model_wrapper_forward.1} parent=0 // pred_check
    _
  $region43: #{bert_model_wrapper_forward.1} parent=0 // pred_check_branch
    %4878 = sbr.rel (0) target = $region45
  $region44: #{bert_model_wrapper_forward.1} parent=0 // pred_region
    _
  $region45: #{bert_model_wrapper_forward.1} parent=0 // pred_fallthru
    _
  // Predicated region
  $region46: #{bert_model_wrapper_forward.1} parent=0 // pred_check
    _
  $region47: #{bert_model_wrapper_forward.1} parent=0 // pred_check_branch
    %4880 = sbr.rel (0) target = $region49
  $region48: #{bert_model_wrapper_forward.1} parent=0 // pred_region
    _
  $region49: #{bert_model_wrapper_forward.1} parent=0 // pred_fallthru
    _

</llo_original>
